<compile_context>
chip_gen: v5e
topology: v5e:2x2
jax: 0.10.0
libtpu: 0.0.40
codegen_flags: <defaults>
</compile_context>

<pallas_src>
import functools
import math

import jax
import jax.numpy as jnp
from jax import lax
from jax.experimental import pallas as pl
from jax.experimental.pallas import tpu as pltpu

EPS = 1e-5  # nn.LayerNorm default

# Deterministic ordering of every parameter passed to the fused kernel.
_PARAM_ORDER = (
    # encoder self-attention block
    "e_attn_ln_g", "e_attn_ln_b", "e_wqkv", "e_bqkv", "e_wo", "e_bo",
    "e_ln1_g", "e_ln1_b",
    # encoder FFN block
    "e_w1", "e_b1", "e_w2", "e_b2", "e_ln2_g", "e_ln2_b",
    # decoder self-attention block (mha1)
    "d1_attn_ln_g", "d1_attn_ln_b", "d1_wqkv", "d1_bqkv", "d1_wo", "d1_bo",
    "d_ln1_g", "d_ln1_b",
    # decoder cross-attention block (mha2): q = k = LN(enc_out), v = LN(x)
    "d2_attn_ln_g", "d2_attn_ln_b", "d2_wqk", "d2_bqk", "d2_wv", "d2_bv",
    "d2_wo", "d2_bo", "d_ln2_g", "d_ln2_b",
    # decoder FFN block
    "d_w1", "d_b1", "d_w2", "d_b2", "d_ln3_g", "d_ln3_b",
    # final projection (output padded to a lane-dense width)
    "final_w", "final_b",
)


# ------------------------------ in-kernel helpers --------------------------- #

def _ln(x, g, b):
    """Row-wise LayerNorm over the last dim (f32 math). g/b are (1, D)."""
    mean = jnp.mean(x, axis=-1, keepdims=True)
    cent = x - mean
    var = jnp.mean(cent * cent, axis=-1, keepdims=True)
    return cent * lax.rsqrt(var + EPS) * g + b


def _mm(x, w):
    """Matmul with bf16 operands and f32 accumulation (w is already bf16)."""
    return jnp.dot(x.astype(jnp.bfloat16), w, preferred_element_type=jnp.float32)


_QK_DIMS = (((1,), (1,)), ((), ()))  # contract last axes: q @ k^T without a transpose


def _attention(q_src, k_src, v_src, wo, bo, num_heads, scale):
    """Per-head scaled-dot-product attention; head merge + output projection done with a
    SINGLE (S, d) @ (d, d) matmul (heads written into lane slices of one buffer)."""
    s_len, d = q_src.shape
    dep = d // num_heads
    heads = []
    for h in range(num_heads):
        lo = h * dep
        q_h = q_src[:, lo:lo + dep].astype(jnp.bfloat16)
        k_h = k_src[:, lo:lo + dep].astype(jnp.bfloat16)
        v_h = v_src[:, lo:lo + dep].astype(jnp.bfloat16)
        s = lax.dot_general(q_h, k_h, _QK_DIMS,
                            preferred_element_type=jnp.float32) * scale
        s = s - jnp.max(s, axis=-1, keepdims=True)
        e = jnp.exp(s)
        w = e / jnp.sum(e, axis=-1, keepdims=True)          # exact softmax
        heads.append(jnp.dot(w.astype(jnp.bfloat16), v_h,
                             preferred_element_type=jnp.float32))  # (S, dep)
    attn = jnp.concatenate(heads, axis=-1)                   # (S, d)
    return _mm(attn, wo) + bo                                # single out-projection matmul


def _self_attn_block(x, ln_g, ln_b, wqkv, bqkv, wo, bo, out_g, out_b, num_heads, scale):
    """MHA(x,x,x) with shared pre-LN + residual + post-LayerNorm (encoder/decoder self-attn)."""
    d = x.shape[-1]
    xn = _ln(x, ln_g, ln_b)                    # shared LN computed once (q == k == v)
    qkv = _mm(xn, wqkv) + bqkv                 # fused (d, 3d) projection
    a = _attention(qkv[:, 0:d], qkv[:, d:2 * d], qkv[:, 2 * d:3 * d],
                   wo, bo, num_heads, scale)
    return _ln(x + a, out_g, out_b)


def _ffn_block(x, w1, b1, w2, b2, g, b):
    """Linear -> ReLU -> Linear -> residual -> LayerNorm."""
    h = jnp.maximum(_mm(x, w1) + b1, 0.0)
    y = _mm(h, w2) + b2
    return _ln(x + y, g, b)


# ------------------------------ fused Pallas kernel -------------------------- #

def _transformer_kernel(enc_ref, dec_ref, *rest, num_heads, scale):
    """One grid step == one batch element; the whole encoder+decoder+final projection."""
    param_refs = rest[:-1]
    o_ref = rest[-1]
    p = {name: ref[...] for name, ref in zip(_PARAM_ORDER, param_refs)}

    enc_x = enc_ref[0]                         # (S, d) f32
    dec_x = dec_ref[0]                         # (S, d) f32
    d = enc_x.shape[-1]

    # --------------- encoder layer ---------------
    x = _self_attn_block(enc_x, p["e_attn_ln_g"], p["e_attn_ln_b"],
                         p["e_wqkv"], p["e_bqkv"], p["e_wo"], p["e_bo"],
                         p["e_ln1_g"], p["e_ln1_b"], num_heads, scale)
    enc_out = _ffn_block(x, p["e_w1"], p["e_b1"], p["e_w2"], p["e_b2"],
                         p["e_ln2_g"], p["e_ln2_b"])

    # --------------- decoder layer ---------------
    y = _self_attn_block(dec_x, p["d1_attn_ln_g"], p["d1_attn_ln_b"],
                         p["d1_wqkv"], p["d1_bqkv"], p["d1_wo"], p["d1_bo"],
                         p["d_ln1_g"], p["d_ln1_b"], num_heads, scale)

    # cross-attention: reference calls mha2(enc_output, enc_output, x) ->
    # q = k = LN_mha2(enc_out), v = LN_mha2(y); residual is the decoder state y.
    encn = _ln(enc_out, p["d2_attn_ln_g"], p["d2_attn_ln_b"])
    yn = _ln(y, p["d2_attn_ln_g"], p["d2_attn_ln_b"])
    qk = _mm(encn, p["d2_wqk"]) + p["d2_bqk"]  # (S, 2d) fused q/k projection
    v = _mm(yn, p["d2_wv"]) + p["d2_bv"]       # (S, d)
    a = _attention(qk[:, 0:d], qk[:, d:2 * d], v,
                   p["d2_wo"], p["d2_bo"], num_heads, scale)
    y = _ln(y + a, p["d_ln2_g"], p["d_ln2_b"])

    y = _ffn_block(y, p["d_w1"], p["d_b1"], p["d_w2"], p["d_b2"],
                   p["d_ln3_g"], p["d_ln3_b"])

    # --------------- final projection (lane-dense padded vocab) ---------------
    o_ref[0] = _mm(y, p["final_w"]) + p["final_b"]


# ------------------------------ wrapper -------------------------------------- #

def _rep_spec(shape):
    """Block covering the whole array, replicated (constant block index) across the grid."""
    nd = len(shape)
    return pl.BlockSpec(shape, lambda *_, _nd=nd: (0,) * _nd)


def transformer_forward(params, enc_tokens, dec_tokens, *, num_heads, target_vocab_size):
    emb = params["embedding"]
    enc_x = jnp.take(emb, enc_tokens, axis=0)   # (B, S, d) — gather kept in plain JAX (glue)
    dec_x = jnp.take(emb, dec_tokens, axis=0)

    B, S, d = enc_x.shape
    Vp = params["final_w"].shape[1]
    scale = 1.0 / math.sqrt(float(d // num_heads))

    kern = functools.partial(_transformer_kernel, num_heads=num_heads, scale=scale)
    flat = [params[k] for k in _PARAM_ORDER]
    xspec = pl.BlockSpec((1, S, d), lambda b: (b, 0, 0))

    out = pl.pallas_call(
        kern,
        grid=(B,),
        out_shape=jax.ShapeDtypeStruct((B, S, Vp), jnp.float32),
        in_specs=[xspec, xspec] + [_rep_spec(a.shape) for a in flat],
        out_specs=pl.BlockSpec((1, S, Vp), lambda b: (b, 0, 0)),
        compiler_params=pltpu.CompilerParams(dimension_semantics=("parallel",)),
    )(enc_x, dec_x, *flat)

    return out[:, :, :target_vocab_size]


# ------------------------------ parameter init ------------------------------- #

def init_params(key, d_model, dff, input_vocab_size, target_vocab_size, vocab_pad):
    """Weights created directly in fused, (in, out) layout; matmul weights stored bf16,
    biases / LayerNorm params kept f32 (accumulation stays f32 in-kernel)."""
    kit = iter(jax.random.split(key, 64))

    def uni(shape, fan_in):
        bound = 1.0 / math.sqrt(float(fan_in))
        return jax.random.uniform(next(kit), shape, jnp.float32, -bound, bound)

    def lin_w(din, dout):
        return uni((din, dout), din).astype(jnp.bfloat16)

    def lin_b(din, dout):
        return uni((1, dout), din)

    def ones(n):
        return jnp.ones((1, n), jnp.float32)

    def zeros(n):
        return jnp.zeros((1, n), jnp.float32)

    p = {}
    # encoder MHA + block LNs
    p["e_attn_ln_g"], p["e_attn_ln_b"] = ones(d_model), zeros(d_model)
    p["e_wqkv"], p["e_bqkv"] = lin_w(d_model, 3 * d_model), lin_b(d_model, 3 * d_model)
    p["e_wo"], p["e_bo"] = lin_w(d_model, d_model), lin_b(d_model, d_model)
    p["e_ln1_g"], p["e_ln1_b"] = ones(d_model), zeros(d_model)
    # encoder FFN
    p["e_w1"], p["e_b1"] = lin_w(d_model, dff), lin_b(d_model, dff)
    p["e_w2"], p["e_b2"] = lin_w(dff, d_model), lin_b(dff, d_model)
    p["e_ln2_g"], p["e_ln2_b"] = ones(d_model), zeros(d_model)
    # decoder MHA1 (self)
    p["d1_attn_ln_g"], p["d1_attn_ln_b"] = ones(d_model), zeros(d_model)
    p["d1_wqkv"], p["d1_bqkv"] = lin_w(d_model, 3 * d_model), lin_b(d_model, 3 * d_model)
    p["d1_wo"], p["d1_bo"] = lin_w(d_model, d_model), lin_b(d_model, d_model)
    p["d_ln1_g"], p["d_ln1_b"] = ones(d_model), zeros(d_model)
    # decoder MHA2 (cross)
    p["d2_attn_ln_g"], p["d2_attn_ln_b"] = ones(d_model), zeros(d_model)
    p["d2_wqk"], p["d2_bqk"] = lin_w(d_model, 2 * d_model), lin_b(d_model, 2 * d_model)
    p["d2_wv"], p["d2_bv"] = lin_w(d_model, d_model), lin_b(d_model, d_model)
    p["d2_wo"], p["d2_bo"] = lin_w(d_model, d_model), lin_b(d_model, d_model)
    p["d_ln2_g"], p["d_ln2_b"] = ones(d_model), zeros(d_model)
    # decoder FFN
    p["d_w1"], p["d_b1"] = lin_w(d_model, dff), lin_b(d_model, dff)
    p["d_w2"], p["d_b2"] = lin_w(dff, d_model), lin_b(dff, d_model)
    p["d_ln3_g"], p["d_ln3_b"] = ones(d_model), zeros(d_model)
    # final projection padded to lane-dense width; padded columns are exact zeros
    fw = jnp.zeros((d_model, vocab_pad), jnp.float32)
    fw = fw.at[:, :target_vocab_size].set(uni((d_model, target_vocab_size), d_model))
    p["final_w"] = fw.astype(jnp.bfloat16)
    fb = jnp.zeros((1, vocab_pad), jnp.float32)
    fb = fb.at[:, :target_vocab_size].set(uni((1, target_vocab_size), d_model))
    p["final_b"] = fb
    # embedding table (gathered outside the kernel)
    p["embedding"] = jax.random.normal(next(kit), (input_vocab_size, d_model), jnp.float32)
    return p


# ---------------------------------- main ------------------------------------- #

if __name__ == "__main__":
    B, S = 2, 8
    d_model, num_heads, dff = 32, 4, 64
    input_vocab_size, target_vocab_size = 50, 40
    vocab_pad = ((target_vocab_size + 127) // 128) * 128

    key = jax.random.PRNGKey(0)
    pkey, ekey, dkey = jax.random.split(key, 3)

    params = init_params(pkey, d_model, dff, input_vocab_size, target_vocab_size, vocab_pad)
    enc_tokens = jax.random.randint(ekey, (B, S), 0, input_vocab_size, dtype=jnp.int32)
    dec_tokens = jax.random.randint(dkey, (B, S), 0, input_vocab_size, dtype=jnp.int32)

    fwd = jax.jit(functools.partial(transformer_forward, num_heads=num_heads,
                                    target_vocab_size=target_vocab_size))
    out = fwd(params, enc_tokens, dec_tokens)
    jax.block_until_ready(out)

    assert out.shape == (B, S, target_vocab_size), out.shape
    assert out.dtype == jnp.float32
    assert bool(jnp.all(jnp.isfinite(out)))
    print("KERNEL_OK")
</pallas_src>

<mosaic_0001>
module attributes {stable_mosaic.version = 11 : i64} {
  func.func @_transformer_kernel(%arg0: i32, %arg1: memref<1x8x32xf32, #tpu.memory_space<vmem>>, %arg2: memref<1x8x32xf32, #tpu.memory_space<vmem>>, %arg3: memref<1x32xf32, #tpu.memory_space<vmem>>, %arg4: memref<1x32xf32, #tpu.memory_space<vmem>>, %arg5: memref<32x96xbf16, #tpu.memory_space<vmem>>, %arg6: memref<1x96xf32, #tpu.memory_space<vmem>>, %arg7: memref<32x32xbf16, #tpu.memory_space<vmem>>, %arg8: memref<1x32xf32, #tpu.memory_space<vmem>>, %arg9: memref<1x32xf32, #tpu.memory_space<vmem>>, %arg10: memref<1x32xf32, #tpu.memory_space<vmem>>, %arg11: memref<32x64xbf16, #tpu.memory_space<vmem>>, %arg12: memref<1x64xf32, #tpu.memory_space<vmem>>, %arg13: memref<64x32xbf16, #tpu.memory_space<vmem>>, %arg14: memref<1x32xf32, #tpu.memory_space<vmem>>, %arg15: memref<1x32xf32, #tpu.memory_space<vmem>>, %arg16: memref<1x32xf32, #tpu.memory_space<vmem>>, %arg17: memref<1x32xf32, #tpu.memory_space<vmem>>, %arg18: memref<1x32xf32, #tpu.memory_space<vmem>>, %arg19: memref<32x96xbf16, #tpu.memory_space<vmem>>, %arg20: memref<1x96xf32, #tpu.memory_space<vmem>>, %arg21: memref<32x32xbf16, #tpu.memory_space<vmem>>, %arg22: memref<1x32xf32, #tpu.memory_space<vmem>>, %arg23: memref<1x32xf32, #tpu.memory_space<vmem>>, %arg24: memref<1x32xf32, #tpu.memory_space<vmem>>, %arg25: memref<1x32xf32, #tpu.memory_space<vmem>>, %arg26: memref<1x32xf32, #tpu.memory_space<vmem>>, %arg27: memref<32x64xbf16, #tpu.memory_space<vmem>>, %arg28: memref<1x64xf32, #tpu.memory_space<vmem>>, %arg29: memref<32x32xbf16, #tpu.memory_space<vmem>>, %arg30: memref<1x32xf32, #tpu.memory_space<vmem>>, %arg31: memref<32x32xbf16, #tpu.memory_space<vmem>>, %arg32: memref<1x32xf32, #tpu.memory_space<vmem>>, %arg33: memref<1x32xf32, #tpu.memory_space<vmem>>, %arg34: memref<1x32xf32, #tpu.memory_space<vmem>>, %arg35: memref<32x64xbf16, #tpu.memory_space<vmem>>, %arg36: memref<1x64xf32, #tpu.memory_space<vmem>>, %arg37: memref<64x32xbf16, #tpu.memory_space<vmem>>, %arg38: memref<1x32xf32, #tpu.memory_space<vmem>>, %arg39: memref<1x32xf32, #tpu.memory_space<vmem>>, %arg40: memref<1x32xf32, #tpu.memory_space<vmem>>, %arg41: memref<32x128xbf16, #tpu.memory_space<vmem>>, %arg42: memref<1x128xf32, #tpu.memory_space<vmem>>, %arg43: memref<1x8x128xf32, #tpu.memory_space<vmem>>) attributes {dimension_semantics = [#tpu.dimension_semantics<parallel>], iteration_bounds = array<i64: 2>, scalar_prefetch = 0 : i64, scratch_operands = 0 : i64, tpu.core_type = #tpu.core_type<tc>, window_params = [{transform_indices = @transform_0, window_bounds = array<i64: 1, 8, 32>}, {transform_indices = @transform_1, window_bounds = array<i64: 1, 8, 32>}, {pipeline_mode = #tpu.pipeline_mode<synchronous>, transform_indices = @transform_2, window_bounds = array<i64: 1, 32>}, {pipeline_mode = #tpu.pipeline_mode<synchronous>, transform_indices = @transform_3, window_bounds = array<i64: 1, 32>}, {pipeline_mode = #tpu.pipeline_mode<synchronous>, transform_indices = @transform_4, window_bounds = array<i64: 32, 96>}, {pipeline_mode = #tpu.pipeline_mode<synchronous>, transform_indices = @transform_5, window_bounds = array<i64: 1, 96>}, {pipeline_mode = #tpu.pipeline_mode<synchronous>, transform_indices = @transform_6, window_bounds = array<i64: 32, 32>}, {pipeline_mode = #tpu.pipeline_mode<synchronous>, transform_indices = @transform_7, window_bounds = array<i64: 1, 32>}, {pipeline_mode = #tpu.pipeline_mode<synchronous>, transform_indices = @transform_8, window_bounds = array<i64: 1, 32>}, {pipeline_mode = #tpu.pipeline_mode<synchronous>, transform_indices = @transform_9, window_bounds = array<i64: 1, 32>}, {pipeline_mode = #tpu.pipeline_mode<synchronous>, transform_indices = @transform_10, window_bounds = array<i64: 32, 64>}, {pipeline_mode = #tpu.pipeline_mode<synchronous>, transform_indices = @transform_11, window_bounds = array<i64: 1, 64>}, {pipeline_mode = #tpu.pipeline_mode<synchronous>, transform_indices = @transform_12, window_bounds = array<i64: 64, 32>}, {pipeline_mode = #tpu.pipeline_mode<synchronous>, transform_indices = @transform_13, window_bounds = array<i64: 1, 32>}, {pipeline_mode = #tpu.pipeline_mode<synchronous>, transform_indices = @transform_14, window_bounds = array<i64: 1, 32>}, {pipeline_mode = #tpu.pipeline_mode<synchronous>, transform_indices = @transform_15, window_bounds = array<i64: 1, 32>}, {pipeline_mode = #tpu.pipeline_mode<synchronous>, transform_indices = @transform_16, window_bounds = array<i64: 1, 32>}, {pipeline_mode = #tpu.pipeline_mode<synchronous>, transform_indices = @transform_17, window_bounds = array<i64: 1, 32>}, {pipeline_mode = #tpu.pipeline_mode<synchronous>, transform_indices = @transform_18, window_bounds = array<i64: 32, 96>}, {pipeline_mode = #tpu.pipeline_mode<synchronous>, transform_indices = @transform_19, window_bounds = array<i64: 1, 96>}, {pipeline_mode = #tpu.pipeline_mode<synchronous>, transform_indices = @transform_20, window_bounds = array<i64: 32, 32>}, {pipeline_mode = #tpu.pipeline_mode<synchronous>, transform_indices = @transform_21, window_bounds = array<i64: 1, 32>}, {pipeline_mode = #tpu.pipeline_mode<synchronous>, transform_indices = @transform_22, window_bounds = array<i64: 1, 32>}, {pipeline_mode = #tpu.pipeline_mode<synchronous>, transform_indices = @transform_23, window_bounds = array<i64: 1, 32>}, {pipeline_mode = #tpu.pipeline_mode<synchronous>, transform_indices = @transform_24, window_bounds = array<i64: 1, 32>}, {pipeline_mode = #tpu.pipeline_mode<synchronous>, transform_indices = @transform_25, window_bounds = array<i64: 1, 32>}, {pipeline_mode = #tpu.pipeline_mode<synchronous>, transform_indices = @transform_26, window_bounds = array<i64: 32, 64>}, {pipeline_mode = #tpu.pipeline_mode<synchronous>, transform_indices = @transform_27, window_bounds = array<i64: 1, 64>}, {pipeline_mode = #tpu.pipeline_mode<synchronous>, transform_indices = @transform_28, window_bounds = array<i64: 32, 32>}, {pipeline_mode = #tpu.pipeline_mode<synchronous>, transform_indices = @transform_29, window_bounds = array<i64: 1, 32>}, {pipeline_mode = #tpu.pipeline_mode<synchronous>, transform_indices = @transform_30, window_bounds = array<i64: 32, 32>}, {pipeline_mode = #tpu.pipeline_mode<synchronous>, transform_indices = @transform_31, window_bounds = array<i64: 1, 32>}, {pipeline_mode = #tpu.pipeline_mode<synchronous>, transform_indices = @transform_32, window_bounds = array<i64: 1, 32>}, {pipeline_mode = #tpu.pipeline_mode<synchronous>, transform_indices = @transform_33, window_bounds = array<i64: 1, 32>}, {pipeline_mode = #tpu.pipeline_mode<synchronous>, transform_indices = @transform_34, window_bounds = array<i64: 32, 64>}, {pipeline_mode = #tpu.pipeline_mode<synchronous>, transform_indices = @transform_35, window_bounds = array<i64: 1, 64>}, {pipeline_mode = #tpu.pipeline_mode<synchronous>, transform_indices = @transform_36, window_bounds = array<i64: 64, 32>}, {pipeline_mode = #tpu.pipeline_mode<synchronous>, transform_indices = @transform_37, window_bounds = array<i64: 1, 32>}, {pipeline_mode = #tpu.pipeline_mode<synchronous>, transform_indices = @transform_38, window_bounds = array<i64: 1, 32>}, {pipeline_mode = #tpu.pipeline_mode<synchronous>, transform_indices = @transform_39, window_bounds = array<i64: 1, 32>}, {pipeline_mode = #tpu.pipeline_mode<synchronous>, transform_indices = @transform_40, window_bounds = array<i64: 32, 128>}, {pipeline_mode = #tpu.pipeline_mode<synchronous>, transform_indices = @transform_41, window_bounds = array<i64: 1, 128>}, {transform_indices = @transform_42, window_bounds = array<i64: 1, 8, 128>}]} {
    %c0 = arith.constant 0 : index
    %c0_0 = arith.constant 0 : index
    %0 = vector.load %arg3[%c0, %c0_0] : memref<1x32xf32, #tpu.memory_space<vmem>>, vector<1x32xf32>
    %c0_1 = arith.constant 0 : index
    %c0_2 = arith.constant 0 : index
    %1 = vector.load %arg4[%c0_1, %c0_2] : memref<1x32xf32, #tpu.memory_space<vmem>>, vector<1x32xf32>
    %c0_3 = arith.constant 0 : index
    %c0_4 = arith.constant 0 : index
    %2 = vector.load %arg5[%c0_3, %c0_4] : memref<32x96xbf16, #tpu.memory_space<vmem>>, vector<32x96xbf16>
    %c0_5 = arith.constant 0 : index
    %c0_6 = arith.constant 0 : index
    %3 = vector.load %arg6[%c0_5, %c0_6] : memref<1x96xf32, #tpu.memory_space<vmem>>, vector<1x96xf32>
    %c0_7 = arith.constant 0 : index
    %c0_8 = arith.constant 0 : index
    %4 = vector.load %arg7[%c0_7, %c0_8] : memref<32x32xbf16, #tpu.memory_space<vmem>>, vector<32x32xbf16>
    %c0_9 = arith.constant 0 : index
    %c0_10 = arith.constant 0 : index
    %5 = vector.load %arg8[%c0_9, %c0_10] : memref<1x32xf32, #tpu.memory_space<vmem>>, vector<1x32xf32>
    %c0_11 = arith.constant 0 : index
    %c0_12 = arith.constant 0 : index
    %6 = vector.load %arg9[%c0_11, %c0_12] : memref<1x32xf32, #tpu.memory_space<vmem>>, vector<1x32xf32>
    %c0_13 = arith.constant 0 : index
    %c0_14 = arith.constant 0 : index
    %7 = vector.load %arg10[%c0_13, %c0_14] : memref<1x32xf32, #tpu.memory_space<vmem>>, vector<1x32xf32>
    %c0_15 = arith.constant 0 : index
    %c0_16 = arith.constant 0 : index
    %8 = vector.load %arg11[%c0_15, %c0_16] : memref<32x64xbf16, #tpu.memory_space<vmem>>, vector<32x64xbf16>
    %c0_17 = arith.constant 0 : index
    %c0_18 = arith.constant 0 : index
    %9 = vector.load %arg12[%c0_17, %c0_18] : memref<1x64xf32, #tpu.memory_space<vmem>>, vector<1x64xf32>
    %c0_19 = arith.constant 0 : index
    %c0_20 = arith.constant 0 : index
    %10 = vector.load %arg13[%c0_19, %c0_20] : memref<64x32xbf16, #tpu.memory_space<vmem>>, vector<64x32xbf16>
    %c0_21 = arith.constant 0 : index
    %c0_22 = arith.constant 0 : index
    %11 = vector.load %arg14[%c0_21, %c0_22] : memref<1x32xf32, #tpu.memory_space<vmem>>, vector<1x32xf32>
    %c0_23 = arith.constant 0 : index
    %c0_24 = arith.constant 0 : index
    %12 = vector.load %arg15[%c0_23, %c0_24] : memref<1x32xf32, #tpu.memory_space<vmem>>, vector<1x32xf32>
    %c0_25 = arith.constant 0 : index
    %c0_26 = arith.constant 0 : index
    %13 = vector.load %arg16[%c0_25, %c0_26] : memref<1x32xf32, #tpu.memory_space<vmem>>, vector<1x32xf32>
    %c0_27 = arith.constant 0 : index
    %c0_28 = arith.constant 0 : index
    %14 = vector.load %arg17[%c0_27, %c0_28] : memref<1x32xf32, #tpu.memory_space<vmem>>, vector<1x32xf32>
    %c0_29 = arith.constant 0 : index
    %c0_30 = arith.constant 0 : index
    %15 = vector.load %arg18[%c0_29, %c0_30] : memref<1x32xf32, #tpu.memory_space<vmem>>, vector<1x32xf32>
    %c0_31 = arith.constant 0 : index
    %c0_32 = arith.constant 0 : index
    %16 = vector.load %arg19[%c0_31, %c0_32] : memref<32x96xbf16, #tpu.memory_space<vmem>>, vector<32x96xbf16>
    %c0_33 = arith.constant 0 : index
    %c0_34 = arith.constant 0 : index
    %17 = vector.load %arg20[%c0_33, %c0_34] : memref<1x96xf32, #tpu.memory_space<vmem>>, vector<1x96xf32>
    %c0_35 = arith.constant 0 : index
    %c0_36 = arith.constant 0 : index
    %18 = vector.load %arg21[%c0_35, %c0_36] : memref<32x32xbf16, #tpu.memory_space<vmem>>, vector<32x32xbf16>
    %c0_37 = arith.constant 0 : index
    %c0_38 = arith.constant 0 : index
    %19 = vector.load %arg22[%c0_37, %c0_38] : memref<1x32xf32, #tpu.memory_space<vmem>>, vector<1x32xf32>
    %c0_39 = arith.constant 0 : index
    %c0_40 = arith.constant 0 : index
    %20 = vector.load %arg23[%c0_39, %c0_40] : memref<1x32xf32, #tpu.memory_space<vmem>>, vector<1x32xf32>
    %c0_41 = arith.constant 0 : index
    %c0_42 = arith.constant 0 : index
    %21 = vector.load %arg24[%c0_41, %c0_42] : memref<1x32xf32, #tpu.memory_space<vmem>>, vector<1x32xf32>
    %c0_43 = arith.constant 0 : index
    %c0_44 = arith.constant 0 : index
    %22 = vector.load %arg25[%c0_43, %c0_44] : memref<1x32xf32, #tpu.memory_space<vmem>>, vector<1x32xf32>
    %c0_45 = arith.constant 0 : index
    %c0_46 = arith.constant 0 : index
    %23 = vector.load %arg26[%c0_45, %c0_46] : memref<1x32xf32, #tpu.memory_space<vmem>>, vector<1x32xf32>
    %c0_47 = arith.constant 0 : index
    %c0_48 = arith.constant 0 : index
    %24 = vector.load %arg27[%c0_47, %c0_48] : memref<32x64xbf16, #tpu.memory_space<vmem>>, vector<32x64xbf16>
    %c0_49 = arith.constant 0 : index
    %c0_50 = arith.constant 0 : index
    %25 = vector.load %arg28[%c0_49, %c0_50] : memref<1x64xf32, #tpu.memory_space<vmem>>, vector<1x64xf32>
    %c0_51 = arith.constant 0 : index
    %c0_52 = arith.constant 0 : index
    %26 = vector.load %arg29[%c0_51, %c0_52] : memref<32x32xbf16, #tpu.memory_space<vmem>>, vector<32x32xbf16>
    %c0_53 = arith.constant 0 : index
    %c0_54 = arith.constant 0 : index
    %27 = vector.load %arg30[%c0_53, %c0_54] : memref<1x32xf32, #tpu.memory_space<vmem>>, vector<1x32xf32>
    %c0_55 = arith.constant 0 : index
    %c0_56 = arith.constant 0 : index
    %28 = vector.load %arg31[%c0_55, %c0_56] : memref<32x32xbf16, #tpu.memory_space<vmem>>, vector<32x32xbf16>
    %c0_57 = arith.constant 0 : index
    %c0_58 = arith.constant 0 : index
    %29 = vector.load %arg32[%c0_57, %c0_58] : memref<1x32xf32, #tpu.memory_space<vmem>>, vector<1x32xf32>
    %c0_59 = arith.constant 0 : index
    %c0_60 = arith.constant 0 : index
    %30 = vector.load %arg33[%c0_59, %c0_60] : memref<1x32xf32, #tpu.memory_space<vmem>>, vector<1x32xf32>
    %c0_61 = arith.constant 0 : index
    %c0_62 = arith.constant 0 : index
    %31 = vector.load %arg34[%c0_61, %c0_62] : memref<1x32xf32, #tpu.memory_space<vmem>>, vector<1x32xf32>
    %c0_63 = arith.constant 0 : index
    %c0_64 = arith.constant 0 : index
    %32 = vector.load %arg35[%c0_63, %c0_64] : memref<32x64xbf16, #tpu.memory_space<vmem>>, vector<32x64xbf16>
    %c0_65 = arith.constant 0 : index
    %c0_66 = arith.constant 0 : index
    %33 = vector.load %arg36[%c0_65, %c0_66] : memref<1x64xf32, #tpu.memory_space<vmem>>, vector<1x64xf32>
    %c0_67 = arith.constant 0 : index
    %c0_68 = arith.constant 0 : index
    %34 = vector.load %arg37[%c0_67, %c0_68] : memref<64x32xbf16, #tpu.memory_space<vmem>>, vector<64x32xbf16>
    %c0_69 = arith.constant 0 : index
    %c0_70 = arith.constant 0 : index
    %35 = vector.load %arg38[%c0_69, %c0_70] : memref<1x32xf32, #tpu.memory_space<vmem>>, vector<1x32xf32>
    %c0_71 = arith.constant 0 : index
    %c0_72 = arith.constant 0 : index
    %36 = vector.load %arg39[%c0_71, %c0_72] : memref<1x32xf32, #tpu.memory_space<vmem>>, vector<1x32xf32>
    %c0_73 = arith.constant 0 : index
    %c0_74 = arith.constant 0 : index
    %37 = vector.load %arg40[%c0_73, %c0_74] : memref<1x32xf32, #tpu.memory_space<vmem>>, vector<1x32xf32>
    %c0_75 = arith.constant 0 : index
    %c0_76 = arith.constant 0 : index
    %38 = vector.load %arg41[%c0_75, %c0_76] : memref<32x128xbf16, #tpu.memory_space<vmem>>, vector<32x128xbf16>
    %c0_77 = arith.constant 0 : index
    %c0_78 = arith.constant 0 : index
    %39 = vector.load %arg42[%c0_77, %c0_78] : memref<1x128xf32, #tpu.memory_space<vmem>>, vector<1x128xf32>
    %c0_79 = arith.constant 0 : index
    %c0_80 = arith.constant 0 : index
    %c0_81 = arith.constant 0 : index
    %40 = vector.load %arg1[%c0_79, %c0_80, %c0_81] : memref<1x8x32xf32, #tpu.memory_space<vmem>>, vector<1x8x32xf32>
    %41 = vector.shape_cast %40 : vector<1x8x32xf32> to vector<8x32xf32>
    %c0_82 = arith.constant 0 : index
    %c0_83 = arith.constant 0 : index
    %c0_84 = arith.constant 0 : index
    %42 = vector.load %arg2[%c0_82, %c0_83, %c0_84] : memref<1x8x32xf32, #tpu.memory_space<vmem>>, vector<1x8x32xf32>
    %43 = vector.shape_cast %42 : vector<1x8x32xf32> to vector<8x32xf32>
    %cst = arith.constant dense<0.000000e+00> : vector<8xf32>
    %44 = vector.multi_reduction <add>, %41, %cst [1] : vector<8x32xf32> to vector<8xf32>
    %45 = vector.shape_cast %44 : vector<8xf32> to vector<8x1xf32>
    %cst_85 = arith.constant 3.200000e+01 : f32
    %46 = vector.broadcast %cst_85 : f32 to vector<8x1xf32>
    %47 = arith.divf %45, %46 : vector<8x1xf32>
    %48 = vector.broadcast %47 : vector<8x1xf32> to vector<8x32xf32>
    %49 = arith.subf %41, %48 : vector<8x32xf32>
    %50 = arith.mulf %49, %49 : vector<8x32xf32>
    %cst_86 = arith.constant dense<0.000000e+00> : vector<8xf32>
    %51 = vector.multi_reduction <add>, %50, %cst_86 [1] : vector<8x32xf32> to vector<8xf32>
    %52 = vector.shape_cast %51 : vector<8xf32> to vector<8x1xf32>
    %cst_87 = arith.constant 3.200000e+01 : f32
    %53 = vector.broadcast %cst_87 : f32 to vector<8x1xf32>
    %54 = arith.divf %52, %53 : vector<8x1xf32>
    %cst_88 = arith.constant 9.99999974E-6 : f32
    %55 = vector.broadcast %cst_88 : f32 to vector<8x1xf32>
    %56 = arith.addf %54, %55 : vector<8x1xf32>
    %57 = math.rsqrt %56 : vector<8x1xf32>
    %58 = vector.broadcast %57 : vector<8x1xf32> to vector<8x32xf32>
    %59 = arith.mulf %49, %58 : vector<8x32xf32>
    %60 = vector.broadcast %0 : vector<1x32xf32> to vector<8x32xf32>
    %61 = arith.mulf %59, %60 : vector<8x32xf32>
    %62 = vector.broadcast %1 : vector<1x32xf32> to vector<8x32xf32>
    %63 = arith.addf %61, %62 : vector<8x32xf32>
    %64 = arith.truncf %63 : vector<8x32xf32> to vector<8x32xbf16>
    %cst_89 = arith.constant dense<0.000000e+00> : vector<8x96xf32>
    %65 = tpu.matmul %64, %2, %cst_89 {dimension_numbers = #tpu.dot_dimension_numbers<[1], [0], [0], [1], [0, 0, 1, 1], [], []>} : vector<8x32xbf16>, vector<32x96xbf16>, vector<8x96xf32> -> vector<8x96xf32>
    %66 = vector.broadcast %3 : vector<1x96xf32> to vector<8x96xf32>
    %67 = arith.addf %65, %66 : vector<8x96xf32>
    %68 = vector.extract_strided_slice %67 {offsets = [0, 0], sizes = [8, 32], strides = [1, 1]} : vector<8x96xf32> to vector<8x32xf32>
    %69 = vector.extract_strided_slice %67 {offsets = [0, 32], sizes = [8, 32], strides = [1, 1]} : vector<8x96xf32> to vector<8x32xf32>
    %70 = vector.extract_strided_slice %67 {offsets = [0, 64], sizes = [8, 32], strides = [1, 1]} : vector<8x96xf32> to vector<8x32xf32>
    %71 = vector.extract_strided_slice %68 {offsets = [0, 0], sizes = [8, 8], strides = [1, 1]} : vector<8x32xf32> to vector<8x8xf32>
    %72 = arith.truncf %71 : vector<8x8xf32> to vector<8x8xbf16>
    %73 = vector.extract_strided_slice %69 {offsets = [0, 0], sizes = [8, 8], strides = [1, 1]} : vector<8x32xf32> to vector<8x8xf32>
    %74 = arith.truncf %73 : vector<8x8xf32> to vector<8x8xbf16>
    %75 = vector.extract_strided_slice %70 {offsets = [0, 0], sizes = [8, 8], strides = [1, 1]} : vector<8x32xf32> to vector<8x8xf32>
    %76 = arith.truncf %75 : vector<8x8xf32> to vector<8x8xbf16>
    %cst_90 = arith.constant dense<0.000000e+00> : vector<8x8xf32>
    %77 = tpu.matmul %72, %74, %cst_90 {dimension_numbers = #tpu.dot_dimension_numbers<[1], [1], [0], [0], [0, 0, 1, 0], [], []>} : vector<8x8xbf16>, vector<8x8xbf16>, vector<8x8xf32> -> vector<8x8xf32>
    %cst_91 = arith.constant 0.353553385 : f32
    %78 = vector.broadcast %cst_91 : f32 to vector<8x8xf32>
    %79 = arith.mulf %77, %78 : vector<8x8xf32>
    %cst_92 = arith.constant dense<0xFF800000> : vector<8xf32>
    %80 = vector.multi_reduction <maximumf>, %79, %cst_92 [1] : vector<8x8xf32> to vector<8xf32>
    %81 = vector.shape_cast %80 : vector<8xf32> to vector<8x1xf32>
    %82 = vector.broadcast %81 : vector<8x1xf32> to vector<8x8xf32>
    %83 = arith.subf %79, %82 : vector<8x8xf32>
    %84 = math.exp %83 : vector<8x8xf32>
    %cst_93 = arith.constant dense<0.000000e+00> : vector<8xf32>
    %85 = vector.multi_reduction <add>, %84, %cst_93 [1] : vector<8x8xf32> to vector<8xf32>
    %86 = vector.shape_cast %85 : vector<8xf32> to vector<8x1xf32>
    %87 = vector.broadcast %86 : vector<8x1xf32> to vector<8x8xf32>
    %88 = arith.divf %84, %87 : vector<8x8xf32>
    %89 = arith.truncf %88 : vector<8x8xf32> to vector<8x8xbf16>
    %cst_94 = arith.constant dense<0.000000e+00> : vector<8x8xf32>
    %90 = tpu.matmul %89, %76, %cst_94 {dimension_numbers = #tpu.dot_dimension_numbers<[1], [0], [0], [1], [0, 0, 1, 1], [], []>} : vector<8x8xbf16>, vector<8x8xbf16>, vector<8x8xf32> -> vector<8x8xf32>
    %91 = vector.extract_strided_slice %68 {offsets = [0, 8], sizes = [8, 8], strides = [1, 1]} : vector<8x32xf32> to vector<8x8xf32>
    %92 = arith.truncf %91 : vector<8x8xf32> to vector<8x8xbf16>
    %93 = vector.extract_strided_slice %69 {offsets = [0, 8], sizes = [8, 8], strides = [1, 1]} : vector<8x32xf32> to vector<8x8xf32>
    %94 = arith.truncf %93 : vector<8x8xf32> to vector<8x8xbf16>
    %95 = vector.extract_strided_slice %70 {offsets = [0, 8], sizes = [8, 8], strides = [1, 1]} : vector<8x32xf32> to vector<8x8xf32>
    %96 = arith.truncf %95 : vector<8x8xf32> to vector<8x8xbf16>
    %cst_95 = arith.constant dense<0.000000e+00> : vector<8x8xf32>
    %97 = tpu.matmul %92, %94, %cst_95 {dimension_numbers = #tpu.dot_dimension_numbers<[1], [1], [0], [0], [0, 0, 1, 0], [], []>} : vector<8x8xbf16>, vector<8x8xbf16>, vector<8x8xf32> -> vector<8x8xf32>
    %cst_96 = arith.constant 0.353553385 : f32
    %98 = vector.broadcast %cst_96 : f32 to vector<8x8xf32>
    %99 = arith.mulf %97, %98 : vector<8x8xf32>
    %cst_97 = arith.constant dense<0xFF800000> : vector<8xf32>
    %100 = vector.multi_reduction <maximumf>, %99, %cst_97 [1] : vector<8x8xf32> to vector<8xf32>
    %101 = vector.shape_cast %100 : vector<8xf32> to vector<8x1xf32>
    %102 = vector.broadcast %101 : vector<8x1xf32> to vector<8x8xf32>
    %103 = arith.subf %99, %102 : vector<8x8xf32>
    %104 = math.exp %103 : vector<8x8xf32>
    %cst_98 = arith.constant dense<0.000000e+00> : vector<8xf32>
    %105 = vector.multi_reduction <add>, %104, %cst_98 [1] : vector<8x8xf32> to vector<8xf32>
    %106 = vector.shape_cast %105 : vector<8xf32> to vector<8x1xf32>
    %107 = vector.broadcast %106 : vector<8x1xf32> to vector<8x8xf32>
    %108 = arith.divf %104, %107 : vector<8x8xf32>
    %109 = arith.truncf %108 : vector<8x8xf32> to vector<8x8xbf16>
    %cst_99 = arith.constant dense<0.000000e+00> : vector<8x8xf32>
    %110 = tpu.matmul %109, %96, %cst_99 {dimension_numbers = #tpu.dot_dimension_numbers<[1], [0], [0], [1], [0, 0, 1, 1], [], []>} : vector<8x8xbf16>, vector<8x8xbf16>, vector<8x8xf32> -> vector<8x8xf32>
    %111 = vector.extract_strided_slice %68 {offsets = [0, 16], sizes = [8, 8], strides = [1, 1]} : vector<8x32xf32> to vector<8x8xf32>
    %112 = arith.truncf %111 : vector<8x8xf32> to vector<8x8xbf16>
    %113 = vector.extract_strided_slice %69 {offsets = [0, 16], sizes = [8, 8], strides = [1, 1]} : vector<8x32xf32> to vector<8x8xf32>
    %114 = arith.truncf %113 : vector<8x8xf32> to vector<8x8xbf16>
    %115 = vector.extract_strided_slice %70 {offsets = [0, 16], sizes = [8, 8], strides = [1, 1]} : vector<8x32xf32> to vector<8x8xf32>
    %116 = arith.truncf %115 : vector<8x8xf32> to vector<8x8xbf16>
    %cst_100 = arith.constant dense<0.000000e+00> : vector<8x8xf32>
    %117 = tpu.matmul %112, %114, %cst_100 {dimension_numbers = #tpu.dot_dimension_numbers<[1], [1], [0], [0], [0, 0, 1, 0], [], []>} : vector<8x8xbf16>, vector<8x8xbf16>, vector<8x8xf32> -> vector<8x8xf32>
    %cst_101 = arith.constant 0.353553385 : f32
    %118 = vector.broadcast %cst_101 : f32 to vector<8x8xf32>
    %119 = arith.mulf %117, %118 : vector<8x8xf32>
    %cst_102 = arith.constant dense<0xFF800000> : vector<8xf32>
    %120 = vector.multi_reduction <maximumf>, %119, %cst_102 [1] : vector<8x8xf32> to vector<8xf32>
    %121 = vector.shape_cast %120 : vector<8xf32> to vector<8x1xf32>
    %122 = vector.broadcast %121 : vector<8x1xf32> to vector<8x8xf32>
    %123 = arith.subf %119, %122 : vector<8x8xf32>
    %124 = math.exp %123 : vector<8x8xf32>
    %cst_103 = arith.constant dense<0.000000e+00> : vector<8xf32>
    %125 = vector.multi_reduction <add>, %124, %cst_103 [1] : vector<8x8xf32> to vector<8xf32>
    %126 = vector.shape_cast %125 : vector<8xf32> to vector<8x1xf32>
    %127 = vector.broadcast %126 : vector<8x1xf32> to vector<8x8xf32>
    %128 = arith.divf %124, %127 : vector<8x8xf32>
    %129 = arith.truncf %128 : vector<8x8xf32> to vector<8x8xbf16>
    %cst_104 = arith.constant dense<0.000000e+00> : vector<8x8xf32>
    %130 = tpu.matmul %129, %116, %cst_104 {dimension_numbers = #tpu.dot_dimension_numbers<[1], [0], [0], [1], [0, 0, 1, 1], [], []>} : vector<8x8xbf16>, vector<8x8xbf16>, vector<8x8xf32> -> vector<8x8xf32>
    %131 = vector.extract_strided_slice %68 {offsets = [0, 24], sizes = [8, 8], strides = [1, 1]} : vector<8x32xf32> to vector<8x8xf32>
    %132 = arith.truncf %131 : vector<8x8xf32> to vector<8x8xbf16>
    %133 = vector.extract_strided_slice %69 {offsets = [0, 24], sizes = [8, 8], strides = [1, 1]} : vector<8x32xf32> to vector<8x8xf32>
    %134 = arith.truncf %133 : vector<8x8xf32> to vector<8x8xbf16>
    %135 = vector.extract_strided_slice %70 {offsets = [0, 24], sizes = [8, 8], strides = [1, 1]} : vector<8x32xf32> to vector<8x8xf32>
    %136 = arith.truncf %135 : vector<8x8xf32> to vector<8x8xbf16>
    %cst_105 = arith.constant dense<0.000000e+00> : vector<8x8xf32>
    %137 = tpu.matmul %132, %134, %cst_105 {dimension_numbers = #tpu.dot_dimension_numbers<[1], [1], [0], [0], [0, 0, 1, 0], [], []>} : vector<8x8xbf16>, vector<8x8xbf16>, vector<8x8xf32> -> vector<8x8xf32>
    %cst_106 = arith.constant 0.353553385 : f32
    %138 = vector.broadcast %cst_106 : f32 to vector<8x8xf32>
    %139 = arith.mulf %137, %138 : vector<8x8xf32>
    %cst_107 = arith.constant dense<0xFF800000> : vector<8xf32>
    %140 = vector.multi_reduction <maximumf>, %139, %cst_107 [1] : vector<8x8xf32> to vector<8xf32>
    %141 = vector.shape_cast %140 : vector<8xf32> to vector<8x1xf32>
    %142 = vector.broadcast %141 : vector<8x1xf32> to vector<8x8xf32>
    %143 = arith.subf %139, %142 : vector<8x8xf32>
    %144 = math.exp %143 : vector<8x8xf32>
    %cst_108 = arith.constant dense<0.000000e+00> : vector<8xf32>
    %145 = vector.multi_reduction <add>, %144, %cst_108 [1] : vector<8x8xf32> to vector<8xf32>
    %146 = vector.shape_cast %145 : vector<8xf32> to vector<8x1xf32>
    %147 = vector.broadcast %146 : vector<8x1xf32> to vector<8x8xf32>
    %148 = arith.divf %144, %147 : vector<8x8xf32>
    %149 = arith.truncf %148 : vector<8x8xf32> to vector<8x8xbf16>
    %cst_109 = arith.constant dense<0.000000e+00> : vector<8x8xf32>
    %150 = tpu.matmul %149, %136, %cst_109 {dimension_numbers = #tpu.dot_dimension_numbers<[1], [0], [0], [1], [0, 0, 1, 1], [], []>} : vector<8x8xbf16>, vector<8x8xbf16>, vector<8x8xf32> -> vector<8x8xf32>
    %151 = tpu.concatenate %90, %110, %130, %150 in 1 : vector<8x8xf32>, vector<8x8xf32>, vector<8x8xf32>, vector<8x8xf32> -> vector<8x32xf32>
    %152 = arith.truncf %151 : vector<8x32xf32> to vector<8x32xbf16>
    %cst_110 = arith.constant dense<0.000000e+00> : vector<8x32xf32>
    %153 = tpu.matmul %152, %4, %cst_110 {dimension_numbers = #tpu.dot_dimension_numbers<[1], [0], [0], [1], [0, 0, 1, 1], [], []>} : vector<8x32xbf16>, vector<32x32xbf16>, vector<8x32xf32> -> vector<8x32xf32>
    %154 = vector.broadcast %5 : vector<1x32xf32> to vector<8x32xf32>
    %155 = arith.addf %153, %154 : vector<8x32xf32>
    %156 = arith.addf %41, %155 : vector<8x32xf32>
    %cst_111 = arith.constant dense<0.000000e+00> : vector<8xf32>
    %157 = vector.multi_reduction <add>, %156, %cst_111 [1] : vector<8x32xf32> to vector<8xf32>
    %158 = vector.shape_cast %157 : vector<8xf32> to vector<8x1xf32>
    %cst_112 = arith.constant 3.200000e+01 : f32
    %159 = vector.broadcast %cst_112 : f32 to vector<8x1xf32>
    %160 = arith.divf %158, %159 : vector<8x1xf32>
    %161 = vector.broadcast %160 : vector<8x1xf32> to vector<8x32xf32>
    %162 = arith.subf %156, %161 : vector<8x32xf32>
    %163 = arith.mulf %162, %162 : vector<8x32xf32>
    %cst_113 = arith.constant dense<0.000000e+00> : vector<8xf32>
    %164 = vector.multi_reduction <add>, %163, %cst_113 [1] : vector<8x32xf32> to vector<8xf32>
    %165 = vector.shape_cast %164 : vector<8xf32> to vector<8x1xf32>
    %cst_114 = arith.constant 3.200000e+01 : f32
    %166 = vector.broadcast %cst_114 : f32 to vector<8x1xf32>
    %167 = arith.divf %165, %166 : vector<8x1xf32>
    %cst_115 = arith.constant 9.99999974E-6 : f32
    %168 = vector.broadcast %cst_115 : f32 to vector<8x1xf32>
    %169 = arith.addf %167, %168 : vector<8x1xf32>
    %170 = math.rsqrt %169 : vector<8x1xf32>
    %171 = vector.broadcast %170 : vector<8x1xf32> to vector<8x32xf32>
    %172 = arith.mulf %162, %171 : vector<8x32xf32>
    %173 = vector.broadcast %6 : vector<1x32xf32> to vector<8x32xf32>
    %174 = arith.mulf %172, %173 : vector<8x32xf32>
    %175 = vector.broadcast %7 : vector<1x32xf32> to vector<8x32xf32>
    %176 = arith.addf %174, %175 : vector<8x32xf32>
    %177 = arith.truncf %176 : vector<8x32xf32> to vector<8x32xbf16>
    %cst_116 = arith.constant dense<0.000000e+00> : vector<8x64xf32>
    %178 = tpu.matmul %177, %8, %cst_116 {dimension_numbers = #tpu.dot_dimension_numbers<[1], [0], [0], [1], [0, 0, 1, 1], [], []>} : vector<8x32xbf16>, vector<32x64xbf16>, vector<8x64xf32> -> vector<8x64xf32>
    %179 = vector.broadcast %9 : vector<1x64xf32> to vector<8x64xf32>
    %180 = arith.addf %178, %179 : vector<8x64xf32>
    %cst_117 = arith.constant 0.000000e+00 : f32
    %181 = vector.broadcast %cst_117 : f32 to vector<8x64xf32>
    %182 = arith.maximumf %180, %181 : vector<8x64xf32>
    %183 = arith.truncf %182 : vector<8x64xf32> to vector<8x64xbf16>
    %cst_118 = arith.constant dense<0.000000e+00> : vector<8x32xf32>
    %184 = tpu.matmul %183, %10, %cst_118 {dimension_numbers = #tpu.dot_dimension_numbers<[1], [0], [0], [1], [0, 0, 1, 1], [], []>} : vector<8x64xbf16>, vector<64x32xbf16>, vector<8x32xf32> -> vector<8x32xf32>
    %185 = vector.broadcast %11 : vector<1x32xf32> to vector<8x32xf32>
    %186 = arith.addf %184, %185 : vector<8x32xf32>
    %187 = arith.addf %176, %186 : vector<8x32xf32>
    %cst_119 = arith.constant dense<0.000000e+00> : vector<8xf32>
    %188 = vector.multi_reduction <add>, %187, %cst_119 [1] : vector<8x32xf32> to vector<8xf32>
    %189 = vector.shape_cast %188 : vector<8xf32> to vector<8x1xf32>
    %cst_120 = arith.constant 3.200000e+01 : f32
    %190 = vector.broadcast %cst_120 : f32 to vector<8x1xf32>
    %191 = arith.divf %189, %190 : vector<8x1xf32>
    %192 = vector.broadcast %191 : vector<8x1xf32> to vector<8x32xf32>
    %193 = arith.subf %187, %192 : vector<8x32xf32>
    %194 = arith.mulf %193, %193 : vector<8x32xf32>
    %cst_121 = arith.constant dense<0.000000e+00> : vector<8xf32>
    %195 = vector.multi_reduction <add>, %194, %cst_121 [1] : vector<8x32xf32> to vector<8xf32>
    %196 = vector.shape_cast %195 : vector<8xf32> to vector<8x1xf32>
    %cst_122 = arith.constant 3.200000e+01 : f32
    %197 = vector.broadcast %cst_122 : f32 to vector<8x1xf32>
    %198 = arith.divf %196, %197 : vector<8x1xf32>
    %cst_123 = arith.constant 9.99999974E-6 : f32
    %199 = vector.broadcast %cst_123 : f32 to vector<8x1xf32>
    %200 = arith.addf %198, %199 : vector<8x1xf32>
    %201 = math.rsqrt %200 : vector<8x1xf32>
    %202 = vector.broadcast %201 : vector<8x1xf32> to vector<8x32xf32>
    %203 = arith.mulf %193, %202 : vector<8x32xf32>
    %204 = vector.broadcast %12 : vector<1x32xf32> to vector<8x32xf32>
    %205 = arith.mulf %203, %204 : vector<8x32xf32>
    %206 = vector.broadcast %13 : vector<1x32xf32> to vector<8x32xf32>
    %207 = arith.addf %205, %206 : vector<8x32xf32>
    %cst_124 = arith.constant dense<0.000000e+00> : vector<8xf32>
    %208 = vector.multi_reduction <add>, %43, %cst_124 [1] : vector<8x32xf32> to vector<8xf32>
    %209 = vector.shape_cast %208 : vector<8xf32> to vector<8x1xf32>
    %cst_125 = arith.constant 3.200000e+01 : f32
    %210 = vector.broadcast %cst_125 : f32 to vector<8x1xf32>
    %211 = arith.divf %209, %210 : vector<8x1xf32>
    %212 = vector.broadcast %211 : vector<8x1xf32> to vector<8x32xf32>
    %213 = arith.subf %43, %212 : vector<8x32xf32>
    %214 = arith.mulf %213, %213 : vector<8x32xf32>
    %cst_126 = arith.constant dense<0.000000e+00> : vector<8xf32>
    %215 = vector.multi_reduction <add>, %214, %cst_126 [1] : vector<8x32xf32> to vector<8xf32>
    %216 = vector.shape_cast %215 : vector<8xf32> to vector<8x1xf32>
    %cst_127 = arith.constant 3.200000e+01 : f32
    %217 = vector.broadcast %cst_127 : f32 to vector<8x1xf32>
    %218 = arith.divf %216, %217 : vector<8x1xf32>
    %cst_128 = arith.constant 9.99999974E-6 : f32
    %219 = vector.broadcast %cst_128 : f32 to vector<8x1xf32>
    %220 = arith.addf %218, %219 : vector<8x1xf32>
    %221 = math.rsqrt %220 : vector<8x1xf32>
    %222 = vector.broadcast %221 : vector<8x1xf32> to vector<8x32xf32>
    %223 = arith.mulf %213, %222 : vector<8x32xf32>
    %224 = vector.broadcast %14 : vector<1x32xf32> to vector<8x32xf32>
    %225 = arith.mulf %223, %224 : vector<8x32xf32>
    %226 = vector.broadcast %15 : vector<1x32xf32> to vector<8x32xf32>
    %227 = arith.addf %225, %226 : vector<8x32xf32>
    %228 = arith.truncf %227 : vector<8x32xf32> to vector<8x32xbf16>
    %cst_129 = arith.constant dense<0.000000e+00> : vector<8x96xf32>
    %229 = tpu.matmul %228, %16, %cst_129 {dimension_numbers = #tpu.dot_dimension_numbers<[1], [0], [0], [1], [0, 0, 1, 1], [], []>} : vector<8x32xbf16>, vector<32x96xbf16>, vector<8x96xf32> -> vector<8x96xf32>
    %230 = vector.broadcast %17 : vector<1x96xf32> to vector<8x96xf32>
    %231 = arith.addf %229, %230 : vector<8x96xf32>
    %232 = vector.extract_strided_slice %231 {offsets = [0, 0], sizes = [8, 32], strides = [1, 1]} : vector<8x96xf32> to vector<8x32xf32>
    %233 = vector.extract_strided_slice %231 {offsets = [0, 32], sizes = [8, 32], strides = [1, 1]} : vector<8x96xf32> to vector<8x32xf32>
    %234 = vector.extract_strided_slice %231 {offsets = [0, 64], sizes = [8, 32], strides = [1, 1]} : vector<8x96xf32> to vector<8x32xf32>
    %235 = vector.extract_strided_slice %232 {offsets = [0, 0], sizes = [8, 8], strides = [1, 1]} : vector<8x32xf32> to vector<8x8xf32>
    %236 = arith.truncf %235 : vector<8x8xf32> to vector<8x8xbf16>
    %237 = vector.extract_strided_slice %233 {offsets = [0, 0], sizes = [8, 8], strides = [1, 1]} : vector<8x32xf32> to vector<8x8xf32>
    %238 = arith.truncf %237 : vector<8x8xf32> to vector<8x8xbf16>
    %239 = vector.extract_strided_slice %234 {offsets = [0, 0], sizes = [8, 8], strides = [1, 1]} : vector<8x32xf32> to vector<8x8xf32>
    %240 = arith.truncf %239 : vector<8x8xf32> to vector<8x8xbf16>
    %cst_130 = arith.constant dense<0.000000e+00> : vector<8x8xf32>
    %241 = tpu.matmul %236, %238, %cst_130 {dimension_numbers = #tpu.dot_dimension_numbers<[1], [1], [0], [0], [0, 0, 1, 0], [], []>} : vector<8x8xbf16>, vector<8x8xbf16>, vector<8x8xf32> -> vector<8x8xf32>
    %cst_131 = arith.constant 0.353553385 : f32
    %242 = vector.broadcast %cst_131 : f32 to vector<8x8xf32>
    %243 = arith.mulf %241, %242 : vector<8x8xf32>
    %cst_132 = arith.constant dense<0xFF800000> : vector<8xf32>
    %244 = vector.multi_reduction <maximumf>, %243, %cst_132 [1] : vector<8x8xf32> to vector<8xf32>
    %245 = vector.shape_cast %244 : vector<8xf32> to vector<8x1xf32>
    %246 = vector.broadcast %245 : vector<8x1xf32> to vector<8x8xf32>
    %247 = arith.subf %243, %246 : vector<8x8xf32>
    %248 = math.exp %247 : vector<8x8xf32>
    %cst_133 = arith.constant dense<0.000000e+00> : vector<8xf32>
    %249 = vector.multi_reduction <add>, %248, %cst_133 [1] : vector<8x8xf32> to vector<8xf32>
    %250 = vector.shape_cast %249 : vector<8xf32> to vector<8x1xf32>
    %251 = vector.broadcast %250 : vector<8x1xf32> to vector<8x8xf32>
    %252 = arith.divf %248, %251 : vector<8x8xf32>
    %253 = arith.truncf %252 : vector<8x8xf32> to vector<8x8xbf16>
    %cst_134 = arith.constant dense<0.000000e+00> : vector<8x8xf32>
    %254 = tpu.matmul %253, %240, %cst_134 {dimension_numbers = #tpu.dot_dimension_numbers<[1], [0], [0], [1], [0, 0, 1, 1], [], []>} : vector<8x8xbf16>, vector<8x8xbf16>, vector<8x8xf32> -> vector<8x8xf32>
    %255 = vector.extract_strided_slice %232 {offsets = [0, 8], sizes = [8, 8], strides = [1, 1]} : vector<8x32xf32> to vector<8x8xf32>
    %256 = arith.truncf %255 : vector<8x8xf32> to vector<8x8xbf16>
    %257 = vector.extract_strided_slice %233 {offsets = [0, 8], sizes = [8, 8], strides = [1, 1]} : vector<8x32xf32> to vector<8x8xf32>
    %258 = arith.truncf %257 : vector<8x8xf32> to vector<8x8xbf16>
    %259 = vector.extract_strided_slice %234 {offsets = [0, 8], sizes = [8, 8], strides = [1, 1]} : vector<8x32xf32> to vector<8x8xf32>
    %260 = arith.truncf %259 : vector<8x8xf32> to vector<8x8xbf16>
    %cst_135 = arith.constant dense<0.000000e+00> : vector<8x8xf32>
    %261 = tpu.matmul %256, %258, %cst_135 {dimension_numbers = #tpu.dot_dimension_numbers<[1], [1], [0], [0], [0, 0, 1, 0], [], []>} : vector<8x8xbf16>, vector<8x8xbf16>, vector<8x8xf32> -> vector<8x8xf32>
    %cst_136 = arith.constant 0.353553385 : f32
    %262 = vector.broadcast %cst_136 : f32 to vector<8x8xf32>
    %263 = arith.mulf %261, %262 : vector<8x8xf32>
    %cst_137 = arith.constant dense<0xFF800000> : vector<8xf32>
    %264 = vector.multi_reduction <maximumf>, %263, %cst_137 [1] : vector<8x8xf32> to vector<8xf32>
    %265 = vector.shape_cast %264 : vector<8xf32> to vector<8x1xf32>
    %266 = vector.broadcast %265 : vector<8x1xf32> to vector<8x8xf32>
    %267 = arith.subf %263, %266 : vector<8x8xf32>
    %268 = math.exp %267 : vector<8x8xf32>
    %cst_138 = arith.constant dense<0.000000e+00> : vector<8xf32>
    %269 = vector.multi_reduction <add>, %268, %cst_138 [1] : vector<8x8xf32> to vector<8xf32>
    %270 = vector.shape_cast %269 : vector<8xf32> to vector<8x1xf32>
    %271 = vector.broadcast %270 : vector<8x1xf32> to vector<8x8xf32>
    %272 = arith.divf %268, %271 : vector<8x8xf32>
    %273 = arith.truncf %272 : vector<8x8xf32> to vector<8x8xbf16>
    %cst_139 = arith.constant dense<0.000000e+00> : vector<8x8xf32>
    %274 = tpu.matmul %273, %260, %cst_139 {dimension_numbers = #tpu.dot_dimension_numbers<[1], [0], [0], [1], [0, 0, 1, 1], [], []>} : vector<8x8xbf16>, vector<8x8xbf16>, vector<8x8xf32> -> vector<8x8xf32>
    %275 = vector.extract_strided_slice %232 {offsets = [0, 16], sizes = [8, 8], strides = [1, 1]} : vector<8x32xf32> to vector<8x8xf32>
    %276 = arith.truncf %275 : vector<8x8xf32> to vector<8x8xbf16>
    %277 = vector.extract_strided_slice %233 {offsets = [0, 16], sizes = [8, 8], strides = [1, 1]} : vector<8x32xf32> to vector<8x8xf32>
    %278 = arith.truncf %277 : vector<8x8xf32> to vector<8x8xbf16>
    %279 = vector.extract_strided_slice %234 {offsets = [0, 16], sizes = [8, 8], strides = [1, 1]} : vector<8x32xf32> to vector<8x8xf32>
    %280 = arith.truncf %279 : vector<8x8xf32> to vector<8x8xbf16>
    %cst_140 = arith.constant dense<0.000000e+00> : vector<8x8xf32>
    %281 = tpu.matmul %276, %278, %cst_140 {dimension_numbers = #tpu.dot_dimension_numbers<[1], [1], [0], [0], [0, 0, 1, 0], [], []>} : vector<8x8xbf16>, vector<8x8xbf16>, vector<8x8xf32> -> vector<8x8xf32>
    %cst_141 = arith.constant 0.353553385 : f32
    %282 = vector.broadcast %cst_141 : f32 to vector<8x8xf32>
    %283 = arith.mulf %281, %282 : vector<8x8xf32>
    %cst_142 = arith.constant dense<0xFF800000> : vector<8xf32>
    %284 = vector.multi_reduction <maximumf>, %283, %cst_142 [1] : vector<8x8xf32> to vector<8xf32>
    %285 = vector.shape_cast %284 : vector<8xf32> to vector<8x1xf32>
    %286 = vector.broadcast %285 : vector<8x1xf32> to vector<8x8xf32>
    %287 = arith.subf %283, %286 : vector<8x8xf32>
    %288 = math.exp %287 : vector<8x8xf32>
    %cst_143 = arith.constant dense<0.000000e+00> : vector<8xf32>
    %289 = vector.multi_reduction <add>, %288, %cst_143 [1] : vector<8x8xf32> to vector<8xf32>
    %290 = vector.shape_cast %289 : vector<8xf32> to vector<8x1xf32>
    %291 = vector.broadcast %290 : vector<8x1xf32> to vector<8x8xf32>
    %292 = arith.divf %288, %291 : vector<8x8xf32>
    %293 = arith.truncf %292 : vector<8x8xf32> to vector<8x8xbf16>
    %cst_144 = arith.constant dense<0.000000e+00> : vector<8x8xf32>
    %294 = tpu.matmul %293, %280, %cst_144 {dimension_numbers = #tpu.dot_dimension_numbers<[1], [0], [0], [1], [0, 0, 1, 1], [], []>} : vector<8x8xbf16>, vector<8x8xbf16>, vector<8x8xf32> -> vector<8x8xf32>
    %295 = vector.extract_strided_slice %232 {offsets = [0, 24], sizes = [8, 8], strides = [1, 1]} : vector<8x32xf32> to vector<8x8xf32>
    %296 = arith.truncf %295 : vector<8x8xf32> to vector<8x8xbf16>
    %297 = vector.extract_strided_slice %233 {offsets = [0, 24], sizes = [8, 8], strides = [1, 1]} : vector<8x32xf32> to vector<8x8xf32>
    %298 = arith.truncf %297 : vector<8x8xf32> to vector<8x8xbf16>
    %299 = vector.extract_strided_slice %234 {offsets = [0, 24], sizes = [8, 8], strides = [1, 1]} : vector<8x32xf32> to vector<8x8xf32>
    %300 = arith.truncf %299 : vector<8x8xf32> to vector<8x8xbf16>
    %cst_145 = arith.constant dense<0.000000e+00> : vector<8x8xf32>
    %301 = tpu.matmul %296, %298, %cst_145 {dimension_numbers = #tpu.dot_dimension_numbers<[1], [1], [0], [0], [0, 0, 1, 0], [], []>} : vector<8x8xbf16>, vector<8x8xbf16>, vector<8x8xf32> -> vector<8x8xf32>
    %cst_146 = arith.constant 0.353553385 : f32
    %302 = vector.broadcast %cst_146 : f32 to vector<8x8xf32>
    %303 = arith.mulf %301, %302 : vector<8x8xf32>
    %cst_147 = arith.constant dense<0xFF800000> : vector<8xf32>
    %304 = vector.multi_reduction <maximumf>, %303, %cst_147 [1] : vector<8x8xf32> to vector<8xf32>
    %305 = vector.shape_cast %304 : vector<8xf32> to vector<8x1xf32>
    %306 = vector.broadcast %305 : vector<8x1xf32> to vector<8x8xf32>
    %307 = arith.subf %303, %306 : vector<8x8xf32>
    %308 = math.exp %307 : vector<8x8xf32>
    %cst_148 = arith.constant dense<0.000000e+00> : vector<8xf32>
    %309 = vector.multi_reduction <add>, %308, %cst_148 [1] : vector<8x8xf32> to vector<8xf32>
    %310 = vector.shape_cast %309 : vector<8xf32> to vector<8x1xf32>
    %311 = vector.broadcast %310 : vector<8x1xf32> to vector<8x8xf32>
    %312 = arith.divf %308, %311 : vector<8x8xf32>
    %313 = arith.truncf %312 : vector<8x8xf32> to vector<8x8xbf16>
    %cst_149 = arith.constant dense<0.000000e+00> : vector<8x8xf32>
    %314 = tpu.matmul %313, %300, %cst_149 {dimension_numbers = #tpu.dot_dimension_numbers<[1], [0], [0], [1], [0, 0, 1, 1], [], []>} : vector<8x8xbf16>, vector<8x8xbf16>, vector<8x8xf32> -> vector<8x8xf32>
    %315 = tpu.concatenate %254, %274, %294, %314 in 1 : vector<8x8xf32>, vector<8x8xf32>, vector<8x8xf32>, vector<8x8xf32> -> vector<8x32xf32>
    %316 = arith.truncf %315 : vector<8x32xf32> to vector<8x32xbf16>
    %cst_150 = arith.constant dense<0.000000e+00> : vector<8x32xf32>
    %317 = tpu.matmul %316, %18, %cst_150 {dimension_numbers = #tpu.dot_dimension_numbers<[1], [0], [0], [1], [0, 0, 1, 1], [], []>} : vector<8x32xbf16>, vector<32x32xbf16>, vector<8x32xf32> -> vector<8x32xf32>
    %318 = vector.broadcast %19 : vector<1x32xf32> to vector<8x32xf32>
    %319 = arith.addf %317, %318 : vector<8x32xf32>
    %320 = arith.addf %43, %319 : vector<8x32xf32>
    %cst_151 = arith.constant dense<0.000000e+00> : vector<8xf32>
    %321 = vector.multi_reduction <add>, %320, %cst_151 [1] : vector<8x32xf32> to vector<8xf32>
    %322 = vector.shape_cast %321 : vector<8xf32> to vector<8x1xf32>
    %cst_152 = arith.constant 3.200000e+01 : f32
    %323 = vector.broadcast %cst_152 : f32 to vector<8x1xf32>
    %324 = arith.divf %322, %323 : vector<8x1xf32>
    %325 = vector.broadcast %324 : vector<8x1xf32> to vector<8x32xf32>
    %326 = arith.subf %320, %325 : vector<8x32xf32>
    %327 = arith.mulf %326, %326 : vector<8x32xf32>
    %cst_153 = arith.constant dense<0.000000e+00> : vector<8xf32>
    %328 = vector.multi_reduction <add>, %327, %cst_153 [1] : vector<8x32xf32> to vector<8xf32>
    %329 = vector.shape_cast %328 : vector<8xf32> to vector<8x1xf32>
    %cst_154 = arith.constant 3.200000e+01 : f32
    %330 = vector.broadcast %cst_154 : f32 to vector<8x1xf32>
    %331 = arith.divf %329, %330 : vector<8x1xf32>
    %cst_155 = arith.constant 9.99999974E-6 : f32
    %332 = vector.broadcast %cst_155 : f32 to vector<8x1xf32>
    %333 = arith.addf %331, %332 : vector<8x1xf32>
    %334 = math.rsqrt %333 : vector<8x1xf32>
    %335 = vector.broadcast %334 : vector<8x1xf32> to vector<8x32xf32>
    %336 = arith.mulf %326, %335 : vector<8x32xf32>
    %337 = vector.broadcast %20 : vector<1x32xf32> to vector<8x32xf32>
    %338 = arith.mulf %336, %337 : vector<8x32xf32>
    %339 = vector.broadcast %21 : vector<1x32xf32> to vector<8x32xf32>
    %340 = arith.addf %338, %339 : vector<8x32xf32>
    %cst_156 = arith.constant dense<0.000000e+00> : vector<8xf32>
    %341 = vector.multi_reduction <add>, %207, %cst_156 [1] : vector<8x32xf32> to vector<8xf32>
    %342 = vector.shape_cast %341 : vector<8xf32> to vector<8x1xf32>
    %cst_157 = arith.constant 3.200000e+01 : f32
    %343 = vector.broadcast %cst_157 : f32 to vector<8x1xf32>
    %344 = arith.divf %342, %343 : vector<8x1xf32>
    %345 = vector.broadcast %344 : vector<8x1xf32> to vector<8x32xf32>
    %346 = arith.subf %207, %345 : vector<8x32xf32>
    %347 = arith.mulf %346, %346 : vector<8x32xf32>
    %cst_158 = arith.constant dense<0.000000e+00> : vector<8xf32>
    %348 = vector.multi_reduction <add>, %347, %cst_158 [1] : vector<8x32xf32> to vector<8xf32>
    %349 = vector.shape_cast %348 : vector<8xf32> to vector<8x1xf32>
    %cst_159 = arith.constant 3.200000e+01 : f32
    %350 = vector.broadcast %cst_159 : f32 to vector<8x1xf32>
    %351 = arith.divf %349, %350 : vector<8x1xf32>
    %cst_160 = arith.constant 9.99999974E-6 : f32
    %352 = vector.broadcast %cst_160 : f32 to vector<8x1xf32>
    %353 = arith.addf %351, %352 : vector<8x1xf32>
    %354 = math.rsqrt %353 : vector<8x1xf32>
    %355 = vector.broadcast %354 : vector<8x1xf32> to vector<8x32xf32>
    %356 = arith.mulf %346, %355 : vector<8x32xf32>
    %357 = vector.broadcast %22 : vector<1x32xf32> to vector<8x32xf32>
    %358 = arith.mulf %356, %357 : vector<8x32xf32>
    %359 = vector.broadcast %23 : vector<1x32xf32> to vector<8x32xf32>
    %360 = arith.addf %358, %359 : vector<8x32xf32>
    %cst_161 = arith.constant dense<0.000000e+00> : vector<8xf32>
    %361 = vector.multi_reduction <add>, %340, %cst_161 [1] : vector<8x32xf32> to vector<8xf32>
    %362 = vector.shape_cast %361 : vector<8xf32> to vector<8x1xf32>
    %cst_162 = arith.constant 3.200000e+01 : f32
    %363 = vector.broadcast %cst_162 : f32 to vector<8x1xf32>
    %364 = arith.divf %362, %363 : vector<8x1xf32>
    %365 = vector.broadcast %364 : vector<8x1xf32> to vector<8x32xf32>
    %366 = arith.subf %340, %365 : vector<8x32xf32>
    %367 = arith.mulf %366, %366 : vector<8x32xf32>
    %cst_163 = arith.constant dense<0.000000e+00> : vector<8xf32>
    %368 = vector.multi_reduction <add>, %367, %cst_163 [1] : vector<8x32xf32> to vector<8xf32>
    %369 = vector.shape_cast %368 : vector<8xf32> to vector<8x1xf32>
    %cst_164 = arith.constant 3.200000e+01 : f32
    %370 = vector.broadcast %cst_164 : f32 to vector<8x1xf32>
    %371 = arith.divf %369, %370 : vector<8x1xf32>
    %cst_165 = arith.constant 9.99999974E-6 : f32
    %372 = vector.broadcast %cst_165 : f32 to vector<8x1xf32>
    %373 = arith.addf %371, %372 : vector<8x1xf32>
    %374 = math.rsqrt %373 : vector<8x1xf32>
    %375 = vector.broadcast %374 : vector<8x1xf32> to vector<8x32xf32>
    %376 = arith.mulf %366, %375 : vector<8x32xf32>
    %377 = vector.broadcast %22 : vector<1x32xf32> to vector<8x32xf32>
    %378 = arith.mulf %376, %377 : vector<8x32xf32>
    %379 = vector.broadcast %23 : vector<1x32xf32> to vector<8x32xf32>
    %380 = arith.addf %378, %379 : vector<8x32xf32>
    %381 = arith.truncf %360 : vector<8x32xf32> to vector<8x32xbf16>
    %cst_166 = arith.constant dense<0.000000e+00> : vector<8x64xf32>
    %382 = tpu.matmul %381, %24, %cst_166 {dimension_numbers = #tpu.dot_dimension_numbers<[1], [0], [0], [1], [0, 0, 1, 1], [], []>} : vector<8x32xbf16>, vector<32x64xbf16>, vector<8x64xf32> -> vector<8x64xf32>
    %383 = vector.broadcast %25 : vector<1x64xf32> to vector<8x64xf32>
    %384 = arith.addf %382, %383 : vector<8x64xf32>
    %385 = arith.truncf %380 : vector<8x32xf32> to vector<8x32xbf16>
    %cst_167 = arith.constant dense<0.000000e+00> : vector<8x32xf32>
    %386 = tpu.matmul %385, %26, %cst_167 {dimension_numbers = #tpu.dot_dimension_numbers<[1], [0], [0], [1], [0, 0, 1, 1], [], []>} : vector<8x32xbf16>, vector<32x32xbf16>, vector<8x32xf32> -> vector<8x32xf32>
    %387 = vector.broadcast %27 : vector<1x32xf32> to vector<8x32xf32>
    %388 = arith.addf %386, %387 : vector<8x32xf32>
    %389 = vector.extract_strided_slice %384 {offsets = [0, 0], sizes = [8, 32], strides = [1, 1]} : vector<8x64xf32> to vector<8x32xf32>
    %390 = vector.extract_strided_slice %384 {offsets = [0, 32], sizes = [8, 32], strides = [1, 1]} : vector<8x64xf32> to vector<8x32xf32>
    %391 = vector.extract_strided_slice %389 {offsets = [0, 0], sizes = [8, 8], strides = [1, 1]} : vector<8x32xf32> to vector<8x8xf32>
    %392 = arith.truncf %391 : vector<8x8xf32> to vector<8x8xbf16>
    %393 = vector.extract_strided_slice %390 {offsets = [0, 0], sizes = [8, 8], strides = [1, 1]} : vector<8x32xf32> to vector<8x8xf32>
    %394 = arith.truncf %393 : vector<8x8xf32> to vector<8x8xbf16>
    %395 = vector.extract_strided_slice %388 {offsets = [0, 0], sizes = [8, 8], strides = [1, 1]} : vector<8x32xf32> to vector<8x8xf32>
    %396 = arith.truncf %395 : vector<8x8xf32> to vector<8x8xbf16>
    %cst_168 = arith.constant dense<0.000000e+00> : vector<8x8xf32>
    %397 = tpu.matmul %392, %394, %cst_168 {dimension_numbers = #tpu.dot_dimension_numbers<[1], [1], [0], [0], [0, 0, 1, 0], [], []>} : vector<8x8xbf16>, vector<8x8xbf16>, vector<8x8xf32> -> vector<8x8xf32>
    %cst_169 = arith.constant 0.353553385 : f32
    %398 = vector.broadcast %cst_169 : f32 to vector<8x8xf32>
    %399 = arith.mulf %397, %398 : vector<8x8xf32>
    %cst_170 = arith.constant dense<0xFF800000> : vector<8xf32>
    %400 = vector.multi_reduction <maximumf>, %399, %cst_170 [1] : vector<8x8xf32> to vector<8xf32>
    %401 = vector.shape_cast %400 : vector<8xf32> to vector<8x1xf32>
    %402 = vector.broadcast %401 : vector<8x1xf32> to vector<8x8xf32>
    %403 = arith.subf %399, %402 : vector<8x8xf32>
    %404 = math.exp %403 : vector<8x8xf32>
    %cst_171 = arith.constant dense<0.000000e+00> : vector<8xf32>
    %405 = vector.multi_reduction <add>, %404, %cst_171 [1] : vector<8x8xf32> to vector<8xf32>
    %406 = vector.shape_cast %405 : vector<8xf32> to vector<8x1xf32>
    %407 = vector.broadcast %406 : vector<8x1xf32> to vector<8x8xf32>
    %408 = arith.divf %404, %407 : vector<8x8xf32>
    %409 = arith.truncf %408 : vector<8x8xf32> to vector<8x8xbf16>
    %cst_172 = arith.constant dense<0.000000e+00> : vector<8x8xf32>
    %410 = tpu.matmul %409, %396, %cst_172 {dimension_numbers = #tpu.dot_dimension_numbers<[1], [0], [0], [1], [0, 0, 1, 1], [], []>} : vector<8x8xbf16>, vector<8x8xbf16>, vector<8x8xf32> -> vector<8x8xf32>
    %411 = vector.extract_strided_slice %389 {offsets = [0, 8], sizes = [8, 8], strides = [1, 1]} : vector<8x32xf32> to vector<8x8xf32>
    %412 = arith.truncf %411 : vector<8x8xf32> to vector<8x8xbf16>
    %413 = vector.extract_strided_slice %390 {offsets = [0, 8], sizes = [8, 8], strides = [1, 1]} : vector<8x32xf32> to vector<8x8xf32>
    %414 = arith.truncf %413 : vector<8x8xf32> to vector<8x8xbf16>
    %415 = vector.extract_strided_slice %388 {offsets = [0, 8], sizes = [8, 8], strides = [1, 1]} : vector<8x32xf32> to vector<8x8xf32>
    %416 = arith.truncf %415 : vector<8x8xf32> to vector<8x8xbf16>
    %cst_173 = arith.constant dense<0.000000e+00> : vector<8x8xf32>
    %417 = tpu.matmul %412, %414, %cst_173 {dimension_numbers = #tpu.dot_dimension_numbers<[1], [1], [0], [0], [0, 0, 1, 0], [], []>} : vector<8x8xbf16>, vector<8x8xbf16>, vector<8x8xf32> -> vector<8x8xf32>
    %cst_174 = arith.constant 0.353553385 : f32
    %418 = vector.broadcast %cst_174 : f32 to vector<8x8xf32>
    %419 = arith.mulf %417, %418 : vector<8x8xf32>
    %cst_175 = arith.constant dense<0xFF800000> : vector<8xf32>
    %420 = vector.multi_reduction <maximumf>, %419, %cst_175 [1] : vector<8x8xf32> to vector<8xf32>
    %421 = vector.shape_cast %420 : vector<8xf32> to vector<8x1xf32>
    %422 = vector.broadcast %421 : vector<8x1xf32> to vector<8x8xf32>
    %423 = arith.subf %419, %422 : vector<8x8xf32>
    %424 = math.exp %423 : vector<8x8xf32>
    %cst_176 = arith.constant dense<0.000000e+00> : vector<8xf32>
    %425 = vector.multi_reduction <add>, %424, %cst_176 [1] : vector<8x8xf32> to vector<8xf32>
    %426 = vector.shape_cast %425 : vector<8xf32> to vector<8x1xf32>
    %427 = vector.broadcast %426 : vector<8x1xf32> to vector<8x8xf32>
    %428 = arith.divf %424, %427 : vector<8x8xf32>
    %429 = arith.truncf %428 : vector<8x8xf32> to vector<8x8xbf16>
    %cst_177 = arith.constant dense<0.000000e+00> : vector<8x8xf32>
    %430 = tpu.matmul %429, %416, %cst_177 {dimension_numbers = #tpu.dot_dimension_numbers<[1], [0], [0], [1], [0, 0, 1, 1], [], []>} : vector<8x8xbf16>, vector<8x8xbf16>, vector<8x8xf32> -> vector<8x8xf32>
    %431 = vector.extract_strided_slice %389 {offsets = [0, 16], sizes = [8, 8], strides = [1, 1]} : vector<8x32xf32> to vector<8x8xf32>
    %432 = arith.truncf %431 : vector<8x8xf32> to vector<8x8xbf16>
    %433 = vector.extract_strided_slice %390 {offsets = [0, 16], sizes = [8, 8], strides = [1, 1]} : vector<8x32xf32> to vector<8x8xf32>
    %434 = arith.truncf %433 : vector<8x8xf32> to vector<8x8xbf16>
    %435 = vector.extract_strided_slice %388 {offsets = [0, 16], sizes = [8, 8], strides = [1, 1]} : vector<8x32xf32> to vector<8x8xf32>
    %436 = arith.truncf %435 : vector<8x8xf32> to vector<8x8xbf16>
    %cst_178 = arith.constant dense<0.000000e+00> : vector<8x8xf32>
    %437 = tpu.matmul %432, %434, %cst_178 {dimension_numbers = #tpu.dot_dimension_numbers<[1], [1], [0], [0], [0, 0, 1, 0], [], []>} : vector<8x8xbf16>, vector<8x8xbf16>, vector<8x8xf32> -> vector<8x8xf32>
    %cst_179 = arith.constant 0.353553385 : f32
    %438 = vector.broadcast %cst_179 : f32 to vector<8x8xf32>
    %439 = arith.mulf %437, %438 : vector<8x8xf32>
    %cst_180 = arith.constant dense<0xFF800000> : vector<8xf32>
    %440 = vector.multi_reduction <maximumf>, %439, %cst_180 [1] : vector<8x8xf32> to vector<8xf32>
    %441 = vector.shape_cast %440 : vector<8xf32> to vector<8x1xf32>
    %442 = vector.broadcast %441 : vector<8x1xf32> to vector<8x8xf32>
    %443 = arith.subf %439, %442 : vector<8x8xf32>
    %444 = math.exp %443 : vector<8x8xf32>
    %cst_181 = arith.constant dense<0.000000e+00> : vector<8xf32>
    %445 = vector.multi_reduction <add>, %444, %cst_181 [1] : vector<8x8xf32> to vector<8xf32>
    %446 = vector.shape_cast %445 : vector<8xf32> to vector<8x1xf32>
    %447 = vector.broadcast %446 : vector<8x1xf32> to vector<8x8xf32>
    %448 = arith.divf %444, %447 : vector<8x8xf32>
    %449 = arith.truncf %448 : vector<8x8xf32> to vector<8x8xbf16>
    %cst_182 = arith.constant dense<0.000000e+00> : vector<8x8xf32>
    %450 = tpu.matmul %449, %436, %cst_182 {dimension_numbers = #tpu.dot_dimension_numbers<[1], [0], [0], [1], [0, 0, 1, 1], [], []>} : vector<8x8xbf16>, vector<8x8xbf16>, vector<8x8xf32> -> vector<8x8xf32>
    %451 = vector.extract_strided_slice %389 {offsets = [0, 24], sizes = [8, 8], strides = [1, 1]} : vector<8x32xf32> to vector<8x8xf32>
    %452 = arith.truncf %451 : vector<8x8xf32> to vector<8x8xbf16>
    %453 = vector.extract_strided_slice %390 {offsets = [0, 24], sizes = [8, 8], strides = [1, 1]} : vector<8x32xf32> to vector<8x8xf32>
    %454 = arith.truncf %453 : vector<8x8xf32> to vector<8x8xbf16>
    %455 = vector.extract_strided_slice %388 {offsets = [0, 24], sizes = [8, 8], strides = [1, 1]} : vector<8x32xf32> to vector<8x8xf32>
    %456 = arith.truncf %455 : vector<8x8xf32> to vector<8x8xbf16>
    %cst_183 = arith.constant dense<0.000000e+00> : vector<8x8xf32>
    %457 = tpu.matmul %452, %454, %cst_183 {dimension_numbers = #tpu.dot_dimension_numbers<[1], [1], [0], [0], [0, 0, 1, 0], [], []>} : vector<8x8xbf16>, vector<8x8xbf16>, vector<8x8xf32> -> vector<8x8xf32>
    %cst_184 = arith.constant 0.353553385 : f32
    %458 = vector.broadcast %cst_184 : f32 to vector<8x8xf32>
    %459 = arith.mulf %457, %458 : vector<8x8xf32>
    %cst_185 = arith.constant dense<0xFF800000> : vector<8xf32>
    %460 = vector.multi_reduction <maximumf>, %459, %cst_185 [1] : vector<8x8xf32> to vector<8xf32>
    %461 = vector.shape_cast %460 : vector<8xf32> to vector<8x1xf32>
    %462 = vector.broadcast %461 : vector<8x1xf32> to vector<8x8xf32>
    %463 = arith.subf %459, %462 : vector<8x8xf32>
    %464 = math.exp %463 : vector<8x8xf32>
    %cst_186 = arith.constant dense<0.000000e+00> : vector<8xf32>
    %465 = vector.multi_reduction <add>, %464, %cst_186 [1] : vector<8x8xf32> to vector<8xf32>
    %466 = vector.shape_cast %465 : vector<8xf32> to vector<8x1xf32>
    %467 = vector.broadcast %466 : vector<8x1xf32> to vector<8x8xf32>
    %468 = arith.divf %464, %467 : vector<8x8xf32>
    %469 = arith.truncf %468 : vector<8x8xf32> to vector<8x8xbf16>
    %cst_187 = arith.constant dense<0.000000e+00> : vector<8x8xf32>
    %470 = tpu.matmul %469, %456, %cst_187 {dimension_numbers = #tpu.dot_dimension_numbers<[1], [0], [0], [1], [0, 0, 1, 1], [], []>} : vector<8x8xbf16>, vector<8x8xbf16>, vector<8x8xf32> -> vector<8x8xf32>
    %471 = tpu.concatenate %410, %430, %450, %470 in 1 : vector<8x8xf32>, vector<8x8xf32>, vector<8x8xf32>, vector<8x8xf32> -> vector<8x32xf32>
    %472 = arith.truncf %471 : vector<8x32xf32> to vector<8x32xbf16>
    %cst_188 = arith.constant dense<0.000000e+00> : vector<8x32xf32>
    %473 = tpu.matmul %472, %28, %cst_188 {dimension_numbers = #tpu.dot_dimension_numbers<[1], [0], [0], [1], [0, 0, 1, 1], [], []>} : vector<8x32xbf16>, vector<32x32xbf16>, vector<8x32xf32> -> vector<8x32xf32>
    %474 = vector.broadcast %29 : vector<1x32xf32> to vector<8x32xf32>
    %475 = arith.addf %473, %474 : vector<8x32xf32>
    %476 = arith.addf %340, %475 : vector<8x32xf32>
    %cst_189 = arith.constant dense<0.000000e+00> : vector<8xf32>
    %477 = vector.multi_reduction <add>, %476, %cst_189 [1] : vector<8x32xf32> to vector<8xf32>
    %478 = vector.shape_cast %477 : vector<8xf32> to vector<8x1xf32>
    %cst_190 = arith.constant 3.200000e+01 : f32
    %479 = vector.broadcast %cst_190 : f32 to vector<8x1xf32>
    %480 = arith.divf %478, %479 : vector<8x1xf32>
    %481 = vector.broadcast %480 : vector<8x1xf32> to vector<8x32xf32>
    %482 = arith.subf %476, %481 : vector<8x32xf32>
    %483 = arith.mulf %482, %482 : vector<8x32xf32>
    %cst_191 = arith.constant dense<0.000000e+00> : vector<8xf32>
    %484 = vector.multi_reduction <add>, %483, %cst_191 [1] : vector<8x32xf32> to vector<8xf32>
    %485 = vector.shape_cast %484 : vector<8xf32> to vector<8x1xf32>
    %cst_192 = arith.constant 3.200000e+01 : f32
    %486 = vector.broadcast %cst_192 : f32 to vector<8x1xf32>
    %487 = arith.divf %485, %486 : vector<8x1xf32>
    %cst_193 = arith.constant 9.99999974E-6 : f32
    %488 = vector.broadcast %cst_193 : f32 to vector<8x1xf32>
    %489 = arith.addf %487, %488 : vector<8x1xf32>
    %490 = math.rsqrt %489 : vector<8x1xf32>
    %491 = vector.broadcast %490 : vector<8x1xf32> to vector<8x32xf32>
    %492 = arith.mulf %482, %491 : vector<8x32xf32>
    %493 = vector.broadcast %30 : vector<1x32xf32> to vector<8x32xf32>
    %494 = arith.mulf %492, %493 : vector<8x32xf32>
    %495 = vector.broadcast %31 : vector<1x32xf32> to vector<8x32xf32>
    %496 = arith.addf %494, %495 : vector<8x32xf32>
    %497 = arith.truncf %496 : vector<8x32xf32> to vector<8x32xbf16>
    %cst_194 = arith.constant dense<0.000000e+00> : vector<8x64xf32>
    %498 = tpu.matmul %497, %32, %cst_194 {dimension_numbers = #tpu.dot_dimension_numbers<[1], [0], [0], [1], [0, 0, 1, 1], [], []>} : vector<8x32xbf16>, vector<32x64xbf16>, vector<8x64xf32> -> vector<8x64xf32>
    %499 = vector.broadcast %33 : vector<1x64xf32> to vector<8x64xf32>
    %500 = arith.addf %498, %499 : vector<8x64xf32>
    %cst_195 = arith.constant 0.000000e+00 : f32
    %501 = vector.broadcast %cst_195 : f32 to vector<8x64xf32>
    %502 = arith.maximumf %500, %501 : vector<8x64xf32>
    %503 = arith.truncf %502 : vector<8x64xf32> to vector<8x64xbf16>
    %cst_196 = arith.constant dense<0.000000e+00> : vector<8x32xf32>
    %504 = tpu.matmul %503, %34, %cst_196 {dimension_numbers = #tpu.dot_dimension_numbers<[1], [0], [0], [1], [0, 0, 1, 1], [], []>} : vector<8x64xbf16>, vector<64x32xbf16>, vector<8x32xf32> -> vector<8x32xf32>
    %505 = vector.broadcast %35 : vector<1x32xf32> to vector<8x32xf32>
    %506 = arith.addf %504, %505 : vector<8x32xf32>
    %507 = arith.addf %496, %506 : vector<8x32xf32>
    %cst_197 = arith.constant dense<0.000000e+00> : vector<8xf32>
    %508 = vector.multi_reduction <add>, %507, %cst_197 [1] : vector<8x32xf32> to vector<8xf32>
    %509 = vector.shape_cast %508 : vector<8xf32> to vector<8x1xf32>
    %cst_198 = arith.constant 3.200000e+01 : f32
    %510 = vector.broadcast %cst_198 : f32 to vector<8x1xf32>
    %511 = arith.divf %509, %510 : vector<8x1xf32>
    %512 = vector.broadcast %511 : vector<8x1xf32> to vector<8x32xf32>
    %513 = arith.subf %507, %512 : vector<8x32xf32>
    %514 = arith.mulf %513, %513 : vector<8x32xf32>
    %cst_199 = arith.constant dense<0.000000e+00> : vector<8xf32>
    %515 = vector.multi_reduction <add>, %514, %cst_199 [1] : vector<8x32xf32> to vector<8xf32>
    %516 = vector.shape_cast %515 : vector<8xf32> to vector<8x1xf32>
    %cst_200 = arith.constant 3.200000e+01 : f32
    %517 = vector.broadcast %cst_200 : f32 to vector<8x1xf32>
    %518 = arith.divf %516, %517 : vector<8x1xf32>
    %cst_201 = arith.constant 9.99999974E-6 : f32
    %519 = vector.broadcast %cst_201 : f32 to vector<8x1xf32>
    %520 = arith.addf %518, %519 : vector<8x1xf32>
    %521 = math.rsqrt %520 : vector<8x1xf32>
    %522 = vector.broadcast %521 : vector<8x1xf32> to vector<8x32xf32>
    %523 = arith.mulf %513, %522 : vector<8x32xf32>
    %524 = vector.broadcast %36 : vector<1x32xf32> to vector<8x32xf32>
    %525 = arith.mulf %523, %524 : vector<8x32xf32>
    %526 = vector.broadcast %37 : vector<1x32xf32> to vector<8x32xf32>
    %527 = arith.addf %525, %526 : vector<8x32xf32>
    %528 = arith.truncf %527 : vector<8x32xf32> to vector<8x32xbf16>
    %cst_202 = arith.constant dense<0.000000e+00> : vector<8x128xf32>
    %529 = tpu.matmul %528, %38, %cst_202 {dimension_numbers = #tpu.dot_dimension_numbers<[1], [0], [0], [1], [0, 0, 1, 1], [], []>} : vector<8x32xbf16>, vector<32x128xbf16>, vector<8x128xf32> -> vector<8x128xf32>
    %530 = vector.broadcast %39 : vector<1x128xf32> to vector<8x128xf32>
    %531 = arith.addf %529, %530 : vector<8x128xf32>
    %c0_203 = arith.constant 0 : index
    %c0_204 = arith.constant 0 : index
    %c0_205 = arith.constant 0 : index
    %532 = vector.load %arg43[%c0_203, %c0_204, %c0_205] : memref<1x8x128xf32, #tpu.memory_space<vmem>>, vector<1x8x128xf32>
    %533 = vector.shape_cast %532 : vector<1x8x128xf32> to vector<8x128xf32>
    %534 = vector.shape_cast %531 : vector<8x128xf32> to vector<1x8x128xf32>
    tpu.vector_store %arg43[%c0_203, %c0_204, %c0_205], %534 {strides = array<i32>} : memref<1x8x128xf32, #tpu.memory_space<vmem>>, vector<1x8x128xf32>,
    return
  }
  func.func @transform_0(%arg0: i32) -> (i32, i32, i32) {
    %c0_i32 = arith.constant 0 : i32
    %c0_i32_0 = arith.constant 0 : i32
    %c0_i32_1 = arith.constant 0 : i32
    return %arg0, %c0_i32, %c0_i32_0 : i32, i32, i32
  }
  func.func @transform_1(%arg0: i32) -> (i32, i32, i32) {
    %c0_i32 = arith.constant 0 : i32
    %c0_i32_0 = arith.constant 0 : i32
    %c0_i32_1 = arith.constant 0 : i32
    return %arg0, %c0_i32, %c0_i32_0 : i32, i32, i32
  }
  func.func @transform_2(%arg0: i32) -> (i32, i32) {
    %c0_i32 = arith.constant 0 : i32
    %c0_i32_0 = arith.constant 0 : i32
    %c0_i32_1 = arith.constant 0 : i32
    return %c0_i32, %c0_i32_0 : i32, i32
  }
  func.func @transform_3(%arg0: i32) -> (i32, i32) {
    %c0_i32 = arith.constant 0 : i32
    %c0_i32_0 = arith.constant 0 : i32
    %c0_i32_1 = arith.constant 0 : i32
    return %c0_i32, %c0_i32_0 : i32, i32
  }
  func.func @transform_4(%arg0: i32) -> (i32, i32) {
    %c0_i32 = arith.constant 0 : i32
    %c0_i32_0 = arith.constant 0 : i32
    %c0_i32_1 = arith.constant 0 : i32
    return %c0_i32, %c0_i32_0 : i32, i32
  }
  func.func @transform_5(%arg0: i32) -> (i32, i32) {
    %c0_i32 = arith.constant 0 : i32
    %c0_i32_0 = arith.constant 0 : i32
    %c0_i32_1 = arith.constant 0 : i32
    return %c0_i32, %c0_i32_0 : i32, i32
  }
  func.func @transform_6(%arg0: i32) -> (i32, i32) {
    %c0_i32 = arith.constant 0 : i32
    %c0_i32_0 = arith.constant 0 : i32
    %c0_i32_1 = arith.constant 0 : i32
    return %c0_i32, %c0_i32_0 : i32, i32
  }
  func.func @transform_7(%arg0: i32) -> (i32, i32) {
    %c0_i32 = arith.constant 0 : i32
    %c0_i32_0 = arith.constant 0 : i32
    %c0_i32_1 = arith.constant 0 : i32
    return %c0_i32, %c0_i32_0 : i32, i32
  }
  func.func @transform_8(%arg0: i32) -> (i32, i32) {
    %c0_i32 = arith.constant 0 : i32
    %c0_i32_0 = arith.constant 0 : i32
    %c0_i32_1 = arith.constant 0 : i32
    return %c0_i32, %c0_i32_0 : i32, i32
  }
  func.func @transform_9(%arg0: i32) -> (i32, i32) {
    %c0_i32 = arith.constant 0 : i32
    %c0_i32_0 = arith.constant 0 : i32
    %c0_i32_1 = arith.constant 0 : i32
    return %c0_i32, %c0_i32_0 : i32, i32
  }
  func.func @transform_10(%arg0: i32) -> (i32, i32) {
    %c0_i32 = arith.constant 0 : i32
    %c0_i32_0 = arith.constant 0 : i32
    %c0_i32_1 = arith.constant 0 : i32
    return %c0_i32, %c0_i32_0 : i32, i32
  }
  func.func @transform_11(%arg0: i32) -> (i32, i32) {
    %c0_i32 = arith.constant 0 : i32
    %c0_i32_0 = arith.constant 0 : i32
    %c0_i32_1 = arith.constant 0 : i32
    return %c0_i32, %c0_i32_0 : i32, i32
  }
  func.func @transform_12(%arg0: i32) -> (i32, i32) {
    %c0_i32 = arith.constant 0 : i32
    %c0_i32_0 = arith.constant 0 : i32
    %c0_i32_1 = arith.constant 0 : i32
    return %c0_i32, %c0_i32_0 : i32, i32
  }
  func.func @transform_13(%arg0: i32) -> (i32, i32) {
    %c0_i32 = arith.constant 0 : i32
    %c0_i32_0 = arith.constant 0 : i32
    %c0_i32_1 = arith.constant 0 : i32
    return %c0_i32, %c0_i32_0 : i32, i32
  }
  func.func @transform_14(%arg0: i32) -> (i32, i32) {
    %c0_i32 = arith.constant 0 : i32
    %c0_i32_0 = arith.constant 0 : i32
    %c0_i32_1 = arith.constant 0 : i32
    return %c0_i32, %c0_i32_0 : i32, i32
  }
  func.func @transform_15(%arg0: i32) -> (i32, i32) {
    %c0_i32 = arith.constant 0 : i32
    %c0_i32_0 = arith.constant 0 : i32
    %c0_i32_1 = arith.constant 0 : i32
    return %c0_i32, %c0_i32_0 : i32, i32
  }
  func.func @transform_16(%arg0: i32) -> (i32, i32) {
    %c0_i32 = arith.constant 0 : i32
    %c0_i32_0 = arith.constant 0 : i32
    %c0_i32_1 = arith.constant 0 : i32
    return %c0_i32, %c0_i32_0 : i32, i32
  }
  func.func @transform_17(%arg0: i32) -> (i32, i32) {
    %c0_i32 = arith.constant 0 : i32
    %c0_i32_0 = arith.constant 0 : i32
    %c0_i32_1 = arith.constant 0 : i32
    return %c0_i32, %c0_i32_0 : i32, i32
  }
  func.func @transform_18(%arg0: i32) -> (i32, i32) {
    %c0_i32 = arith.constant 0 : i32
    %c0_i32_0 = arith.constant 0 : i32
    %c0_i32_1 = arith.constant 0 : i32
    return %c0_i32, %c0_i32_0 : i32, i32
  }
  func.func @transform_19(%arg0: i32) -> (i32, i32) {
    %c0_i32 = arith.constant 0 : i32
    %c0_i32_0 = arith.constant 0 : i32
    %c0_i32_1 = arith.constant 0 : i32
    return %c0_i32, %c0_i32_0 : i32, i32
  }
  func.func @transform_20(%arg0: i32) -> (i32, i32) {
    %c0_i32 = arith.constant 0 : i32
    %c0_i32_0 = arith.constant 0 : i32
    %c0_i32_1 = arith.constant 0 : i32
    return %c0_i32, %c0_i32_0 : i32, i32
  }
  func.func @transform_21(%arg0: i32) -> (i32, i32) {
    %c0_i32 = arith.constant 0 : i32
    %c0_i32_0 = arith.constant 0 : i32
    %c0_i32_1 = arith.constant 0 : i32
    return %c0_i32, %c0_i32_0 : i32, i32
  }
  func.func @transform_22(%arg0: i32) -> (i32, i32) {
    %c0_i32 = arith.constant 0 : i32
    %c0_i32_0 = arith.constant 0 : i32
    %c0_i32_1 = arith.constant 0 : i32
    return %c0_i32, %c0_i32_0 : i32, i32
  }
  func.func @transform_23(%arg0: i32) -> (i32, i32) {
    %c0_i32 = arith.constant 0 : i32
    %c0_i32_0 = arith.constant 0 : i32
    %c0_i32_1 = arith.constant 0 : i32
    return %c0_i32, %c0_i32_0 : i32, i32
  }
  func.func @transform_24(%arg0: i32) -> (i32, i32) {
    %c0_i32 = arith.constant 0 : i32
    %c0_i32_0 = arith.constant 0 : i32
    %c0_i32_1 = arith.constant 0 : i32
    return %c0_i32, %c0_i32_0 : i32, i32
  }
  func.func @transform_25(%arg0: i32) -> (i32, i32) {
    %c0_i32 = arith.constant 0 : i32
    %c0_i32_0 = arith.constant 0 : i32
    %c0_i32_1 = arith.constant 0 : i32
    return %c0_i32, %c0_i32_0 : i32, i32
  }
  func.func @transform_26(%arg0: i32) -> (i32, i32) {
    %c0_i32 = arith.constant 0 : i32
    %c0_i32_0 = arith.constant 0 : i32
    %c0_i32_1 = arith.constant 0 : i32
    return %c0_i32, %c0_i32_0 : i32, i32
  }
  func.func @transform_27(%arg0: i32) -> (i32, i32) {
    %c0_i32 = arith.constant 0 : i32
    %c0_i32_0 = arith.constant 0 : i32
    %c0_i32_1 = arith.constant 0 : i32
    return %c0_i32, %c0_i32_0 : i32, i32
  }
  func.func @transform_28(%arg0: i32) -> (i32, i32) {
    %c0_i32 = arith.constant 0 : i32
    %c0_i32_0 = arith.constant 0 : i32
    %c0_i32_1 = arith.constant 0 : i32
    return %c0_i32, %c0_i32_0 : i32, i32
  }
  func.func @transform_29(%arg0: i32) -> (i32, i32) {
    %c0_i32 = arith.constant 0 : i32
    %c0_i32_0 = arith.constant 0 : i32
    %c0_i32_1 = arith.constant 0 : i32
    return %c0_i32, %c0_i32_0 : i32, i32
  }
  func.func @transform_30(%arg0: i32) -> (i32, i32) {
    %c0_i32 = arith.constant 0 : i32
    %c0_i32_0 = arith.constant 0 : i32
    %c0_i32_1 = arith.constant 0 : i32
    return %c0_i32, %c0_i32_0 : i32, i32
  }
  func.func @transform_31(%arg0: i32) -> (i32, i32) {
    %c0_i32 = arith.constant 0 : i32
    %c0_i32_0 = arith.constant 0 : i32
    %c0_i32_1 = arith.constant 0 : i32
    return %c0_i32, %c0_i32_0 : i32, i32
  }
  func.func @transform_32(%arg0: i32) -> (i32, i32) {
    %c0_i32 = arith.constant 0 : i32
    %c0_i32_0 = arith.constant 0 : i32
    %c0_i32_1 = arith.constant 0 : i32
    return %c0_i32, %c0_i32_0 : i32, i32
  }
  func.func @transform_33(%arg0: i32) -> (i32, i32) {
    %c0_i32 = arith.constant 0 : i32
    %c0_i32_0 = arith.constant 0 : i32
    %c0_i32_1 = arith.constant 0 : i32
    return %c0_i32, %c0_i32_0 : i32, i32
  }
  func.func @transform_34(%arg0: i32) -> (i32, i32) {
    %c0_i32 = arith.constant 0 : i32
    %c0_i32_0 = arith.constant 0 : i32
    %c0_i32_1 = arith.constant 0 : i32
    return %c0_i32, %c0_i32_0 : i32, i32
  }
  func.func @transform_35(%arg0: i32) -> (i32, i32) {
    %c0_i32 = arith.constant 0 : i32
    %c0_i32_0 = arith.constant 0 : i32
    %c0_i32_1 = arith.constant 0 : i32
    return %c0_i32, %c0_i32_0 : i32, i32
  }
  func.func @transform_36(%arg0: i32) -> (i32, i32) {
    %c0_i32 = arith.constant 0 : i32
    %c0_i32_0 = arith.constant 0 : i32
    %c0_i32_1 = arith.constant 0 : i32
    return %c0_i32, %c0_i32_0 : i32, i32
  }
  func.func @transform_37(%arg0: i32) -> (i32, i32) {
    %c0_i32 = arith.constant 0 : i32
    %c0_i32_0 = arith.constant 0 : i32
    %c0_i32_1 = arith.constant 0 : i32
    return %c0_i32, %c0_i32_0 : i32, i32
  }
  func.func @transform_38(%arg0: i32) -> (i32, i32) {
    %c0_i32 = arith.constant 0 : i32
    %c0_i32_0 = arith.constant 0 : i32
    %c0_i32_1 = arith.constant 0 : i32
    return %c0_i32, %c0_i32_0 : i32, i32
  }
  func.func @transform_39(%arg0: i32) -> (i32, i32) {
    %c0_i32 = arith.constant 0 : i32
    %c0_i32_0 = arith.constant 0 : i32
    %c0_i32_1 = arith.constant 0 : i32
    return %c0_i32, %c0_i32_0 : i32, i32
  }
  func.func @transform_40(%arg0: i32) -> (i32, i32) {
    %c0_i32 = arith.constant 0 : i32
    %c0_i32_0 = arith.constant 0 : i32
    %c0_i32_1 = arith.constant 0 : i32
    return %c0_i32, %c0_i32_0 : i32, i32
  }
  func.func @transform_41(%arg0: i32) -> (i32, i32) {
    %c0_i32 = arith.constant 0 : i32
    %c0_i32_0 = arith.constant 0 : i32
    %c0_i32_1 = arith.constant 0 : i32
    return %c0_i32, %c0_i32_0 : i32, i32
  }
  func.func @transform_42(%arg0: i32) -> (i32, i32, i32) {
    %c0_i32 = arith.constant 0 : i32
    %c0_i32_0 = arith.constant 0 : i32
    %c0_i32_1 = arith.constant 0 : i32
    return %arg0, %c0_i32, %c0_i32_0 : i32, i32, i32
  }
}

</mosaic_0001>

<llo_original>
// kernel: transformer_forward.1
$region0: #{transformer_forward.1}
  #allocation0 [shape = 'u32[]', space=smem, size = 0x4, offset = 0x4, fixed_abs, tag = 'smem constant byte address 0x4 - core index']
  #allocation1 [shape = 'u32[72,128]{1,0:T(1,128)}', space=vmem, size = 0x9000, scoped, tag = 'internal scratch']
  %s0 = inlined_call_operand.smem [shape: u32[43], index: -1, kind: input, shape index: {}]
  %s1 = sld [smem:[%s0]]
  %s2 = scalar_lea.smem %s0, 1
  %s3 = sld [smem:[%s2]]
  %s4 = scalar_lea.smem %s0, 2
  %s5 = sld [smem:[%s4]]
  %s6 = scalar_lea.smem %s0, 3
  %s7 = sld [smem:[%s6]]
  %s8 = scalar_lea.smem %s0, 4
  %s9 = sld [smem:[%s8]]
  %s10 = scalar_lea.smem %s0, 5
  %s11 = sld [smem:[%s10]]
  %s12 = scalar_lea.smem %s0, 6
  %s13 = sld [smem:[%s12]]
  %s14 = scalar_lea.smem %s0, 7
  %s15 = sld [smem:[%s14]]
  %s16 = scalar_lea.smem %s0, 8
  %s17 = sld [smem:[%s16]]
  %s18 = scalar_lea.smem %s0, 9
  %s19 = sld [smem:[%s18]]
  %s20 = scalar_lea.smem %s0, 10
  %s21 = sld [smem:[%s20]]
  %s22 = scalar_lea.smem %s0, 11
  %s23 = sld [smem:[%s22]]
  %s24 = scalar_lea.smem %s0, 12
  %s25 = sld [smem:[%s24]]
  %s26 = scalar_lea.smem %s0, 13
  %s27 = sld [smem:[%s26]]
  %s28 = scalar_lea.smem %s0, 14
  %s29 = sld [smem:[%s28]]
  %s30 = scalar_lea.smem %s0, 15
  %s31 = sld [smem:[%s30]]
  %s32 = scalar_lea.smem %s0, 16
  %s33 = sld [smem:[%s32]]
  %s34 = scalar_lea.smem %s0, 17
  %s35 = sld [smem:[%s34]]
  %s36 = scalar_lea.smem %s0, 18
  %s37 = sld [smem:[%s36]]
  %s38 = scalar_lea.smem %s0, 19
  %s39 = sld [smem:[%s38]]
  %s40 = scalar_lea.smem %s0, 20
  %s41 = sld [smem:[%s40]]
  %s42 = scalar_lea.smem %s0, 21
  %s43 = sld [smem:[%s42]]
  %s44 = scalar_lea.smem %s0, 22
  %s45 = sld [smem:[%s44]]
  %s46 = scalar_lea.smem %s0, 23
  %s47 = sld [smem:[%s46]]
  %s48 = scalar_lea.smem %s0, 24
  %s49 = sld [smem:[%s48]]
  %s50 = scalar_lea.smem %s0, 25
  %s51 = sld [smem:[%s50]]
  %s52 = scalar_lea.smem %s0, 26
  %s53 = sld [smem:[%s52]]
  %s54 = scalar_lea.smem %s0, 27
  %s55 = sld [smem:[%s54]]
  %s56 = scalar_lea.smem %s0, 28
  %s57 = sld [smem:[%s56]]
  %s58 = scalar_lea.smem %s0, 29
  %s59 = sld [smem:[%s58]]
  %s60 = scalar_lea.smem %s0, 30
  %s61 = sld [smem:[%s60]]
  %s62 = scalar_lea.smem %s0, 31
  %s63 = sld [smem:[%s62]]
  %s64 = scalar_lea.smem %s0, 32
  %s65 = sld [smem:[%s64]]
  %s66 = scalar_lea.smem %s0, 33
  %s67 = sld [smem:[%s66]]
  %s68 = scalar_lea.smem %s0, 34
  %s69 = sld [smem:[%s68]]
  %s70 = scalar_lea.smem %s0, 35
  %s71 = sld [smem:[%s70]]
  %s72 = scalar_lea.smem %s0, 36
  %s73 = sld [smem:[%s72]]
  %s74 = scalar_lea.smem %s0, 37
  %s75 = sld [smem:[%s74]]
  %s76 = scalar_lea.smem %s0, 38
  %s77 = sld [smem:[%s76]]
  %s78 = scalar_lea.smem %s0, 39
  %s79 = sld [smem:[%s78]]
  %s80 = scalar_lea.smem %s0, 40
  %s81 = sld [smem:[%s80]]
  %s82 = scalar_lea.smem %s0, 41
  %s83 = sld [smem:[%s82]]
  %s84 = scalar_lea.smem %s0, 42
  %s85 = sld [smem:[%s84]]
  %s86 = sld [smem:[#allocation0]]
  $region201: #{transformer_forward.1} parent=0
    _
  %s88 = ssub.s32 1, %s86
  %s89 = scalar_select 0, %s88, %s86
  $region1: #{transformer_forward.1} parent=0
    #allocation2 [shape = 'u8[8192]{0}', space=vmem, size = 0x2000, scoped, tag = 'output window, operand 0']
    #allocation3 [shape = 's32[2]{0}', space=sflag, size = 0x8, scoped, tag = 'scoped memory for transformer_forward.1']
    %90 = vsyncpa [#allocation3], 0
    %s91 = scalar_lea.sflag [#allocation3], 1
    %92 = vsyncpa %s91, 0
    loop: start=0, step=1, limit=4
    $region2: #{transformer_forward.1} parent=1 // loop_pre_header
      _
    $region3: #{transformer_forward.1} parent=1 // loop_header
      %s94 = sphi 0, %s98
      %p95 = scmp.ge.s32.totalorder %s94, 4
      %s104 = sphi 0, %s106
      %s107 = sphi 0, %s104
      %s108 = sphi 0, %s107
      %s124 = sphi 0, %s108
      %s130 = sphi 0, %s132
      %s133 = sphi 0, %s130
      %s134 = sphi 0, %s133
      %s150 = sphi 0, %s134
      %s154 = sphi 0, %s154
      %s156 = sphi 0, %s154
      %s157 = sphi 0, %s156
      %s171 = sphi 0, %s157
      %s175 = sphi 0, %s175
      %s177 = sphi 0, %s175
      %s178 = sphi 0, %s177
      %s192 = sphi 0, %s178
      %s196 = sphi 0, %s196
      %s198 = sphi 0, %s196
      %s199 = sphi 0, %s198
      %s213 = sphi 0, %s199
      %s217 = sphi 0, %s217
      %s219 = sphi 0, %s217
      %s220 = sphi 0, %s219
      %s234 = sphi 0, %s220
      %s238 = sphi 0, %s238
      %s240 = sphi 0, %s238
      %s241 = sphi 0, %s240
      %s255 = sphi 0, %s241
      %s259 = sphi 0, %s259
      %s261 = sphi 0, %s259
      %s262 = sphi 0, %s261
      %s276 = sphi 0, %s262
      %s280 = sphi 0, %s280
      %s282 = sphi 0, %s280
      %s283 = sphi 0, %s282
      %s297 = sphi 0, %s283
      %s301 = sphi 0, %s301
      %s303 = sphi 0, %s301
      %s304 = sphi 0, %s303
      %s318 = sphi 0, %s304
      %s322 = sphi 0, %s322
      %s324 = sphi 0, %s322
      %s325 = sphi 0, %s324
      %s339 = sphi 0, %s325
      %s343 = sphi 0, %s343
      %s345 = sphi 0, %s343
      %s346 = sphi 0, %s345
      %s360 = sphi 0, %s346
      %s364 = sphi 0, %s364
      %s366 = sphi 0, %s364
      %s367 = sphi 0, %s366
      %s381 = sphi 0, %s367
      %s385 = sphi 0, %s385
      %s387 = sphi 0, %s385
      %s388 = sphi 0, %s387
      %s402 = sphi 0, %s388
      %s406 = sphi 0, %s406
      %s408 = sphi 0, %s406
      %s409 = sphi 0, %s408
      %s423 = sphi 0, %s409
      %s427 = sphi 0, %s427
      %s429 = sphi 0, %s427
      %s430 = sphi 0, %s429
      %s444 = sphi 0, %s430
      %s448 = sphi 0, %s448
      %s450 = sphi 0, %s448
      %s451 = sphi 0, %s450
      %s465 = sphi 0, %s451
      %s469 = sphi 0, %s469
      %s471 = sphi 0, %s469
      %s472 = sphi 0, %s471
      %s486 = sphi 0, %s472
      %s490 = sphi 0, %s490
      %s492 = sphi 0, %s490
      %s493 = sphi 0, %s492
      %s507 = sphi 0, %s493
      %s511 = sphi 0, %s511
      %s513 = sphi 0, %s511
      %s514 = sphi 0, %s513
      %s528 = sphi 0, %s514
      %s532 = sphi 0, %s532
      %s534 = sphi 0, %s532
      %s535 = sphi 0, %s534
      %s549 = sphi 0, %s535
      %s553 = sphi 0, %s553
      %s555 = sphi 0, %s553
      %s556 = sphi 0, %s555
      %s570 = sphi 0, %s556
      %s574 = sphi 0, %s574
      %s576 = sphi 0, %s574
      %s577 = sphi 0, %s576
      %s591 = sphi 0, %s577
      %s595 = sphi 0, %s595
      %s597 = sphi 0, %s595
      %s598 = sphi 0, %s597
      %s612 = sphi 0, %s598
      %s616 = sphi 0, %s616
      %s618 = sphi 0, %s616
      %s619 = sphi 0, %s618
      %s633 = sphi 0, %s619
      %s637 = sphi 0, %s637
      %s639 = sphi 0, %s637
      %s640 = sphi 0, %s639
      %s654 = sphi 0, %s640
      %s658 = sphi 0, %s658
      %s660 = sphi 0, %s658
      %s661 = sphi 0, %s660
      %s675 = sphi 0, %s661
      %s679 = sphi 0, %s679
      %s681 = sphi 0, %s679
      %s682 = sphi 0, %s681
      %s696 = sphi 0, %s682
      %s700 = sphi 0, %s700
      %s702 = sphi 0, %s700
      %s703 = sphi 0, %s702
      %s717 = sphi 0, %s703
      %s721 = sphi 0, %s721
      %s723 = sphi 0, %s721
      %s724 = sphi 0, %s723
      %s738 = sphi 0, %s724
      %s742 = sphi 0, %s742
      %s744 = sphi 0, %s742
      %s745 = sphi 0, %s744
      %s759 = sphi 0, %s745
      %s763 = sphi 0, %s763
      %s765 = sphi 0, %s763
      %s766 = sphi 0, %s765
      %s780 = sphi 0, %s766
      %s784 = sphi 0, %s784
      %s786 = sphi 0, %s784
      %s787 = sphi 0, %s786
      %s801 = sphi 0, %s787
      %s805 = sphi 0, %s805
      %s807 = sphi 0, %s805
      %s808 = sphi 0, %s807
      %s822 = sphi 0, %s808
      %s826 = sphi 0, %s826
      %s828 = sphi 0, %s826
      %s829 = sphi 0, %s828
      %s843 = sphi 0, %s829
      %s847 = sphi 0, %s847
      %s849 = sphi 0, %s847
      %s850 = sphi 0, %s849
      %s864 = sphi 0, %s850
      %s868 = sphi 0, %s868
      %s870 = sphi 0, %s868
      %s871 = sphi 0, %s870
      %s885 = sphi 0, %s871
      %s889 = sphi 0, %s889
      %s891 = sphi 0, %s889
      %s892 = sphi 0, %s891
      %s906 = sphi 0, %s892
      %s910 = sphi 0, %s910
      %s912 = sphi 0, %s910
      %s913 = sphi 0, %s912
      %s927 = sphi 0, %s913
      %s931 = sphi 0, %s931
      %s933 = sphi 0, %s931
      %s934 = sphi 0, %s933
      %s948 = sphi 0, %s934
      %s952 = sphi 0, %s952
      %s954 = sphi 0, %s952
      %s955 = sphi 0, %s954
      %s969 = sphi 0, %s955
      %s973 = sphi 0, %s973
      %s975 = sphi 0, %s973
      %s976 = sphi 0, %s975
      %s990 = sphi 0, %s976
      %s996 = sphi 0, %s998
      %s999 = sphi 0, %s996
      %s1000 = sphi 0, %s999
      %s1016 = sphi 0, %s1000
    $region4: #{transformer_forward.1} parent=1 // loop_header_branch
      %97 = sbr.rel (%p95) target = $region8
    $region5: #{transformer_forward.1} parent=1 // loop_body
      %s99 = ssub.s32 %s94, 1
      %s100 = ssub.s32 %s94, 2
      %s101 = sadd.s32 %s94, 1
      %s102 = ssub.s32 %s94, %s101
      %p103 = scmp.eq.s32.totalorder %s102, 0
      %s105 = sadd.s32 %s104, 1
      %s106 = scalar_select %p103, %s104, %s105
      %p109 = pneg %p103
      %p110 = scmp.eq.s32.totalorder %s94, 1
      %p111 = por %p109, %p110
      %p112 = scmp.ne.s32.totalorder %s104, %s107
      %p113 = scmp.eq.s32.totalorder %s94, 0
      %p114 = por %p112, %p113
      %p115 = scmp.ne.s32.totalorder %s104, %s107
      %p116 = scmp.eq.s32.totalorder %s99, 1
      %p117 = por %p115, %p116
      %p118 = scmp.ne.s32.totalorder %s107, %s108
      %p119 = scmp.eq.s32.totalorder %s99, 0
      %p120 = por %p118, %p119
      %p121 = scmp.ne.s32.totalorder %s107, %s108
      %p122 = scmp.eq.s32.totalorder %s100, 1
      %p123 = por %p121, %p122
      %p125 = scmp.ne.s32.totalorder %s108, %s124
      %p126 = scmp.eq.s32.totalorder %s100, 0
      %p127 = por %p125, %p126
      %s128 = ssub.s32 %s94, %s101
      %p129 = scmp.eq.s32.totalorder %s128, 0
      %s131 = sadd.s32 %s130, 1
      %s132 = scalar_select %p129, %s130, %s131
      %p135 = pneg %p129
      %p136 = scmp.eq.s32.totalorder %s94, 1
      %p137 = por %p135, %p136
      %p138 = scmp.ne.s32.totalorder %s130, %s133
      %p139 = scmp.eq.s32.totalorder %s94, 0
      %p140 = por %p138, %p139
      %p141 = scmp.ne.s32.totalorder %s130, %s133
      %p142 = scmp.eq.s32.totalorder %s99, 1
      %p143 = por %p141, %p142
      %p144 = scmp.ne.s32.totalorder %s133, %s134
      %p145 = scmp.eq.s32.totalorder %s99, 0
      %p146 = por %p144, %p145
      %p147 = scmp.ne.s32.totalorder %s133, %s134
      %p148 = scmp.eq.s32.totalorder %s100, 1
      %p149 = por %p147, %p148
      %p151 = scmp.ne.s32.totalorder %s134, %s150
      %p152 = scmp.eq.s32.totalorder %s100, 0
      %p153 = por %p151, %p152
      %s155 = sadd.s32 %s154, 1
      %p158 = scmp.eq.s32.totalorder %s94, 1
      %p159 = scmp.ne.s32.totalorder %s154, %s156
      %p160 = scmp.eq.s32.totalorder %s94, 0
      %p161 = por %p159, %p160
      %p162 = scmp.ne.s32.totalorder %s154, %s156
      %p163 = scmp.eq.s32.totalorder %s99, 1
      %p164 = por %p162, %p163
      %p165 = scmp.ne.s32.totalorder %s156, %s157
      %p166 = scmp.eq.s32.totalorder %s99, 0
      %p167 = por %p165, %p166
      %p168 = scmp.ne.s32.totalorder %s156, %s157
      %p169 = scmp.eq.s32.totalorder %s100, 1
      %p170 = por %p168, %p169
      %p172 = scmp.ne.s32.totalorder %s157, %s171
      %p173 = scmp.eq.s32.totalorder %s100, 0
      %p174 = por %p172, %p173
      %s176 = sadd.s32 %s175, 1
      %p179 = scmp.eq.s32.totalorder %s94, 1
      %p180 = scmp.ne.s32.totalorder %s175, %s177
      %p181 = scmp.eq.s32.totalorder %s94, 0
      %p182 = por %p180, %p181
      %p183 = scmp.ne.s32.totalorder %s175, %s177
      %p184 = scmp.eq.s32.totalorder %s99, 1
      %p185 = por %p183, %p184
      %p186 = scmp.ne.s32.totalorder %s177, %s178
      %p187 = scmp.eq.s32.totalorder %s99, 0
      %p188 = por %p186, %p187
      %p189 = scmp.ne.s32.totalorder %s177, %s178
      %p190 = scmp.eq.s32.totalorder %s100, 1
      %p191 = por %p189, %p190
      %p193 = scmp.ne.s32.totalorder %s178, %s192
      %p194 = scmp.eq.s32.totalorder %s100, 0
      %p195 = por %p193, %p194
      %s197 = sadd.s32 %s196, 1
      %p200 = scmp.eq.s32.totalorder %s94, 1
      %p201 = scmp.ne.s32.totalorder %s196, %s198
      %p202 = scmp.eq.s32.totalorder %s94, 0
      %p203 = por %p201, %p202
      %p204 = scmp.ne.s32.totalorder %s196, %s198
      %p205 = scmp.eq.s32.totalorder %s99, 1
      %p206 = por %p204, %p205
      %p207 = scmp.ne.s32.totalorder %s198, %s199
      %p208 = scmp.eq.s32.totalorder %s99, 0
      %p209 = por %p207, %p208
      %p210 = scmp.ne.s32.totalorder %s198, %s199
      %p211 = scmp.eq.s32.totalorder %s100, 1
      %p212 = por %p210, %p211
      %p214 = scmp.ne.s32.totalorder %s199, %s213
      %p215 = scmp.eq.s32.totalorder %s100, 0
      %p216 = por %p214, %p215
      %s218 = sadd.s32 %s217, 1
      %p221 = scmp.eq.s32.totalorder %s94, 1
      %p222 = scmp.ne.s32.totalorder %s217, %s219
      %p223 = scmp.eq.s32.totalorder %s94, 0
      %p224 = por %p222, %p223
      %p225 = scmp.ne.s32.totalorder %s217, %s219
      %p226 = scmp.eq.s32.totalorder %s99, 1
      %p227 = por %p225, %p226
      %p228 = scmp.ne.s32.totalorder %s219, %s220
      %p229 = scmp.eq.s32.totalorder %s99, 0
      %p230 = por %p228, %p229
      %p231 = scmp.ne.s32.totalorder %s219, %s220
      %p232 = scmp.eq.s32.totalorder %s100, 1
      %p233 = por %p231, %p232
      %p235 = scmp.ne.s32.totalorder %s220, %s234
      %p236 = scmp.eq.s32.totalorder %s100, 0
      %p237 = por %p235, %p236
      %s239 = sadd.s32 %s238, 1
      %p242 = scmp.eq.s32.totalorder %s94, 1
      %p243 = scmp.ne.s32.totalorder %s238, %s240
      %p244 = scmp.eq.s32.totalorder %s94, 0
      %p245 = por %p243, %p244
      %p246 = scmp.ne.s32.totalorder %s238, %s240
      %p247 = scmp.eq.s32.totalorder %s99, 1
      %p248 = por %p246, %p247
      %p249 = scmp.ne.s32.totalorder %s240, %s241
      %p250 = scmp.eq.s32.totalorder %s99, 0
      %p251 = por %p249, %p250
      %p252 = scmp.ne.s32.totalorder %s240, %s241
      %p253 = scmp.eq.s32.totalorder %s100, 1
      %p254 = por %p252, %p253
      %p256 = scmp.ne.s32.totalorder %s241, %s255
      %p257 = scmp.eq.s32.totalorder %s100, 0
      %p258 = por %p256, %p257
      %s260 = sadd.s32 %s259, 1
      %p263 = scmp.eq.s32.totalorder %s94, 1
      %p264 = scmp.ne.s32.totalorder %s259, %s261
      %p265 = scmp.eq.s32.totalorder %s94, 0
      %p266 = por %p264, %p265
      %p267 = scmp.ne.s32.totalorder %s259, %s261
      %p268 = scmp.eq.s32.totalorder %s99, 1
      %p269 = por %p267, %p268
      %p270 = scmp.ne.s32.totalorder %s261, %s262
      %p271 = scmp.eq.s32.totalorder %s99, 0
      %p272 = por %p270, %p271
      %p273 = scmp.ne.s32.totalorder %s261, %s262
      %p274 = scmp.eq.s32.totalorder %s100, 1
      %p275 = por %p273, %p274
      %p277 = scmp.ne.s32.totalorder %s262, %s276
      %p278 = scmp.eq.s32.totalorder %s100, 0
      %p279 = por %p277, %p278
      %s281 = sadd.s32 %s280, 1
      %p284 = scmp.eq.s32.totalorder %s94, 1
      %p285 = scmp.ne.s32.totalorder %s280, %s282
      %p286 = scmp.eq.s32.totalorder %s94, 0
      %p287 = por %p285, %p286
      %p288 = scmp.ne.s32.totalorder %s280, %s282
      %p289 = scmp.eq.s32.totalorder %s99, 1
      %p290 = por %p288, %p289
      %p291 = scmp.ne.s32.totalorder %s282, %s283
      %p292 = scmp.eq.s32.totalorder %s99, 0
      %p293 = por %p291, %p292
      %p294 = scmp.ne.s32.totalorder %s282, %s283
      %p295 = scmp.eq.s32.totalorder %s100, 1
      %p296 = por %p294, %p295
      %p298 = scmp.ne.s32.totalorder %s283, %s297
      %p299 = scmp.eq.s32.totalorder %s100, 0
      %p300 = por %p298, %p299
      %s302 = sadd.s32 %s301, 1
      %p305 = scmp.eq.s32.totalorder %s94, 1
      %p306 = scmp.ne.s32.totalorder %s301, %s303
      %p307 = scmp.eq.s32.totalorder %s94, 0
      %p308 = por %p306, %p307
      %p309 = scmp.ne.s32.totalorder %s301, %s303
      %p310 = scmp.eq.s32.totalorder %s99, 1
      %p311 = por %p309, %p310
      %p312 = scmp.ne.s32.totalorder %s303, %s304
      %p313 = scmp.eq.s32.totalorder %s99, 0
      %p314 = por %p312, %p313
      %p315 = scmp.ne.s32.totalorder %s303, %s304
      %p316 = scmp.eq.s32.totalorder %s100, 1
      %p317 = por %p315, %p316
      %p319 = scmp.ne.s32.totalorder %s304, %s318
      %p320 = scmp.eq.s32.totalorder %s100, 0
      %p321 = por %p319, %p320
      %s323 = sadd.s32 %s322, 1
      %p326 = scmp.eq.s32.totalorder %s94, 1
      %p327 = scmp.ne.s32.totalorder %s322, %s324
      %p328 = scmp.eq.s32.totalorder %s94, 0
      %p329 = por %p327, %p328
      %p330 = scmp.ne.s32.totalorder %s322, %s324
      %p331 = scmp.eq.s32.totalorder %s99, 1
      %p332 = por %p330, %p331
      %p333 = scmp.ne.s32.totalorder %s324, %s325
      %p334 = scmp.eq.s32.totalorder %s99, 0
      %p335 = por %p333, %p334
      %p336 = scmp.ne.s32.totalorder %s324, %s325
      %p337 = scmp.eq.s32.totalorder %s100, 1
      %p338 = por %p336, %p337
      %p340 = scmp.ne.s32.totalorder %s325, %s339
      %p341 = scmp.eq.s32.totalorder %s100, 0
      %p342 = por %p340, %p341
      %s344 = sadd.s32 %s343, 1
      %p347 = scmp.eq.s32.totalorder %s94, 1
      %p348 = scmp.ne.s32.totalorder %s343, %s345
      %p349 = scmp.eq.s32.totalorder %s94, 0
      %p350 = por %p348, %p349
      %p351 = scmp.ne.s32.totalorder %s343, %s345
      %p352 = scmp.eq.s32.totalorder %s99, 1
      %p353 = por %p351, %p352
      %p354 = scmp.ne.s32.totalorder %s345, %s346
      %p355 = scmp.eq.s32.totalorder %s99, 0
      %p356 = por %p354, %p355
      %p357 = scmp.ne.s32.totalorder %s345, %s346
      %p358 = scmp.eq.s32.totalorder %s100, 1
      %p359 = por %p357, %p358
      %p361 = scmp.ne.s32.totalorder %s346, %s360
      %p362 = scmp.eq.s32.totalorder %s100, 0
      %p363 = por %p361, %p362
      %s365 = sadd.s32 %s364, 1
      %p368 = scmp.eq.s32.totalorder %s94, 1
      %p369 = scmp.ne.s32.totalorder %s364, %s366
      %p370 = scmp.eq.s32.totalorder %s94, 0
      %p371 = por %p369, %p370
      %p372 = scmp.ne.s32.totalorder %s364, %s366
      %p373 = scmp.eq.s32.totalorder %s99, 1
      %p374 = por %p372, %p373
      %p375 = scmp.ne.s32.totalorder %s366, %s367
      %p376 = scmp.eq.s32.totalorder %s99, 0
      %p377 = por %p375, %p376
      %p378 = scmp.ne.s32.totalorder %s366, %s367
      %p379 = scmp.eq.s32.totalorder %s100, 1
      %p380 = por %p378, %p379
      %p382 = scmp.ne.s32.totalorder %s367, %s381
      %p383 = scmp.eq.s32.totalorder %s100, 0
      %p384 = por %p382, %p383
      %s386 = sadd.s32 %s385, 1
      %p389 = scmp.eq.s32.totalorder %s94, 1
      %p390 = scmp.ne.s32.totalorder %s385, %s387
      %p391 = scmp.eq.s32.totalorder %s94, 0
      %p392 = por %p390, %p391
      %p393 = scmp.ne.s32.totalorder %s385, %s387
      %p394 = scmp.eq.s32.totalorder %s99, 1
      %p395 = por %p393, %p394
      %p396 = scmp.ne.s32.totalorder %s387, %s388
      %p397 = scmp.eq.s32.totalorder %s99, 0
      %p398 = por %p396, %p397
      %p399 = scmp.ne.s32.totalorder %s387, %s388
      %p400 = scmp.eq.s32.totalorder %s100, 1
      %p401 = por %p399, %p400
      %p403 = scmp.ne.s32.totalorder %s388, %s402
      %p404 = scmp.eq.s32.totalorder %s100, 0
      %p405 = por %p403, %p404
      %s407 = sadd.s32 %s406, 1
      %p410 = scmp.eq.s32.totalorder %s94, 1
      %p411 = scmp.ne.s32.totalorder %s406, %s408
      %p412 = scmp.eq.s32.totalorder %s94, 0
      %p413 = por %p411, %p412
      %p414 = scmp.ne.s32.totalorder %s406, %s408
      %p415 = scmp.eq.s32.totalorder %s99, 1
      %p416 = por %p414, %p415
      %p417 = scmp.ne.s32.totalorder %s408, %s409
      %p418 = scmp.eq.s32.totalorder %s99, 0
      %p419 = por %p417, %p418
      %p420 = scmp.ne.s32.totalorder %s408, %s409
      %p421 = scmp.eq.s32.totalorder %s100, 1
      %p422 = por %p420, %p421
      %p424 = scmp.ne.s32.totalorder %s409, %s423
      %p425 = scmp.eq.s32.totalorder %s100, 0
      %p426 = por %p424, %p425
      %s428 = sadd.s32 %s427, 1
      %p431 = scmp.eq.s32.totalorder %s94, 1
      %p432 = scmp.ne.s32.totalorder %s427, %s429
      %p433 = scmp.eq.s32.totalorder %s94, 0
      %p434 = por %p432, %p433
      %p435 = scmp.ne.s32.totalorder %s427, %s429
      %p436 = scmp.eq.s32.totalorder %s99, 1
      %p437 = por %p435, %p436
      %p438 = scmp.ne.s32.totalorder %s429, %s430
      %p439 = scmp.eq.s32.totalorder %s99, 0
      %p440 = por %p438, %p439
      %p441 = scmp.ne.s32.totalorder %s429, %s430
      %p442 = scmp.eq.s32.totalorder %s100, 1
      %p443 = por %p441, %p442
      %p445 = scmp.ne.s32.totalorder %s430, %s444
      %p446 = scmp.eq.s32.totalorder %s100, 0
      %p447 = por %p445, %p446
      %s449 = sadd.s32 %s448, 1
      %p452 = scmp.eq.s32.totalorder %s94, 1
      %p453 = scmp.ne.s32.totalorder %s448, %s450
      %p454 = scmp.eq.s32.totalorder %s94, 0
      %p455 = por %p453, %p454
      %p456 = scmp.ne.s32.totalorder %s448, %s450
      %p457 = scmp.eq.s32.totalorder %s99, 1
      %p458 = por %p456, %p457
      %p459 = scmp.ne.s32.totalorder %s450, %s451
      %p460 = scmp.eq.s32.totalorder %s99, 0
      %p461 = por %p459, %p460
      %p462 = scmp.ne.s32.totalorder %s450, %s451
      %p463 = scmp.eq.s32.totalorder %s100, 1
      %p464 = por %p462, %p463
      %p466 = scmp.ne.s32.totalorder %s451, %s465
      %p467 = scmp.eq.s32.totalorder %s100, 0
      %p468 = por %p466, %p467
      %s470 = sadd.s32 %s469, 1
      %p473 = scmp.eq.s32.totalorder %s94, 1
      %p474 = scmp.ne.s32.totalorder %s469, %s471
      %p475 = scmp.eq.s32.totalorder %s94, 0
      %p476 = por %p474, %p475
      %p477 = scmp.ne.s32.totalorder %s469, %s471
      %p478 = scmp.eq.s32.totalorder %s99, 1
      %p479 = por %p477, %p478
      %p480 = scmp.ne.s32.totalorder %s471, %s472
      %p481 = scmp.eq.s32.totalorder %s99, 0
      %p482 = por %p480, %p481
      %p483 = scmp.ne.s32.totalorder %s471, %s472
      %p484 = scmp.eq.s32.totalorder %s100, 1
      %p485 = por %p483, %p484
      %p487 = scmp.ne.s32.totalorder %s472, %s486
      %p488 = scmp.eq.s32.totalorder %s100, 0
      %p489 = por %p487, %p488
      %s491 = sadd.s32 %s490, 1
      %p494 = scmp.eq.s32.totalorder %s94, 1
      %p495 = scmp.ne.s32.totalorder %s490, %s492
      %p496 = scmp.eq.s32.totalorder %s94, 0
      %p497 = por %p495, %p496
      %p498 = scmp.ne.s32.totalorder %s490, %s492
      %p499 = scmp.eq.s32.totalorder %s99, 1
      %p500 = por %p498, %p499
      %p501 = scmp.ne.s32.totalorder %s492, %s493
      %p502 = scmp.eq.s32.totalorder %s99, 0
      %p503 = por %p501, %p502
      %p504 = scmp.ne.s32.totalorder %s492, %s493
      %p505 = scmp.eq.s32.totalorder %s100, 1
      %p506 = por %p504, %p505
      %p508 = scmp.ne.s32.totalorder %s493, %s507
      %p509 = scmp.eq.s32.totalorder %s100, 0
      %p510 = por %p508, %p509
      %s512 = sadd.s32 %s511, 1
      %p515 = scmp.eq.s32.totalorder %s94, 1
      %p516 = scmp.ne.s32.totalorder %s511, %s513
      %p517 = scmp.eq.s32.totalorder %s94, 0
      %p518 = por %p516, %p517
      %p519 = scmp.ne.s32.totalorder %s511, %s513
      %p520 = scmp.eq.s32.totalorder %s99, 1
      %p521 = por %p519, %p520
      %p522 = scmp.ne.s32.totalorder %s513, %s514
      %p523 = scmp.eq.s32.totalorder %s99, 0
      %p524 = por %p522, %p523
      %p525 = scmp.ne.s32.totalorder %s513, %s514
      %p526 = scmp.eq.s32.totalorder %s100, 1
      %p527 = por %p525, %p526
      %p529 = scmp.ne.s32.totalorder %s514, %s528
      %p530 = scmp.eq.s32.totalorder %s100, 0
      %p531 = por %p529, %p530
      %s533 = sadd.s32 %s532, 1
      %p536 = scmp.eq.s32.totalorder %s94, 1
      %p537 = scmp.ne.s32.totalorder %s532, %s534
      %p538 = scmp.eq.s32.totalorder %s94, 0
      %p539 = por %p537, %p538
      %p540 = scmp.ne.s32.totalorder %s532, %s534
      %p541 = scmp.eq.s32.totalorder %s99, 1
      %p542 = por %p540, %p541
      %p543 = scmp.ne.s32.totalorder %s534, %s535
      %p544 = scmp.eq.s32.totalorder %s99, 0
      %p545 = por %p543, %p544
      %p546 = scmp.ne.s32.totalorder %s534, %s535
      %p547 = scmp.eq.s32.totalorder %s100, 1
      %p548 = por %p546, %p547
      %p550 = scmp.ne.s32.totalorder %s535, %s549
      %p551 = scmp.eq.s32.totalorder %s100, 0
      %p552 = por %p550, %p551
      %s554 = sadd.s32 %s553, 1
      %p557 = scmp.eq.s32.totalorder %s94, 1
      %p558 = scmp.ne.s32.totalorder %s553, %s555
      %p559 = scmp.eq.s32.totalorder %s94, 0
      %p560 = por %p558, %p559
      %p561 = scmp.ne.s32.totalorder %s553, %s555
      %p562 = scmp.eq.s32.totalorder %s99, 1
      %p563 = por %p561, %p562
      %p564 = scmp.ne.s32.totalorder %s555, %s556
      %p565 = scmp.eq.s32.totalorder %s99, 0
      %p566 = por %p564, %p565
      %p567 = scmp.ne.s32.totalorder %s555, %s556
      %p568 = scmp.eq.s32.totalorder %s100, 1
      %p569 = por %p567, %p568
      %p571 = scmp.ne.s32.totalorder %s556, %s570
      %p572 = scmp.eq.s32.totalorder %s100, 0
      %p573 = por %p571, %p572
      %s575 = sadd.s32 %s574, 1
      %p578 = scmp.eq.s32.totalorder %s94, 1
      %p579 = scmp.ne.s32.totalorder %s574, %s576
      %p580 = scmp.eq.s32.totalorder %s94, 0
      %p581 = por %p579, %p580
      %p582 = scmp.ne.s32.totalorder %s574, %s576
      %p583 = scmp.eq.s32.totalorder %s99, 1
      %p584 = por %p582, %p583
      %p585 = scmp.ne.s32.totalorder %s576, %s577
      %p586 = scmp.eq.s32.totalorder %s99, 0
      %p587 = por %p585, %p586
      %p588 = scmp.ne.s32.totalorder %s576, %s577
      %p589 = scmp.eq.s32.totalorder %s100, 1
      %p590 = por %p588, %p589
      %p592 = scmp.ne.s32.totalorder %s577, %s591
      %p593 = scmp.eq.s32.totalorder %s100, 0
      %p594 = por %p592, %p593
      %s596 = sadd.s32 %s595, 1
      %p599 = scmp.eq.s32.totalorder %s94, 1
      %p600 = scmp.ne.s32.totalorder %s595, %s597
      %p601 = scmp.eq.s32.totalorder %s94, 0
      %p602 = por %p600, %p601
      %p603 = scmp.ne.s32.totalorder %s595, %s597
      %p604 = scmp.eq.s32.totalorder %s99, 1
      %p605 = por %p603, %p604
      %p606 = scmp.ne.s32.totalorder %s597, %s598
      %p607 = scmp.eq.s32.totalorder %s99, 0
      %p608 = por %p606, %p607
      %p609 = scmp.ne.s32.totalorder %s597, %s598
      %p610 = scmp.eq.s32.totalorder %s100, 1
      %p611 = por %p609, %p610
      %p613 = scmp.ne.s32.totalorder %s598, %s612
      %p614 = scmp.eq.s32.totalorder %s100, 0
      %p615 = por %p613, %p614
      %s617 = sadd.s32 %s616, 1
      %p620 = scmp.eq.s32.totalorder %s94, 1
      %p621 = scmp.ne.s32.totalorder %s616, %s618
      %p622 = scmp.eq.s32.totalorder %s94, 0
      %p623 = por %p621, %p622
      %p624 = scmp.ne.s32.totalorder %s616, %s618
      %p625 = scmp.eq.s32.totalorder %s99, 1
      %p626 = por %p624, %p625
      %p627 = scmp.ne.s32.totalorder %s618, %s619
      %p628 = scmp.eq.s32.totalorder %s99, 0
      %p629 = por %p627, %p628
      %p630 = scmp.ne.s32.totalorder %s618, %s619
      %p631 = scmp.eq.s32.totalorder %s100, 1
      %p632 = por %p630, %p631
      %p634 = scmp.ne.s32.totalorder %s619, %s633
      %p635 = scmp.eq.s32.totalorder %s100, 0
      %p636 = por %p634, %p635
      %s638 = sadd.s32 %s637, 1
      %p641 = scmp.eq.s32.totalorder %s94, 1
      %p642 = scmp.ne.s32.totalorder %s637, %s639
      %p643 = scmp.eq.s32.totalorder %s94, 0
      %p644 = por %p642, %p643
      %p645 = scmp.ne.s32.totalorder %s637, %s639
      %p646 = scmp.eq.s32.totalorder %s99, 1
      %p647 = por %p645, %p646
      %p648 = scmp.ne.s32.totalorder %s639, %s640
      %p649 = scmp.eq.s32.totalorder %s99, 0
      %p650 = por %p648, %p649
      %p651 = scmp.ne.s32.totalorder %s639, %s640
      %p652 = scmp.eq.s32.totalorder %s100, 1
      %p653 = por %p651, %p652
      %p655 = scmp.ne.s32.totalorder %s640, %s654
      %p656 = scmp.eq.s32.totalorder %s100, 0
      %p657 = por %p655, %p656
      %s659 = sadd.s32 %s658, 1
      %p662 = scmp.eq.s32.totalorder %s94, 1
      %p663 = scmp.ne.s32.totalorder %s658, %s660
      %p664 = scmp.eq.s32.totalorder %s94, 0
      %p665 = por %p663, %p664
      %p666 = scmp.ne.s32.totalorder %s658, %s660
      %p667 = scmp.eq.s32.totalorder %s99, 1
      %p668 = por %p666, %p667
      %p669 = scmp.ne.s32.totalorder %s660, %s661
      %p670 = scmp.eq.s32.totalorder %s99, 0
      %p671 = por %p669, %p670
      %p672 = scmp.ne.s32.totalorder %s660, %s661
      %p673 = scmp.eq.s32.totalorder %s100, 1
      %p674 = por %p672, %p673
      %p676 = scmp.ne.s32.totalorder %s661, %s675
      %p677 = scmp.eq.s32.totalorder %s100, 0
      %p678 = por %p676, %p677
      %s680 = sadd.s32 %s679, 1
      %p683 = scmp.eq.s32.totalorder %s94, 1
      %p684 = scmp.ne.s32.totalorder %s679, %s681
      %p685 = scmp.eq.s32.totalorder %s94, 0
      %p686 = por %p684, %p685
      %p687 = scmp.ne.s32.totalorder %s679, %s681
      %p688 = scmp.eq.s32.totalorder %s99, 1
      %p689 = por %p687, %p688
      %p690 = scmp.ne.s32.totalorder %s681, %s682
      %p691 = scmp.eq.s32.totalorder %s99, 0
      %p692 = por %p690, %p691
      %p693 = scmp.ne.s32.totalorder %s681, %s682
      %p694 = scmp.eq.s32.totalorder %s100, 1
      %p695 = por %p693, %p694
      %p697 = scmp.ne.s32.totalorder %s682, %s696
      %p698 = scmp.eq.s32.totalorder %s100, 0
      %p699 = por %p697, %p698
      %s701 = sadd.s32 %s700, 1
      %p704 = scmp.eq.s32.totalorder %s94, 1
      %p705 = scmp.ne.s32.totalorder %s700, %s702
      %p706 = scmp.eq.s32.totalorder %s94, 0
      %p707 = por %p705, %p706
      %p708 = scmp.ne.s32.totalorder %s700, %s702
      %p709 = scmp.eq.s32.totalorder %s99, 1
      %p710 = por %p708, %p709
      %p711 = scmp.ne.s32.totalorder %s702, %s703
      %p712 = scmp.eq.s32.totalorder %s99, 0
      %p713 = por %p711, %p712
      %p714 = scmp.ne.s32.totalorder %s702, %s703
      %p715 = scmp.eq.s32.totalorder %s100, 1
      %p716 = por %p714, %p715
      %p718 = scmp.ne.s32.totalorder %s703, %s717
      %p719 = scmp.eq.s32.totalorder %s100, 0
      %p720 = por %p718, %p719
      %s722 = sadd.s32 %s721, 1
      %p725 = scmp.eq.s32.totalorder %s94, 1
      %p726 = scmp.ne.s32.totalorder %s721, %s723
      %p727 = scmp.eq.s32.totalorder %s94, 0
      %p728 = por %p726, %p727
      %p729 = scmp.ne.s32.totalorder %s721, %s723
      %p730 = scmp.eq.s32.totalorder %s99, 1
      %p731 = por %p729, %p730
      %p732 = scmp.ne.s32.totalorder %s723, %s724
      %p733 = scmp.eq.s32.totalorder %s99, 0
      %p734 = por %p732, %p733
      %p735 = scmp.ne.s32.totalorder %s723, %s724
      %p736 = scmp.eq.s32.totalorder %s100, 1
      %p737 = por %p735, %p736
      %p739 = scmp.ne.s32.totalorder %s724, %s738
      %p740 = scmp.eq.s32.totalorder %s100, 0
      %p741 = por %p739, %p740
      %s743 = sadd.s32 %s742, 1
      %p746 = scmp.eq.s32.totalorder %s94, 1
      %p747 = scmp.ne.s32.totalorder %s742, %s744
      %p748 = scmp.eq.s32.totalorder %s94, 0
      %p749 = por %p747, %p748
      %p750 = scmp.ne.s32.totalorder %s742, %s744
      %p751 = scmp.eq.s32.totalorder %s99, 1
      %p752 = por %p750, %p751
      %p753 = scmp.ne.s32.totalorder %s744, %s745
      %p754 = scmp.eq.s32.totalorder %s99, 0
      %p755 = por %p753, %p754
      %p756 = scmp.ne.s32.totalorder %s744, %s745
      %p757 = scmp.eq.s32.totalorder %s100, 1
      %p758 = por %p756, %p757
      %p760 = scmp.ne.s32.totalorder %s745, %s759
      %p761 = scmp.eq.s32.totalorder %s100, 0
      %p762 = por %p760, %p761
      %s764 = sadd.s32 %s763, 1
      %p767 = scmp.eq.s32.totalorder %s94, 1
      %p768 = scmp.ne.s32.totalorder %s763, %s765
      %p769 = scmp.eq.s32.totalorder %s94, 0
      %p770 = por %p768, %p769
      %p771 = scmp.ne.s32.totalorder %s763, %s765
      %p772 = scmp.eq.s32.totalorder %s99, 1
      %p773 = por %p771, %p772
      %p774 = scmp.ne.s32.totalorder %s765, %s766
      %p775 = scmp.eq.s32.totalorder %s99, 0
      %p776 = por %p774, %p775
      %p777 = scmp.ne.s32.totalorder %s765, %s766
      %p778 = scmp.eq.s32.totalorder %s100, 1
      %p779 = por %p777, %p778
      %p781 = scmp.ne.s32.totalorder %s766, %s780
      %p782 = scmp.eq.s32.totalorder %s100, 0
      %p783 = por %p781, %p782
      %s785 = sadd.s32 %s784, 1
      %p788 = scmp.eq.s32.totalorder %s94, 1
      %p789 = scmp.ne.s32.totalorder %s784, %s786
      %p790 = scmp.eq.s32.totalorder %s94, 0
      %p791 = por %p789, %p790
      %p792 = scmp.ne.s32.totalorder %s784, %s786
      %p793 = scmp.eq.s32.totalorder %s99, 1
      %p794 = por %p792, %p793
      %p795 = scmp.ne.s32.totalorder %s786, %s787
      %p796 = scmp.eq.s32.totalorder %s99, 0
      %p797 = por %p795, %p796
      %p798 = scmp.ne.s32.totalorder %s786, %s787
      %p799 = scmp.eq.s32.totalorder %s100, 1
      %p800 = por %p798, %p799
      %p802 = scmp.ne.s32.totalorder %s787, %s801
      %p803 = scmp.eq.s32.totalorder %s100, 0
      %p804 = por %p802, %p803
      %s806 = sadd.s32 %s805, 1
      %p809 = scmp.eq.s32.totalorder %s94, 1
      %p810 = scmp.ne.s32.totalorder %s805, %s807
      %p811 = scmp.eq.s32.totalorder %s94, 0
      %p812 = por %p810, %p811
      %p813 = scmp.ne.s32.totalorder %s805, %s807
      %p814 = scmp.eq.s32.totalorder %s99, 1
      %p815 = por %p813, %p814
      %p816 = scmp.ne.s32.totalorder %s807, %s808
      %p817 = scmp.eq.s32.totalorder %s99, 0
      %p818 = por %p816, %p817
      %p819 = scmp.ne.s32.totalorder %s807, %s808
      %p820 = scmp.eq.s32.totalorder %s100, 1
      %p821 = por %p819, %p820
      %p823 = scmp.ne.s32.totalorder %s808, %s822
      %p824 = scmp.eq.s32.totalorder %s100, 0
      %p825 = por %p823, %p824
      %s827 = sadd.s32 %s826, 1
      %p830 = scmp.eq.s32.totalorder %s94, 1
      %p831 = scmp.ne.s32.totalorder %s826, %s828
      %p832 = scmp.eq.s32.totalorder %s94, 0
      %p833 = por %p831, %p832
      %p834 = scmp.ne.s32.totalorder %s826, %s828
      %p835 = scmp.eq.s32.totalorder %s99, 1
      %p836 = por %p834, %p835
      %p837 = scmp.ne.s32.totalorder %s828, %s829
      %p838 = scmp.eq.s32.totalorder %s99, 0
      %p839 = por %p837, %p838
      %p840 = scmp.ne.s32.totalorder %s828, %s829
      %p841 = scmp.eq.s32.totalorder %s100, 1
      %p842 = por %p840, %p841
      %p844 = scmp.ne.s32.totalorder %s829, %s843
      %p845 = scmp.eq.s32.totalorder %s100, 0
      %p846 = por %p844, %p845
      %s848 = sadd.s32 %s847, 1
      %p851 = scmp.eq.s32.totalorder %s94, 1
      %p852 = scmp.ne.s32.totalorder %s847, %s849
      %p853 = scmp.eq.s32.totalorder %s94, 0
      %p854 = por %p852, %p853
      %p855 = scmp.ne.s32.totalorder %s847, %s849
      %p856 = scmp.eq.s32.totalorder %s99, 1
      %p857 = por %p855, %p856
      %p858 = scmp.ne.s32.totalorder %s849, %s850
      %p859 = scmp.eq.s32.totalorder %s99, 0
      %p860 = por %p858, %p859
      %p861 = scmp.ne.s32.totalorder %s849, %s850
      %p862 = scmp.eq.s32.totalorder %s100, 1
      %p863 = por %p861, %p862
      %p865 = scmp.ne.s32.totalorder %s850, %s864
      %p866 = scmp.eq.s32.totalorder %s100, 0
      %p867 = por %p865, %p866
      %s869 = sadd.s32 %s868, 1
      %p872 = scmp.eq.s32.totalorder %s94, 1
      %p873 = scmp.ne.s32.totalorder %s868, %s870
      %p874 = scmp.eq.s32.totalorder %s94, 0
      %p875 = por %p873, %p874
      %p876 = scmp.ne.s32.totalorder %s868, %s870
      %p877 = scmp.eq.s32.totalorder %s99, 1
      %p878 = por %p876, %p877
      %p879 = scmp.ne.s32.totalorder %s870, %s871
      %p880 = scmp.eq.s32.totalorder %s99, 0
      %p881 = por %p879, %p880
      %p882 = scmp.ne.s32.totalorder %s870, %s871
      %p883 = scmp.eq.s32.totalorder %s100, 1
      %p884 = por %p882, %p883
      %p886 = scmp.ne.s32.totalorder %s871, %s885
      %p887 = scmp.eq.s32.totalorder %s100, 0
      %p888 = por %p886, %p887
      %s890 = sadd.s32 %s889, 1
      %p893 = scmp.eq.s32.totalorder %s94, 1
      %p894 = scmp.ne.s32.totalorder %s889, %s891
      %p895 = scmp.eq.s32.totalorder %s94, 0
      %p896 = por %p894, %p895
      %p897 = scmp.ne.s32.totalorder %s889, %s891
      %p898 = scmp.eq.s32.totalorder %s99, 1
      %p899 = por %p897, %p898
      %p900 = scmp.ne.s32.totalorder %s891, %s892
      %p901 = scmp.eq.s32.totalorder %s99, 0
      %p902 = por %p900, %p901
      %p903 = scmp.ne.s32.totalorder %s891, %s892
      %p904 = scmp.eq.s32.totalorder %s100, 1
      %p905 = por %p903, %p904
      %p907 = scmp.ne.s32.totalorder %s892, %s906
      %p908 = scmp.eq.s32.totalorder %s100, 0
      %p909 = por %p907, %p908
      %s911 = sadd.s32 %s910, 1
      %p914 = scmp.eq.s32.totalorder %s94, 1
      %p915 = scmp.ne.s32.totalorder %s910, %s912
      %p916 = scmp.eq.s32.totalorder %s94, 0
      %p917 = por %p915, %p916
      %p918 = scmp.ne.s32.totalorder %s910, %s912
      %p919 = scmp.eq.s32.totalorder %s99, 1
      %p920 = por %p918, %p919
      %p921 = scmp.ne.s32.totalorder %s912, %s913
      %p922 = scmp.eq.s32.totalorder %s99, 0
      %p923 = por %p921, %p922
      %p924 = scmp.ne.s32.totalorder %s912, %s913
      %p925 = scmp.eq.s32.totalorder %s100, 1
      %p926 = por %p924, %p925
      %p928 = scmp.ne.s32.totalorder %s913, %s927
      %p929 = scmp.eq.s32.totalorder %s100, 0
      %p930 = por %p928, %p929
      %s932 = sadd.s32 %s931, 1
      %p935 = scmp.eq.s32.totalorder %s94, 1
      %p936 = scmp.ne.s32.totalorder %s931, %s933
      %p937 = scmp.eq.s32.totalorder %s94, 0
      %p938 = por %p936, %p937
      %p939 = scmp.ne.s32.totalorder %s931, %s933
      %p940 = scmp.eq.s32.totalorder %s99, 1
      %p941 = por %p939, %p940
      %p942 = scmp.ne.s32.totalorder %s933, %s934
      %p943 = scmp.eq.s32.totalorder %s99, 0
      %p944 = por %p942, %p943
      %p945 = scmp.ne.s32.totalorder %s933, %s934
      %p946 = scmp.eq.s32.totalorder %s100, 1
      %p947 = por %p945, %p946
      %p949 = scmp.ne.s32.totalorder %s934, %s948
      %p950 = scmp.eq.s32.totalorder %s100, 0
      %p951 = por %p949, %p950
      %s953 = sadd.s32 %s952, 1
      %p956 = scmp.eq.s32.totalorder %s94, 1
      %p957 = scmp.ne.s32.totalorder %s952, %s954
      %p958 = scmp.eq.s32.totalorder %s94, 0
      %p959 = por %p957, %p958
      %p960 = scmp.ne.s32.totalorder %s952, %s954
      %p961 = scmp.eq.s32.totalorder %s99, 1
      %p962 = por %p960, %p961
      %p963 = scmp.ne.s32.totalorder %s954, %s955
      %p964 = scmp.eq.s32.totalorder %s99, 0
      %p965 = por %p963, %p964
      %p966 = scmp.ne.s32.totalorder %s954, %s955
      %p967 = scmp.eq.s32.totalorder %s100, 1
      %p968 = por %p966, %p967
      %p970 = scmp.ne.s32.totalorder %s955, %s969
      %p971 = scmp.eq.s32.totalorder %s100, 0
      %p972 = por %p970, %p971
      %s974 = sadd.s32 %s973, 1
      %p977 = scmp.eq.s32.totalorder %s94, 1
      %p978 = scmp.ne.s32.totalorder %s973, %s975
      %p979 = scmp.eq.s32.totalorder %s94, 0
      %p980 = por %p978, %p979
      %p981 = scmp.ne.s32.totalorder %s973, %s975
      %p982 = scmp.eq.s32.totalorder %s99, 1
      %p983 = por %p981, %p982
      %p984 = scmp.ne.s32.totalorder %s975, %s976
      %p985 = scmp.eq.s32.totalorder %s99, 0
      %p986 = por %p984, %p985
      %p987 = scmp.ne.s32.totalorder %s975, %s976
      %p988 = scmp.eq.s32.totalorder %s100, 1
      %p989 = por %p987, %p988
      %p991 = scmp.ne.s32.totalorder %s976, %s990
      %p992 = scmp.eq.s32.totalorder %s100, 0
      %p993 = por %p991, %p992
      %s994 = ssub.s32 %s94, %s101
      %p995 = scmp.eq.s32.totalorder %s994, 0
      %s997 = sadd.s32 %s996, 1
      %s998 = scalar_select %p995, %s996, %s997
      %p1001 = pneg %p995
      %p1002 = scmp.eq.s32.totalorder %s94, 1
      %p1003 = por %p1001, %p1002
      %p1004 = scmp.ne.s32.totalorder %s996, %s999
      %p1005 = scmp.eq.s32.totalorder %s94, 0
      %p1006 = por %p1004, %p1005
      %p1007 = scmp.ne.s32.totalorder %s996, %s999
      %p1008 = scmp.eq.s32.totalorder %s99, 1
      %p1009 = por %p1007, %p1008
      %p1010 = scmp.ne.s32.totalorder %s999, %s1000
      %p1011 = scmp.eq.s32.totalorder %s99, 0
      %p1012 = por %p1010, %p1011
      %p1013 = scmp.ne.s32.totalorder %s999, %s1000
      %p1014 = scmp.eq.s32.totalorder %s100, 1
      %p1015 = por %p1013, %p1014
      %p1017 = scmp.ne.s32.totalorder %s1000, %s1016
      %p1018 = scmp.eq.s32.totalorder %s100, 0
      %p1019 = por %p1017, %p1018
      %p1020 = scmp.le.s32.totalorder 1, %s94
      %p1021 = scmp.lt.s32.totalorder %s94, 3
      %p1022 = pnand %p1020, %p1021
      %p1023 = pneg %p1022
      // Predicated region
      $region9: #{transformer_forward.1} parent=5 // pred_check
        _
      $region10: #{transformer_forward.1} parent=5 // pred_check_branch
        %1025 = sbr.rel (%p1022) target = $region12
      $region11: #{transformer_forward.1} parent=5 // pred_region
        %s1026 = ssub.s32 %s94, 1
        // Predicated region
        $region13: #{transformer_forward.1} parent=11 // pred_check
          %p1027 = pneg %p167
        $region14: #{transformer_forward.1} parent=11 // pred_check_branch
          %1029 = sbr.rel (%p1027) target = $region16
        $region15: #{transformer_forward.1} parent=11 // pred_region
          _
        $region16: #{transformer_forward.1} parent=11 // pred_fallthru
          _
        // Predicated region
        $region17: #{transformer_forward.1} parent=11 // pred_check
          %p1030 = pneg %p188
        $region18: #{transformer_forward.1} parent=11 // pred_check_branch
          %1032 = sbr.rel (%p1030) target = $region20
        $region19: #{transformer_forward.1} parent=11 // pred_region
          _
        $region20: #{transformer_forward.1} parent=11 // pred_fallthru
          _
        // Predicated region
        $region21: #{transformer_forward.1} parent=11 // pred_check
          %p1033 = pneg %p209
        $region22: #{transformer_forward.1} parent=11 // pred_check_branch
          %1035 = sbr.rel (%p1033) target = $region24
        $region23: #{transformer_forward.1} parent=11 // pred_region
          _
        $region24: #{transformer_forward.1} parent=11 // pred_fallthru
          _
        // Predicated region
        $region25: #{transformer_forward.1} parent=11 // pred_check
          %p1036 = pneg %p230
        $region26: #{transformer_forward.1} parent=11 // pred_check_branch
          %1038 = sbr.rel (%p1036) target = $region28
        $region27: #{transformer_forward.1} parent=11 // pred_region
          _
        $region28: #{transformer_forward.1} parent=11 // pred_fallthru
          _
        // Predicated region
        $region29: #{transformer_forward.1} parent=11 // pred_check
          %p1039 = pneg %p251
        $region30: #{transformer_forward.1} parent=11 // pred_check_branch
          %1041 = sbr.rel (%p1039) target = $region32
        $region31: #{transformer_forward.1} parent=11 // pred_region
          _
        $region32: #{transformer_forward.1} parent=11 // pred_fallthru
          _
        // Predicated region
        $region33: #{transformer_forward.1} parent=11 // pred_check
          %p1042 = pneg %p272
        $region34: #{transformer_forward.1} parent=11 // pred_check_branch
          %1044 = sbr.rel (%p1042) target = $region36
        $region35: #{transformer_forward.1} parent=11 // pred_region
          _
        $region36: #{transformer_forward.1} parent=11 // pred_fallthru
          _
        // Predicated region
        $region37: #{transformer_forward.1} parent=11 // pred_check
          %p1045 = pneg %p293
        $region38: #{transformer_forward.1} parent=11 // pred_check_branch
          %1047 = sbr.rel (%p1045) target = $region40
        $region39: #{transformer_forward.1} parent=11 // pred_region
          _
        $region40: #{transformer_forward.1} parent=11 // pred_fallthru
          _
        // Predicated region
        $region41: #{transformer_forward.1} parent=11 // pred_check
          %p1048 = pneg %p314
        $region42: #{transformer_forward.1} parent=11 // pred_check_branch
          %1050 = sbr.rel (%p1048) target = $region44
        $region43: #{transformer_forward.1} parent=11 // pred_region
          _
        $region44: #{transformer_forward.1} parent=11 // pred_fallthru
          _
        // Predicated region
        $region45: #{transformer_forward.1} parent=11 // pred_check
          %p1051 = pneg %p335
        $region46: #{transformer_forward.1} parent=11 // pred_check_branch
          %1053 = sbr.rel (%p1051) target = $region48
        $region47: #{transformer_forward.1} parent=11 // pred_region
          _
        $region48: #{transformer_forward.1} parent=11 // pred_fallthru
          _
        // Predicated region
        $region49: #{transformer_forward.1} parent=11 // pred_check
          %p1054 = pneg %p356
        $region50: #{transformer_forward.1} parent=11 // pred_check_branch
          %1056 = sbr.rel (%p1054) target = $region52
        $region51: #{transformer_forward.1} parent=11 // pred_region
          _
        $region52: #{transformer_forward.1} parent=11 // pred_fallthru
          _
        // Predicated region
        $region53: #{transformer_forward.1} parent=11 // pred_check
          %p1057 = pneg %p377
        $region54: #{transformer_forward.1} parent=11 // pred_check_branch
          %1059 = sbr.rel (%p1057) target = $region56
        $region55: #{transformer_forward.1} parent=11 // pred_region
          _
        $region56: #{transformer_forward.1} parent=11 // pred_fallthru
          _
        // Predicated region
        $region57: #{transformer_forward.1} parent=11 // pred_check
          %p1060 = pneg %p398
        $region58: #{transformer_forward.1} parent=11 // pred_check_branch
          %1062 = sbr.rel (%p1060) target = $region60
        $region59: #{transformer_forward.1} parent=11 // pred_region
          _
        $region60: #{transformer_forward.1} parent=11 // pred_fallthru
          _
        // Predicated region
        $region61: #{transformer_forward.1} parent=11 // pred_check
          %p1063 = pneg %p419
        $region62: #{transformer_forward.1} parent=11 // pred_check_branch
          %1065 = sbr.rel (%p1063) target = $region64
        $region63: #{transformer_forward.1} parent=11 // pred_region
          _
        $region64: #{transformer_forward.1} parent=11 // pred_fallthru
          _
        // Predicated region
        $region65: #{transformer_forward.1} parent=11 // pred_check
          %p1066 = pneg %p440
        $region66: #{transformer_forward.1} parent=11 // pred_check_branch
          %1068 = sbr.rel (%p1066) target = $region68
        $region67: #{transformer_forward.1} parent=11 // pred_region
          _
        $region68: #{transformer_forward.1} parent=11 // pred_fallthru
          _
        // Predicated region
        $region69: #{transformer_forward.1} parent=11 // pred_check
          %p1069 = pneg %p461
        $region70: #{transformer_forward.1} parent=11 // pred_check_branch
          %1071 = sbr.rel (%p1069) target = $region72
        $region71: #{transformer_forward.1} parent=11 // pred_region
          _
        $region72: #{transformer_forward.1} parent=11 // pred_fallthru
          _
        // Predicated region
        $region73: #{transformer_forward.1} parent=11 // pred_check
          %p1072 = pneg %p482
        $region74: #{transformer_forward.1} parent=11 // pred_check_branch
          %1074 = sbr.rel (%p1072) target = $region76
        $region75: #{transformer_forward.1} parent=11 // pred_region
          _
        $region76: #{transformer_forward.1} parent=11 // pred_fallthru
          _
        // Predicated region
        $region77: #{transformer_forward.1} parent=11 // pred_check
          %p1075 = pneg %p503
        $region78: #{transformer_forward.1} parent=11 // pred_check_branch
          %1077 = sbr.rel (%p1075) target = $region80
        $region79: #{transformer_forward.1} parent=11 // pred_region
          _
        $region80: #{transformer_forward.1} parent=11 // pred_fallthru
          _
        // Predicated region
        $region81: #{transformer_forward.1} parent=11 // pred_check
          %p1078 = pneg %p524
        $region82: #{transformer_forward.1} parent=11 // pred_check_branch
          %1080 = sbr.rel (%p1078) target = $region84
        $region83: #{transformer_forward.1} parent=11 // pred_region
          _
        $region84: #{transformer_forward.1} parent=11 // pred_fallthru
          _
        // Predicated region
        $region85: #{transformer_forward.1} parent=11 // pred_check
          %p1081 = pneg %p545
        $region86: #{transformer_forward.1} parent=11 // pred_check_branch
          %1083 = sbr.rel (%p1081) target = $region88
        $region87: #{transformer_forward.1} parent=11 // pred_region
          _
        $region88: #{transformer_forward.1} parent=11 // pred_fallthru
          _
        // Predicated region
        $region89: #{transformer_forward.1} parent=11 // pred_check
          %p1084 = pneg %p566
        $region90: #{transformer_forward.1} parent=11 // pred_check_branch
          %1086 = sbr.rel (%p1084) target = $region92
        $region91: #{transformer_forward.1} parent=11 // pred_region
          _
        $region92: #{transformer_forward.1} parent=11 // pred_fallthru
          _
        // Predicated region
        $region93: #{transformer_forward.1} parent=11 // pred_check
          %p1087 = pneg %p587
        $region94: #{transformer_forward.1} parent=11 // pred_check_branch
          %1089 = sbr.rel (%p1087) target = $region96
        $region95: #{transformer_forward.1} parent=11 // pred_region
          _
        $region96: #{transformer_forward.1} parent=11 // pred_fallthru
          _
        // Predicated region
        $region97: #{transformer_forward.1} parent=11 // pred_check
          %p1090 = pneg %p608
        $region98: #{transformer_forward.1} parent=11 // pred_check_branch
          %1092 = sbr.rel (%p1090) target = $region100
        $region99: #{transformer_forward.1} parent=11 // pred_region
          _
        $region100: #{transformer_forward.1} parent=11 // pred_fallthru
          _
        // Predicated region
        $region101: #{transformer_forward.1} parent=11 // pred_check
          %p1093 = pneg %p629
        $region102: #{transformer_forward.1} parent=11 // pred_check_branch
          %1095 = sbr.rel (%p1093) target = $region104
        $region103: #{transformer_forward.1} parent=11 // pred_region
          _
        $region104: #{transformer_forward.1} parent=11 // pred_fallthru
          _
        // Predicated region
        $region105: #{transformer_forward.1} parent=11 // pred_check
          %p1096 = pneg %p650
        $region106: #{transformer_forward.1} parent=11 // pred_check_branch
          %1098 = sbr.rel (%p1096) target = $region108
        $region107: #{transformer_forward.1} parent=11 // pred_region
          _
        $region108: #{transformer_forward.1} parent=11 // pred_fallthru
          _
        // Predicated region
        $region109: #{transformer_forward.1} parent=11 // pred_check
          %p1099 = pneg %p671
        $region110: #{transformer_forward.1} parent=11 // pred_check_branch
          %1101 = sbr.rel (%p1099) target = $region112
        $region111: #{transformer_forward.1} parent=11 // pred_region
          _
        $region112: #{transformer_forward.1} parent=11 // pred_fallthru
          _
        // Predicated region
        $region113: #{transformer_forward.1} parent=11 // pred_check
          %p1102 = pneg %p692
        $region114: #{transformer_forward.1} parent=11 // pred_check_branch
          %1104 = sbr.rel (%p1102) target = $region116
        $region115: #{transformer_forward.1} parent=11 // pred_region
          _
        $region116: #{transformer_forward.1} parent=11 // pred_fallthru
          _
        // Predicated region
        $region117: #{transformer_forward.1} parent=11 // pred_check
          %p1105 = pneg %p713
        $region118: #{transformer_forward.1} parent=11 // pred_check_branch
          %1107 = sbr.rel (%p1105) target = $region120
        $region119: #{transformer_forward.1} parent=11 // pred_region
          _
        $region120: #{transformer_forward.1} parent=11 // pred_fallthru
          _
        // Predicated region
        $region121: #{transformer_forward.1} parent=11 // pred_check
          %p1108 = pneg %p734
        $region122: #{transformer_forward.1} parent=11 // pred_check_branch
          %1110 = sbr.rel (%p1108) target = $region124
        $region123: #{transformer_forward.1} parent=11 // pred_region
          _
        $region124: #{transformer_forward.1} parent=11 // pred_fallthru
          _
        // Predicated region
        $region125: #{transformer_forward.1} parent=11 // pred_check
          %p1111 = pneg %p755
        $region126: #{transformer_forward.1} parent=11 // pred_check_branch
          %1113 = sbr.rel (%p1111) target = $region128
        $region127: #{transformer_forward.1} parent=11 // pred_region
          _
        $region128: #{transformer_forward.1} parent=11 // pred_fallthru
          _
        // Predicated region
        $region129: #{transformer_forward.1} parent=11 // pred_check
          %p1114 = pneg %p776
        $region130: #{transformer_forward.1} parent=11 // pred_check_branch
          %1116 = sbr.rel (%p1114) target = $region132
        $region131: #{transformer_forward.1} parent=11 // pred_region
          _
        $region132: #{transformer_forward.1} parent=11 // pred_fallthru
          _
        // Predicated region
        $region133: #{transformer_forward.1} parent=11 // pred_check
          %p1117 = pneg %p797
        $region134: #{transformer_forward.1} parent=11 // pred_check_branch
          %1119 = sbr.rel (%p1117) target = $region136
        $region135: #{transformer_forward.1} parent=11 // pred_region
          _
        $region136: #{transformer_forward.1} parent=11 // pred_fallthru
          _
        // Predicated region
        $region137: #{transformer_forward.1} parent=11 // pred_check
          %p1120 = pneg %p818
        $region138: #{transformer_forward.1} parent=11 // pred_check_branch
          %1122 = sbr.rel (%p1120) target = $region140
        $region139: #{transformer_forward.1} parent=11 // pred_region
          _
        $region140: #{transformer_forward.1} parent=11 // pred_fallthru
          _
        // Predicated region
        $region141: #{transformer_forward.1} parent=11 // pred_check
          %p1123 = pneg %p839
        $region142: #{transformer_forward.1} parent=11 // pred_check_branch
          %1125 = sbr.rel (%p1123) target = $region144
        $region143: #{transformer_forward.1} parent=11 // pred_region
          _
        $region144: #{transformer_forward.1} parent=11 // pred_fallthru
          _
        // Predicated region
        $region145: #{transformer_forward.1} parent=11 // pred_check
          %p1126 = pneg %p860
        $region146: #{transformer_forward.1} parent=11 // pred_check_branch
          %1128 = sbr.rel (%p1126) target = $region148
        $region147: #{transformer_forward.1} parent=11 // pred_region
          _
        $region148: #{transformer_forward.1} parent=11 // pred_fallthru
          _
        // Predicated region
        $region149: #{transformer_forward.1} parent=11 // pred_check
          %p1129 = pneg %p881
        $region150: #{transformer_forward.1} parent=11 // pred_check_branch
          %1131 = sbr.rel (%p1129) target = $region152
        $region151: #{transformer_forward.1} parent=11 // pred_region
          _
        $region152: #{transformer_forward.1} parent=11 // pred_fallthru
          _
        // Predicated region
        $region153: #{transformer_forward.1} parent=11 // pred_check
          %p1132 = pneg %p902
        $region154: #{transformer_forward.1} parent=11 // pred_check_branch
          %1134 = sbr.rel (%p1132) target = $region156
        $region155: #{transformer_forward.1} parent=11 // pred_region
          _
        $region156: #{transformer_forward.1} parent=11 // pred_fallthru
          _
        // Predicated region
        $region157: #{transformer_forward.1} parent=11 // pred_check
          %p1135 = pneg %p923
        $region158: #{transformer_forward.1} parent=11 // pred_check_branch
          %1137 = sbr.rel (%p1135) target = $region160
        $region159: #{transformer_forward.1} parent=11 // pred_region
          _
        $region160: #{transformer_forward.1} parent=11 // pred_fallthru
          _
        // Predicated region
        $region161: #{transformer_forward.1} parent=11 // pred_check
          %p1138 = pneg %p944
        $region162: #{transformer_forward.1} parent=11 // pred_check_branch
          %1140 = sbr.rel (%p1138) target = $region164
        $region163: #{transformer_forward.1} parent=11 // pred_region
          _
        $region164: #{transformer_forward.1} parent=11 // pred_fallthru
          _
        // Predicated region
        $region165: #{transformer_forward.1} parent=11 // pred_check
          %p1141 = pneg %p965
        $region166: #{transformer_forward.1} parent=11 // pred_check_branch
          %1143 = sbr.rel (%p1141) target = $region168
        $region167: #{transformer_forward.1} parent=11 // pred_region
          _
        $region168: #{transformer_forward.1} parent=11 // pred_fallthru
          _
        // Predicated region
        $region169: #{transformer_forward.1} parent=11 // pred_check
          %p1144 = pneg %p986
        $region170: #{transformer_forward.1} parent=11 // pred_check_branch
          %1146 = sbr.rel (%p1144) target = $region172
        $region171: #{transformer_forward.1} parent=11 // pred_region
          _
        $region172: #{transformer_forward.1} parent=11 // pred_fallthru
          _
      $region12: #{transformer_forward.1} parent=5 // pred_fallthru
        _
      %p1147 = scmp.lt.s32.totalorder %s94, 2
      // Predicated region
      $region173: #{transformer_forward.1} parent=5 // pred_check
        %p1148 = pneg %p1147
      $region174: #{transformer_forward.1} parent=5 // pred_check_branch
        %1150 = sbr.rel (%p1148) target = $region176
      $region175: #{transformer_forward.1} parent=5 // pred_region
        // Predicated region
        $region177: #{transformer_forward.1} parent=175 // pred_check
          %p1151 = pneg %p114
        $region178: #{transformer_forward.1} parent=175 // pred_check_branch
          %1153 = sbr.rel (%p1151) target = $region180
        $region179: #{transformer_forward.1} parent=175 // pred_region
          %p1154 = scmp.lt.s32.totalorder %s94, 1
          %s1155 = scalar_select %p1154, %s94, 1
          %s1156 = smul.addr %s1155, 8
          %s1157 = scalar_lea.vmem %s1, %s1156
        $region180: #{transformer_forward.1} parent=175 // pred_fallthru
          _
        // Predicated region
        $region181: #{transformer_forward.1} parent=175 // pred_check
          %p1158 = pneg %p140
        $region182: #{transformer_forward.1} parent=175 // pred_check_branch
          %1160 = sbr.rel (%p1158) target = $region184
        $region183: #{transformer_forward.1} parent=175 // pred_region
          %p1161 = scmp.lt.s32.totalorder %s94, 1
          %s1162 = scalar_select %p1161, %s94, 1
          %s1163 = smul.addr %s1162, 8
          %s1164 = scalar_lea.vmem %s3, %s1163
        $region184: #{transformer_forward.1} parent=175 // pred_fallthru
          _
      $region176: #{transformer_forward.1} parent=5 // pred_fallthru
        _
      %p1165 = scmp.le.s32.totalorder 1, %s94
      %p1166 = scmp.lt.s32.totalorder %s94, 3
      %p1167 = pnand %p1165, %p1166
      %p1168 = pneg %p1167
      // Predicated region
      $region185: #{transformer_forward.1} parent=5 // pred_check
        _
      $region186: #{transformer_forward.1} parent=5 // pred_check_branch
        %1170 = sbr.rel (%p1167) target = $region188
      $region187: #{transformer_forward.1} parent=5 // pred_region
        %s1171 = ssub.s32 %s94, 1
        %p1172 = scmp.lt.s32.totalorder %s99, 1
        %s1173 = scalar_select %p1172, %s99, 1
        %s1174 = smul.addr %s1173, 8
        %s1175 = scalar_lea.vmem %s1, %s1174
        %p1176 = pneg %p120
        %p1177 = pneg %p117
        %p1178 = scmp.lt.s32.totalorder %s99, 1
        %s1179 = scalar_select %p1178, %s99, 1
        %s1180 = smul.addr %s1179, 8
        %s1181 = scalar_lea.vmem %s3, %s1180
        %p1182 = pneg %p146
        %p1183 = pneg %p143
        %p1184 = pneg %p167
        %p1185 = pneg %p164
        %p1186 = pneg %p188
        %p1187 = pneg %p185
        %p1188 = pneg %p209
        %p1189 = pneg %p206
        %p1190 = pneg %p230
        %p1191 = pneg %p227
        %p1192 = pneg %p251
        %p1193 = pneg %p248
        %p1194 = pneg %p272
        %p1195 = pneg %p269
        %p1196 = pneg %p293
        %p1197 = pneg %p290
        %p1198 = pneg %p314
        %p1199 = pneg %p311
        %p1200 = pneg %p335
        %p1201 = pneg %p332
        %p1202 = pneg %p356
        %p1203 = pneg %p353
        %p1204 = pneg %p377
        %p1205 = pneg %p374
        %p1206 = pneg %p398
        %p1207 = pneg %p395
        %p1208 = pneg %p419
        %p1209 = pneg %p416
        %p1210 = pneg %p440
        %p1211 = pneg %p437
        %p1212 = pneg %p461
        %p1213 = pneg %p458
        %p1214 = pneg %p482
        %p1215 = pneg %p479
        %p1216 = pneg %p503
        %p1217 = pneg %p500
        %p1218 = pneg %p524
        %p1219 = pneg %p521
        %p1220 = pneg %p545
        %p1221 = pneg %p542
        %p1222 = pneg %p566
        %p1223 = pneg %p563
        %p1224 = pneg %p587
        %p1225 = pneg %p584
        %p1226 = pneg %p608
        %p1227 = pneg %p605
        %p1228 = pneg %p629
        %p1229 = pneg %p626
        %p1230 = pneg %p650
        %p1231 = pneg %p647
        %p1232 = pneg %p671
        %p1233 = pneg %p668
        %p1234 = pneg %p692
        %p1235 = pneg %p689
        %p1236 = pneg %p713
        %p1237 = pneg %p710
        %p1238 = pneg %p734
        %p1239 = pneg %p731
        %p1240 = pneg %p755
        %p1241 = pneg %p752
        %p1242 = pneg %p776
        %p1243 = pneg %p773
        %p1244 = pneg %p797
        %p1245 = pneg %p794
        %p1246 = pneg %p818
        %p1247 = pneg %p815
        %p1248 = pneg %p839
        %p1249 = pneg %p836
        %p1250 = pneg %p860
        %p1251 = pneg %p857
        %p1252 = pneg %p881
        %p1253 = pneg %p878
        %p1254 = pneg %p902
        %p1255 = pneg %p899
        %p1256 = pneg %p923
        %p1257 = pneg %p920
        %p1258 = pneg %p944
        %p1259 = pneg %p941
        %p1260 = pneg %p965
        %p1261 = pneg %p962
        %p1262 = pneg %p986
        %p1263 = pneg %p983
        %p1264 = pneg %p1012
        %p1265 = pneg %p1009
        %s1266 = sand.u32 %s999, 1
        %s1267 = scalar_lea.sflag [#allocation3], %s1266
        %s1268 = sand.u32 %s999, 1
        %s1269 = smul.addr %s1268, 8
        %s1270 = scalar_lea.vmem [#allocation2], %s1269
        %p1271 = scmp.lt.s32.totalorder %s99, 1
        %s1272 = scalar_select %p1271, %s99, 1
        %s1273 = smul.addr %s1272, 8
        %s1274 = scalar_lea.vmem %s1, %s1273
        %p1275 = scmp.lt.s32.totalorder %s99, 1
        %s1276 = scalar_select %p1275, %s99, 1
        %s1277 = smul.addr %s1276, 8
        %s1278 = scalar_lea.vmem %s3, %s1277
        %v1280 = vld [vmem:[%s5] sm:$0x1]
        %v1281 = vld [vmem:[%s7] sm:$0x1]
        %v1282 = vld [vmem:[%s9] sm:$0xf]
        %v1283 = vld [vmem:[%s9 + $0x4] sm:$0xf]
        %v1284 = vld [vmem:[%s9 + $0x8] sm:$0xf]
        %v1285 = vld [vmem:[%s9 + $0xc] sm:$0xf]
        %v1286 = vld [vmem:[%s11] sm:$0x1]
        %v1287 = vld [vmem:[%s13] sm:$0xf]
        %v1288 = vld [vmem:[%s13 + $0x4] sm:$0xf]
        %v1289 = vld [vmem:[%s13 + $0x8] sm:$0xf]
        %v1290 = vld [vmem:[%s13 + $0xc] sm:$0xf]
        %v1291 = vld [vmem:[%s15] sm:$0x1]
        %v1292 = vld [vmem:[%s17] sm:$0x1]
        %v1293 = vld [vmem:[%s19] sm:$0x1]
        %v1294 = vld [vmem:[%s21] sm:$0xf]
        %v1295 = vld [vmem:[%s21 + $0x4] sm:$0xf]
        %v1296 = vld [vmem:[%s21 + $0x8] sm:$0xf]
        %v1297 = vld [vmem:[%s21 + $0xc] sm:$0xf]
        %v1298 = vld [vmem:[%s23] sm:$0x1]
        %v1299 = vld [vmem:[%s25] sm:$0xf]
        %v1300 = vld [vmem:[%s25 + $0x4] sm:$0xf]
        %v1301 = vld [vmem:[%s25 + $0x8] sm:$0xf]
        %v1302 = vld [vmem:[%s25 + $0xc] sm:$0xf]
        %v1303 = vld [vmem:[%s25 + $0x10] sm:$0xf]
        %v1304 = vld [vmem:[%s25 + $0x14] sm:$0xf]
        %v1305 = vld [vmem:[%s25 + $0x18] sm:$0xf]
        %v1306 = vld [vmem:[%s25 + $0x1c] sm:$0xf]
        %v1307 = vld [vmem:[%s27] sm:$0x1]
        %v1308 = vld [vmem:[%s29] sm:$0x1]
        %v1309 = vld [vmem:[%s31] sm:$0x1]
        %v1310 = vld [vmem:[%s33] sm:$0x1]
        %v1311 = vld [vmem:[%s35] sm:$0x1]
        %v1312 = vld [vmem:[%s37] sm:$0xf]
        %v1313 = vld [vmem:[%s37 + $0x4] sm:$0xf]
        %v1314 = vld [vmem:[%s37 + $0x8] sm:$0xf]
        %v1315 = vld [vmem:[%s37 + $0xc] sm:$0xf]
        %v1316 = vld [vmem:[%s39] sm:$0x1]
        %v1317 = vld [vmem:[%s41] sm:$0xf]
        %v1318 = vld [vmem:[%s41 + $0x4] sm:$0xf]
        %v1319 = vld [vmem:[%s41 + $0x8] sm:$0xf]
        %v1320 = vld [vmem:[%s41 + $0xc] sm:$0xf]
        %v1321 = vld [vmem:[%s43] sm:$0x1]
        %v1322 = vld [vmem:[%s45] sm:$0x1]
        %v1323 = vld [vmem:[%s47] sm:$0x1]
        %v1324 = vld [vmem:[%s49] sm:$0x1]
        %v1325 = vld [vmem:[%s51] sm:$0x1]
        %v1326 = vld [vmem:[%s53] sm:$0xf]
        %v1327 = vld [vmem:[%s53 + $0x4] sm:$0xf]
        %v1328 = vld [vmem:[%s53 + $0x8] sm:$0xf]
        %v1329 = vld [vmem:[%s53 + $0xc] sm:$0xf]
        %v1330 = vld [vmem:[%s55] sm:$0x1]
        %v1331 = vld [vmem:[%s57] sm:$0xf]
        %v1332 = vld [vmem:[%s57 + $0x4] sm:$0xf]
        %v1333 = vld [vmem:[%s57 + $0x8] sm:$0xf]
        %v1334 = vld [vmem:[%s57 + $0xc] sm:$0xf]
        %v1335 = vld [vmem:[%s59] sm:$0x1]
        %v1336 = vld [vmem:[%s61] sm:$0xf]
        %v1337 = vld [vmem:[%s61 + $0x4] sm:$0xf]
        %v1338 = vld [vmem:[%s61 + $0x8] sm:$0xf]
        %v1339 = vld [vmem:[%s61 + $0xc] sm:$0xf]
        %v1340 = vld [vmem:[%s63] sm:$0x1]
        %v1341 = vld [vmem:[%s65] sm:$0x1]
        %v1342 = vld [vmem:[%s67] sm:$0x1]
        %v1343 = vld [vmem:[%s69] sm:$0xf]
        %v1344 = vld [vmem:[%s69 + $0x4] sm:$0xf]
        %v1345 = vld [vmem:[%s69 + $0x8] sm:$0xf]
        %v1346 = vld [vmem:[%s69 + $0xc] sm:$0xf]
        %v1347 = vld [vmem:[%s71] sm:$0x1]
        %v1348 = vld [vmem:[%s73] sm:$0xf]
        %v1349 = vld [vmem:[%s73 + $0x4] sm:$0xf]
        %v1350 = vld [vmem:[%s73 + $0x8] sm:$0xf]
        %v1351 = vld [vmem:[%s73 + $0xc] sm:$0xf]
        %v1352 = vld [vmem:[%s73 + $0x10] sm:$0xf]
        %v1353 = vld [vmem:[%s73 + $0x14] sm:$0xf]
        %v1354 = vld [vmem:[%s73 + $0x18] sm:$0xf]
        %v1355 = vld [vmem:[%s73 + $0x1c] sm:$0xf]
        %v1356 = vld [vmem:[%s75] sm:$0x1]
        %v1357 = vld [vmem:[%s77] sm:$0x1]
        %v1358 = vld [vmem:[%s79] sm:$0x1]
        %v1359 = vld [vmem:[%s81] sm:$0xf]
        %v1360 = vld [vmem:[%s81 + $0x4] sm:$0xf]
        %v1361 = vld [vmem:[%s81 + $0x8] sm:$0xf]
        %v1362 = vld [vmem:[%s81 + $0xc] sm:$0xf]
        %v1363 = vld [vmem:[%s83] sm:$0x1]
        %v1364 = vld [vmem:[%s1274] sm:$0xff]
        %v1365 = vld [vmem:[%s1278] sm:$0xff]
        %vm1366 = vcmask 261120
        %v1367 = vsel %vm1366, %v1364, 0.0
        %1368 = vadd.xlane.f32.xlu0 %v1367
        %v1369 = vpop.xlane.xlu0 %1368
        %v1370 = vrcp.pop 32.0
        %v1371 = vmul.f32 32.0, %v1370
        %v1372 = vsub.f32 1.0, %v1371
        %v1373 = vmul.f32 %v1370, %v1372
        %v1374 = vadd.f32 %v1370, %v1373
        %vm1375 = vweird.f32 %v1370
        %v1376 = vsel %vm1375, %v1370, %v1374
        %v1377 = vmul.f32 %v1369, %v1376
        %v1378 = vsub.f32 %v1364, %v1377
        %v1379 = vmul.f32 %v1378, %v1378
        %v1380 = vsel %vm1366, %v1379, 0.0
        %1381 = vadd.xlane.f32.xlu0 %v1380
        %v1382 = vpop.xlane.xlu0 %1381
        %v1383 = vmul.f32 %v1382, %v1376
        %v1384 = vadd.f32 %v1383, 1e-05
        %v1385 = vrsqrt.pop %v1384
        %v1386 = vmul.f32 %v1385, %v1384
        %v1387 = vmul.f32 %v1386, %v1385
        %v1388 = vmul.f32 0.5, %v1387
        %v1389 = vsub.f32 1.5, %v1388
        %v1390 = vmul.f32 %v1385, %v1389
        %vm1391 = vweird.f32 %v1384
        %vm1392 = vweird.f32 %v1385
        %vm1393 = vmor %vm1391, %vm1392
        %v1394 = vsel %vm1393, %v1385, %v1390
        %v1395 = vmul.f32 %v1378, %v1394
        %v1397 = vperm.slane %v1280, 0
        %v1399 = vmul.f32 %v1395, %v1397
        %v1401 = vperm.slane %v1281, 0
        %v1403 = vadd.f32 %v1399, %v1401
        %v1404 = vpack.c.bf16 %v1403, %v1403
        %v1406 = vperm.slane %v1286, 0
        %v1412 = vunpack.c.l.b16 %v1282
        %v1413 = vunpack.c.l.b16 %v1283
        %v1414 = vunpack.c.l.b16 %v1284
        %v1415 = vunpack.c.l.b16 %v1285
        %v1416 = vpack.c.b16 %v1413, %v1412
        %v1417 = vpack.c.b16 %v1415, %v1414
        %v1421 = vsel %vm1366, %v1404, 0
        %1423 = vmatpush.bf16.msra.mxu0 0
        %1424 = vmatpush.bf16.msra.mxu0 0
        %1425 = vmatpush.bf16.msra.mxu0 0
        %1426 = vmatpush.bf16.msra.mxu0 0
        %1427 = vmatpush.bf16.msra.mxu0 0
        %1428 = vmatpush.bf16.msra.mxu0 0
        %1429 = vmatpush.bf16.msra.mxu0 %v1417
        %1430 = vmatpush.bf16.msra.mxu0 %v1416
        %1431 = vmatmul.bf16.gmra.mxu0 %v1421
        %v1432 = vpop.f32.mrf.mxu0
        %v1433 = vadd.f32 %v1406, %v1432
        %v1434 = vpop.f32.mrf.mxu0
        %1435 = vdwg.mxu0
        %v1436 = vpack.c.bf16 %v1433, %v1433
        %1438 = vrot.lane.b32.xlu0 %v1436, 96
        %v1439 = vpop.permute.xlu0 %1438
        %vm1440 = vcmask 64512
        %v1442 = vsel %vm1440, %v1436, 0
        %v1445 = vsel %vm1440, %v1439, 0
        %1447 = vmatpush.bf16.xpose.msra.mxu0 0
        %1448 = vmatpush.bf16.xpose.msra.mxu0 0
        %1449 = vmatpush.bf16.xpose.msra.mxu0 0
        %1450 = vmatpush.bf16.xpose.msra.mxu0 0
        %1451 = vmatpush.bf16.xpose.msra.mxu0 0
        %1452 = vmatpush.bf16.xpose.msra.mxu0 0
        %1453 = vmatpush.bf16.xpose.msra.mxu0 0
        %1454 = vmatpush.bf16.xpose.msra.mxu0 %v1445
        %1455 = vmatmul.bf16.gmra.mxu0 %v1442
        %v1456 = vpop.f32.mrf.mxu0
        %v1457 = vadd.f32 0.0, %v1456
        %v1458 = vpop.f32.mrf.mxu0
        %1459 = vdwg.mxu0
        %v1460 = vmul.f32 %v1457, 0.35355338
        %v1461 = vsel %vm1440, %v1460, -inf
        %1462 = vmax.xlane.f32.xlu0 %v1461
        %v1463 = vpop.xlane.xlu0 %1462
        %v1464 = vsub.f32 %v1460, %v1463
        %v1465 = vmul.f32 %v1464, 1.442695
        %v1466 = vpow.pop %v1465
        %v1467 = vsel %vm1440, %v1466, 0.0
        %1468 = vadd.xlane.f32.xlu0 %v1467
        %v1469 = vpop.xlane.xlu0 %1468
        %v1470 = vrcp.pop %v1469
        %v1471 = vmul.f32 %v1469, %v1470
        %v1472 = vsub.f32 1.0, %v1471
        %v1473 = vmul.f32 %v1470, %v1472
        %v1474 = vadd.f32 %v1470, %v1473
        %vm1475 = vweird.f32 %v1469
        %vm1476 = vweird.f32 %v1470
        %vm1477 = vmor %vm1475, %vm1476
        %v1478 = vsel %vm1477, %v1470, %v1474
        %v1479 = vand.u32 2147483647, %v1469
        %vm1480 = vcmp.eq.f32.partialorder %v1479, 8.507059e+37
        %v1481 = vand.u32 %v1469, 2147483648
        %v1482 = vor.u32 1.1754944e-38, %v1481
        %v1483 = vsel %vm1480, %v1482, %v1478
        %v1484 = vmul.f32 %v1466, %v1483
        %v1485 = vpack.c.bf16 %v1484, %v1484
        %1486 = vrot.lane.b32.xlu0 %v1436, 64
        %v1487 = vpop.permute.xlu0 %1486
        %v1489 = vsel %vm1440, %v1485, 0
        %vm1491 = vcmask 1043456
        %v1493 = vsel %vm1491, %v1487, 0
        %1495 = vmatpush.bf16.msra.mxu0 0
        %1496 = vmatpush.bf16.msra.mxu0 0
        %1497 = vmatpush.bf16.msra.mxu0 0
        %1498 = vmatpush.bf16.msra.mxu0 0
        %1499 = vmatpush.bf16.msra.mxu0 0
        %1500 = vmatpush.bf16.msra.mxu0 0
        %1501 = vmatpush.bf16.msra.mxu0 0
        %1502 = vmatpush.bf16.msra.mxu0 %v1493
        %1503 = vmatmul.bf16.gmra.mxu0 %v1489
        %v1504 = vpop.f32.mrf.mxu0
        %v1505 = vadd.f32 0.0, %v1504
        %v1506 = vpop.f32.mrf.mxu0
        %1507 = vdwg.mxu0
        %1508 = vrot.lane.b32.xlu0 %v1436, 120
        %v1509 = vpop.permute.xlu0 %1508
        %1510 = vrot.lane.b32.xlu0 %v1436, 88
        %v1511 = vpop.permute.xlu0 %1510
        %v1513 = vsel %vm1440, %v1509, 0
        %v1516 = vsel %vm1440, %v1511, 0
        %1518 = vmatpush.bf16.xpose.msra.mxu0 0
        %1519 = vmatpush.bf16.xpose.msra.mxu0 0
        %1520 = vmatpush.bf16.xpose.msra.mxu0 0
        %1521 = vmatpush.bf16.xpose.msra.mxu0 0
        %1522 = vmatpush.bf16.xpose.msra.mxu0 0
        %1523 = vmatpush.bf16.xpose.msra.mxu0 0
        %1524 = vmatpush.bf16.xpose.msra.mxu0 0
        %1525 = vmatpush.bf16.xpose.msra.mxu0 %v1516
        %1526 = vmatmul.bf16.gmra.mxu0 %v1513
        %v1527 = vpop.f32.mrf.mxu0
        %v1528 = vadd.f32 0.0, %v1527
        %v1529 = vpop.f32.mrf.mxu0
        %1530 = vdwg.mxu0
        %v1531 = vmul.f32 %v1528, 0.35355338
        %v1532 = vsel %vm1440, %v1531, -inf
        %1533 = vmax.xlane.f32.xlu0 %v1532
        %v1534 = vpop.xlane.xlu0 %1533
        %v1535 = vsub.f32 %v1531, %v1534
        %v1536 = vmul.f32 %v1535, 1.442695
        %v1537 = vpow.pop %v1536
        %v1538 = vsel %vm1440, %v1537, 0.0
        %1539 = vadd.xlane.f32.xlu0 %v1538
        %v1540 = vpop.xlane.xlu0 %1539
        %v1541 = vrcp.pop %v1540
        %v1542 = vmul.f32 %v1540, %v1541
        %v1543 = vsub.f32 1.0, %v1542
        %v1544 = vmul.f32 %v1541, %v1543
        %v1545 = vadd.f32 %v1541, %v1544
        %vm1546 = vweird.f32 %v1540
        %vm1547 = vweird.f32 %v1541
        %vm1548 = vmor %vm1546, %vm1547
        %v1549 = vsel %vm1548, %v1541, %v1545
        %v1550 = vand.u32 2147483647, %v1540
        %vm1551 = vcmp.eq.f32.partialorder %v1550, 8.507059e+37
        %v1552 = vand.u32 %v1540, 2147483648
        %v1553 = vor.u32 1.1754944e-38, %v1552
        %v1554 = vsel %vm1551, %v1553, %v1549
        %v1555 = vmul.f32 %v1537, %v1554
        %v1556 = vpack.c.bf16 %v1555, %v1555
        %1557 = vrot.lane.b32.xlu0 %v1436, 56
        %v1558 = vpop.permute.xlu0 %1557
        %v1560 = vsel %vm1440, %v1556, 0
        %v1563 = vsel %vm1491, %v1558, 0
        %1565 = vmatpush.bf16.msra.mxu0 0
        %1566 = vmatpush.bf16.msra.mxu0 0
        %1567 = vmatpush.bf16.msra.mxu0 0
        %1568 = vmatpush.bf16.msra.mxu0 0
        %1569 = vmatpush.bf16.msra.mxu0 0
        %1570 = vmatpush.bf16.msra.mxu0 0
        %1571 = vmatpush.bf16.msra.mxu0 0
        %1572 = vmatpush.bf16.msra.mxu0 %v1563
        %1573 = vmatmul.bf16.gmra.mxu0 %v1560
        %v1574 = vpop.f32.mrf.mxu0
        %v1575 = vadd.f32 0.0, %v1574
        %v1576 = vpop.f32.mrf.mxu0
        %1577 = vdwg.mxu0
        %1578 = vrot.lane.b32.xlu0 %v1436, 112
        %v1579 = vpop.permute.xlu0 %1578
        %1580 = vrot.lane.b32.xlu0 %v1436, 80
        %v1581 = vpop.permute.xlu0 %1580
        %v1583 = vsel %vm1440, %v1579, 0
        %v1586 = vsel %vm1440, %v1581, 0
        %1588 = vmatpush.bf16.xpose.msra.mxu0 0
        %1589 = vmatpush.bf16.xpose.msra.mxu0 0
        %1590 = vmatpush.bf16.xpose.msra.mxu0 0
        %1591 = vmatpush.bf16.xpose.msra.mxu0 0
        %1592 = vmatpush.bf16.xpose.msra.mxu0 0
        %1593 = vmatpush.bf16.xpose.msra.mxu0 0
        %1594 = vmatpush.bf16.xpose.msra.mxu0 0
        %1595 = vmatpush.bf16.xpose.msra.mxu0 %v1586
        %1596 = vmatmul.bf16.gmra.mxu0 %v1583
        %v1597 = vpop.f32.mrf.mxu0
        %v1598 = vadd.f32 0.0, %v1597
        %v1599 = vpop.f32.mrf.mxu0
        %1600 = vdwg.mxu0
        %v1601 = vmul.f32 %v1598, 0.35355338
        %v1602 = vsel %vm1440, %v1601, -inf
        %1603 = vmax.xlane.f32.xlu0 %v1602
        %v1604 = vpop.xlane.xlu0 %1603
        %v1605 = vsub.f32 %v1601, %v1604
        %v1606 = vmul.f32 %v1605, 1.442695
        %v1607 = vpow.pop %v1606
        %v1608 = vsel %vm1440, %v1607, 0.0
        %1609 = vadd.xlane.f32.xlu0 %v1608
        %v1610 = vpop.xlane.xlu0 %1609
        %v1611 = vrcp.pop %v1610
        %v1612 = vmul.f32 %v1610, %v1611
        %v1613 = vsub.f32 1.0, %v1612
        %v1614 = vmul.f32 %v1611, %v1613
        %v1615 = vadd.f32 %v1611, %v1614
        %vm1616 = vweird.f32 %v1610
        %vm1617 = vweird.f32 %v1611
        %vm1618 = vmor %vm1616, %vm1617
        %v1619 = vsel %vm1618, %v1611, %v1615
        %v1620 = vand.u32 2147483647, %v1610
        %vm1621 = vcmp.eq.f32.partialorder %v1620, 8.507059e+37
        %v1622 = vand.u32 %v1610, 2147483648
        %v1623 = vor.u32 1.1754944e-38, %v1622
        %v1624 = vsel %vm1621, %v1623, %v1619
        %v1625 = vmul.f32 %v1607, %v1624
        %v1626 = vpack.c.bf16 %v1625, %v1625
        %1627 = vrot.lane.b32.xlu0 %v1436, 48
        %v1628 = vpop.permute.xlu0 %1627
        %v1630 = vsel %vm1440, %v1626, 0
        %v1633 = vsel %vm1491, %v1628, 0
        %1635 = vmatpush.bf16.msra.mxu0 0
        %1636 = vmatpush.bf16.msra.mxu0 0
        %1637 = vmatpush.bf16.msra.mxu0 0
        %1638 = vmatpush.bf16.msra.mxu0 0
        %1639 = vmatpush.bf16.msra.mxu0 0
        %1640 = vmatpush.bf16.msra.mxu0 0
        %1641 = vmatpush.bf16.msra.mxu0 0
        %1642 = vmatpush.bf16.msra.mxu0 %v1633
        %1643 = vmatmul.bf16.gmra.mxu0 %v1630
        %v1644 = vpop.f32.mrf.mxu0
        %v1645 = vadd.f32 0.0, %v1644
        %v1646 = vpop.f32.mrf.mxu0
        %1647 = vdwg.mxu0
        %1648 = vrot.lane.b32.xlu0 %v1436, 104
        %v1649 = vpop.permute.xlu0 %1648
        %1650 = vrot.lane.b32.xlu0 %v1436, 72
        %v1651 = vpop.permute.xlu0 %1650
        %v1653 = vsel %vm1440, %v1649, 0
        %v1656 = vsel %vm1440, %v1651, 0
        %1658 = vmatpush.bf16.xpose.msra.mxu0 0
        %1659 = vmatpush.bf16.xpose.msra.mxu0 0
        %1660 = vmatpush.bf16.xpose.msra.mxu0 0
        %1661 = vmatpush.bf16.xpose.msra.mxu0 0
        %1662 = vmatpush.bf16.xpose.msra.mxu0 0
        %1663 = vmatpush.bf16.xpose.msra.mxu0 0
        %1664 = vmatpush.bf16.xpose.msra.mxu0 0
        %1665 = vmatpush.bf16.xpose.msra.mxu0 %v1656
        %1666 = vmatmul.bf16.gmra.mxu0 %v1653
        %v1667 = vpop.f32.mrf.mxu0
        %v1668 = vadd.f32 0.0, %v1667
        %v1669 = vpop.f32.mrf.mxu0
        %1670 = vdwg.mxu0
        %v1671 = vmul.f32 %v1668, 0.35355338
        %v1672 = vsel %vm1440, %v1671, -inf
        %1673 = vmax.xlane.f32.xlu0 %v1672
        %v1674 = vpop.xlane.xlu0 %1673
        %v1675 = vsub.f32 %v1671, %v1674
        %v1676 = vmul.f32 %v1675, 1.442695
        %v1677 = vpow.pop %v1676
        %v1678 = vsel %vm1440, %v1677, 0.0
        %1679 = vadd.xlane.f32.xlu0 %v1678
        %v1680 = vpop.xlane.xlu0 %1679
        %v1681 = vrcp.pop %v1680
        %v1682 = vmul.f32 %v1680, %v1681
        %v1683 = vsub.f32 1.0, %v1682
        %v1684 = vmul.f32 %v1681, %v1683
        %v1685 = vadd.f32 %v1681, %v1684
        %vm1686 = vweird.f32 %v1680
        %vm1687 = vweird.f32 %v1681
        %vm1688 = vmor %vm1686, %vm1687
        %v1689 = vsel %vm1688, %v1681, %v1685
        %v1690 = vand.u32 2147483647, %v1680
        %vm1691 = vcmp.eq.f32.partialorder %v1690, 8.507059e+37
        %v1692 = vand.u32 %v1680, 2147483648
        %v1693 = vor.u32 1.1754944e-38, %v1692
        %v1694 = vsel %vm1691, %v1693, %v1689
        %v1695 = vmul.f32 %v1677, %v1694
        %v1696 = vpack.c.bf16 %v1695, %v1695
        %1697 = vrot.lane.b32.xlu0 %v1436, 40
        %v1698 = vpop.permute.xlu0 %1697
        %v1700 = vsel %vm1440, %v1696, 0
        %v1703 = vsel %vm1491, %v1698, 0
        %1705 = vmatpush.bf16.msra.mxu0 0
        %1706 = vmatpush.bf16.msra.mxu0 0
        %1707 = vmatpush.bf16.msra.mxu0 0
        %1708 = vmatpush.bf16.msra.mxu0 0
        %1709 = vmatpush.bf16.msra.mxu0 0
        %1710 = vmatpush.bf16.msra.mxu0 0
        %1711 = vmatpush.bf16.msra.mxu0 0
        %1712 = vmatpush.bf16.msra.mxu0 %v1703
        %1713 = vmatmul.bf16.gmra.mxu0 %v1700
        %v1714 = vpop.f32.mrf.mxu0
        %v1715 = vadd.f32 0.0, %v1714
        %v1716 = vpop.f32.mrf.mxu0
        %1717 = vdwg.mxu0
        %1719 = vrot.lane.b32.xlu0 %v1575, 8
        %v1720 = vpop.permute.xlu0 %1719
        %1723 = vrot.lane.b32.xlu0 %v1645, 16
        %v1724 = vpop.permute.xlu0 %1723
        %1727 = vrot.lane.b32.xlu0 %v1715, 24
        %v1728 = vpop.permute.xlu0 %1727
        %v1730 = vsel %vm1440, %v1505, %v1720
        %vm1731 = vcmask 130048
        %v1732 = vsel %vm1731, %v1730, %v1724
        %vm1733 = vcmask 195584
        %v1734 = vsel %vm1733, %v1732, %v1728
        %v1735 = vpack.c.bf16 %v1734, %v1734
        %v1737 = vperm.slane %v1291, 0
        %v1743 = vunpack.c.l.b16 %v1287
        %v1744 = vunpack.c.l.b16 %v1288
        %v1745 = vunpack.c.l.b16 %v1289
        %v1746 = vunpack.c.l.b16 %v1290
        %v1747 = vpack.c.b16 %v1744, %v1743
        %v1748 = vpack.c.b16 %v1746, %v1745
        %v1752 = vsel %vm1366, %v1735, 0
        %1754 = vmatpush.bf16.msra.mxu0 0
        %1755 = vmatpush.bf16.msra.mxu0 0
        %1756 = vmatpush.bf16.msra.mxu0 0
        %1757 = vmatpush.bf16.msra.mxu0 0
        %1758 = vmatpush.bf16.msra.mxu0 0
        %1759 = vmatpush.bf16.msra.mxu0 0
        %1760 = vmatpush.bf16.msra.mxu0 %v1748
        %1761 = vmatpush.bf16.msra.mxu0 %v1747
        %1762 = vmatmul.bf16.gmra.mxu0 %v1752
        %v1763 = vpop.f32.mrf.mxu0
        %v1764 = vadd.f32 %v1737, %v1763
        %v1765 = vpop.f32.mrf.mxu0
        %1766 = vdwg.mxu0
        %v1767 = vadd.f32 %v1364, %v1764
        %v1768 = vsel %vm1366, %v1767, 0.0
        %1769 = vadd.xlane.f32.xlu0 %v1768
        %v1770 = vpop.xlane.xlu0 %1769
        %v1771 = vmul.f32 %v1770, %v1376
        %v1772 = vsub.f32 %v1767, %v1771
        %v1773 = vmul.f32 %v1772, %v1772
        %v1774 = vsel %vm1366, %v1773, 0.0
        %1775 = vadd.xlane.f32.xlu0 %v1774
        %v1776 = vpop.xlane.xlu0 %1775
        %v1777 = vmul.f32 %v1776, %v1376
        %v1778 = vadd.f32 %v1777, 1e-05
        %v1779 = vrsqrt.pop %v1778
        %v1780 = vmul.f32 %v1779, %v1778
        %v1781 = vmul.f32 %v1780, %v1779
        %v1782 = vmul.f32 0.5, %v1781
        %v1783 = vsub.f32 1.5, %v1782
        %v1784 = vmul.f32 %v1779, %v1783
        %vm1785 = vweird.f32 %v1778
        %vm1786 = vweird.f32 %v1779
        %vm1787 = vmor %vm1785, %vm1786
        %v1788 = vsel %vm1787, %v1779, %v1784
        %v1789 = vmul.f32 %v1772, %v1788
        %v1791 = vperm.slane %v1292, 0
        %v1793 = vmul.f32 %v1789, %v1791
        %v1795 = vperm.slane %v1293, 0
        %v1797 = vadd.f32 %v1793, %v1795
        %v1798 = vpack.c.bf16 %v1797, %v1797
        %v1800 = vperm.slane %v1298, 0
        %v1806 = vunpack.c.l.b16 %v1294
        %v1807 = vunpack.c.l.b16 %v1295
        %v1808 = vunpack.c.l.b16 %v1296
        %v1809 = vunpack.c.l.b16 %v1297
        %v1810 = vpack.c.b16 %v1807, %v1806
        %v1811 = vpack.c.b16 %v1809, %v1808
        %v1815 = vsel %vm1366, %v1798, 0
        %1817 = vmatpush.bf16.msra.mxu0 0
        %1818 = vmatpush.bf16.msra.mxu0 0
        %1819 = vmatpush.bf16.msra.mxu0 0
        %1820 = vmatpush.bf16.msra.mxu0 0
        %1821 = vmatpush.bf16.msra.mxu0 0
        %1822 = vmatpush.bf16.msra.mxu0 0
        %1823 = vmatpush.bf16.msra.mxu0 %v1811
        %1824 = vmatpush.bf16.msra.mxu0 %v1810
        %1825 = vmatmul.bf16.gmra.mxu0 %v1815
        %v1826 = vpop.f32.mrf.mxu0
        %v1827 = vadd.f32 %v1800, %v1826
        %v1828 = vpop.f32.mrf.mxu0
        %1829 = vdwg.mxu0
        %v1830 = vmax.f32 %v1827, 0.0
        %v1831 = vpack.c.bf16 %v1830, %v1830
        %v1833 = vperm.slane %v1307, 0
        %v1843 = vunpack.c.l.b16 %v1299
        %v1844 = vunpack.c.l.b16 %v1300
        %v1845 = vunpack.c.l.b16 %v1301
        %v1846 = vunpack.c.l.b16 %v1302
        %v1847 = vunpack.c.l.b16 %v1303
        %v1848 = vunpack.c.l.b16 %v1304
        %v1849 = vunpack.c.l.b16 %v1305
        %v1850 = vunpack.c.l.b16 %v1306
        %v1851 = vpack.c.b16 %v1844, %v1843
        %v1852 = vpack.c.b16 %v1846, %v1845
        %v1853 = vpack.c.b16 %v1848, %v1847
        %v1854 = vpack.c.b16 %v1850, %v1849
        %vm1859 = vcmask 523264
        %v1861 = vsel %vm1859, %v1831, 0
        %1863 = vmatpush.bf16.msra.mxu0 0
        %1864 = vmatpush.bf16.msra.mxu0 0
        %1865 = vmatpush.bf16.msra.mxu0 0
        %1866 = vmatpush.bf16.msra.mxu0 0
        %1867 = vmatpush.bf16.msra.mxu0 %v1854
        %1868 = vmatpush.bf16.msra.mxu0 %v1853
        %1869 = vmatpush.bf16.msra.mxu0 %v1852
        %1870 = vmatpush.bf16.msra.mxu0 %v1851
        %1871 = vmatmul.bf16.gmra.mxu0 %v1861
        %v1872 = vpop.f32.mrf.mxu0
        %v1873 = vadd.f32 %v1833, %v1872
        %v1874 = vpop.f32.mrf.mxu0
        %1875 = vdwg.mxu0
        %v1876 = vadd.f32 %v1797, %v1873
        %v1877 = vsel %vm1366, %v1876, 0.0
        %1878 = vadd.xlane.f32.xlu0 %v1877
        %v1879 = vpop.xlane.xlu0 %1878
        %v1880 = vmul.f32 %v1879, %v1376
        %v1881 = vsub.f32 %v1876, %v1880
        %v1882 = vmul.f32 %v1881, %v1881
        %v1883 = vsel %vm1366, %v1882, 0.0
        %1884 = vadd.xlane.f32.xlu0 %v1883
        %v1885 = vpop.xlane.xlu0 %1884
        %v1886 = vmul.f32 %v1885, %v1376
        %v1887 = vadd.f32 %v1886, 1e-05
        %v1888 = vrsqrt.pop %v1887
        %v1889 = vmul.f32 %v1888, %v1887
        %v1890 = vmul.f32 %v1889, %v1888
        %v1891 = vmul.f32 0.5, %v1890
        %v1892 = vsub.f32 1.5, %v1891
        %v1893 = vmul.f32 %v1888, %v1892
        %vm1894 = vweird.f32 %v1887
        %vm1895 = vweird.f32 %v1888
        %vm1896 = vmor %vm1894, %vm1895
        %v1897 = vsel %vm1896, %v1888, %v1893
        %v1898 = vmul.f32 %v1881, %v1897
        %v1900 = vperm.slane %v1308, 0
        %v1902 = vmul.f32 %v1898, %v1900
        %v1904 = vperm.slane %v1309, 0
        %v1906 = vadd.f32 %v1902, %v1904
        %v1907 = vsel %vm1366, %v1365, 0.0
        %1908 = vadd.xlane.f32.xlu0 %v1907
        %v1909 = vpop.xlane.xlu0 %1908
        %v1910 = vmul.f32 %v1909, %v1376
        %v1911 = vsub.f32 %v1365, %v1910
        %v1912 = vmul.f32 %v1911, %v1911
        %v1913 = vsel %vm1366, %v1912, 0.0
        %1914 = vadd.xlane.f32.xlu0 %v1913
        %v1915 = vpop.xlane.xlu0 %1914
        %v1916 = vmul.f32 %v1915, %v1376
        %v1917 = vadd.f32 %v1916, 1e-05
        %v1918 = vrsqrt.pop %v1917
        %v1919 = vmul.f32 %v1918, %v1917
        %v1920 = vmul.f32 %v1919, %v1918
        %v1921 = vmul.f32 0.5, %v1920
        %v1922 = vsub.f32 1.5, %v1921
        %v1923 = vmul.f32 %v1918, %v1922
        %vm1924 = vweird.f32 %v1917
        %vm1925 = vweird.f32 %v1918
        %vm1926 = vmor %vm1924, %vm1925
        %v1927 = vsel %vm1926, %v1918, %v1923
        %v1928 = vmul.f32 %v1911, %v1927
        %v1930 = vperm.slane %v1310, 0
        %v1932 = vmul.f32 %v1928, %v1930
        %v1934 = vperm.slane %v1311, 0
        %v1936 = vadd.f32 %v1932, %v1934
        %v1937 = vpack.c.bf16 %v1936, %v1936
        %v1939 = vperm.slane %v1316, 0
        %v1945 = vunpack.c.l.b16 %v1312
        %v1946 = vunpack.c.l.b16 %v1313
        %v1947 = vunpack.c.l.b16 %v1314
        %v1948 = vunpack.c.l.b16 %v1315
        %v1949 = vpack.c.b16 %v1946, %v1945
        %v1950 = vpack.c.b16 %v1948, %v1947
        %v1954 = vsel %vm1366, %v1937, 0
        %1956 = vmatpush.bf16.msra.mxu0 0
        %1957 = vmatpush.bf16.msra.mxu0 0
        %1958 = vmatpush.bf16.msra.mxu0 0
        %1959 = vmatpush.bf16.msra.mxu0 0
        %1960 = vmatpush.bf16.msra.mxu0 0
        %1961 = vmatpush.bf16.msra.mxu0 0
        %1962 = vmatpush.bf16.msra.mxu0 %v1950
        %1963 = vmatpush.bf16.msra.mxu0 %v1949
        %1964 = vmatmul.bf16.gmra.mxu0 %v1954
        %v1965 = vpop.f32.mrf.mxu0
        %v1966 = vadd.f32 %v1939, %v1965
        %v1967 = vpop.f32.mrf.mxu0
        %1968 = vdwg.mxu0
        %v1969 = vpack.c.bf16 %v1966, %v1966
        %1971 = vrot.lane.b32.xlu0 %v1969, 96
        %v1972 = vpop.permute.xlu0 %1971
        %v1974 = vsel %vm1440, %v1969, 0
        %v1977 = vsel %vm1440, %v1972, 0
        %1979 = vmatpush.bf16.xpose.msra.mxu0 0
        %1980 = vmatpush.bf16.xpose.msra.mxu0 0
        %1981 = vmatpush.bf16.xpose.msra.mxu0 0
        %1982 = vmatpush.bf16.xpose.msra.mxu0 0
        %1983 = vmatpush.bf16.xpose.msra.mxu0 0
        %1984 = vmatpush.bf16.xpose.msra.mxu0 0
        %1985 = vmatpush.bf16.xpose.msra.mxu0 0
        %1986 = vmatpush.bf16.xpose.msra.mxu0 %v1977
        %1987 = vmatmul.bf16.gmra.mxu0 %v1974
        %v1988 = vpop.f32.mrf.mxu0
        %v1989 = vadd.f32 0.0, %v1988
        %v1990 = vpop.f32.mrf.mxu0
        %1991 = vdwg.mxu0
        %v1992 = vmul.f32 %v1989, 0.35355338
        %v1993 = vsel %vm1440, %v1992, -inf
        %1994 = vmax.xlane.f32.xlu0 %v1993
        %v1995 = vpop.xlane.xlu0 %1994
        %v1996 = vsub.f32 %v1992, %v1995
        %v1997 = vmul.f32 %v1996, 1.442695
        %v1998 = vpow.pop %v1997
        %v1999 = vsel %vm1440, %v1998, 0.0
        %2000 = vadd.xlane.f32.xlu0 %v1999
        %v2001 = vpop.xlane.xlu0 %2000
        %v2002 = vrcp.pop %v2001
        %v2003 = vmul.f32 %v2001, %v2002
        %v2004 = vsub.f32 1.0, %v2003
        %v2005 = vmul.f32 %v2002, %v2004
        %v2006 = vadd.f32 %v2002, %v2005
        %vm2007 = vweird.f32 %v2001
        %vm2008 = vweird.f32 %v2002
        %vm2009 = vmor %vm2007, %vm2008
        %v2010 = vsel %vm2009, %v2002, %v2006
        %v2011 = vand.u32 2147483647, %v2001
        %vm2012 = vcmp.eq.f32.partialorder %v2011, 8.507059e+37
        %v2013 = vand.u32 %v2001, 2147483648
        %v2014 = vor.u32 1.1754944e-38, %v2013
        %v2015 = vsel %vm2012, %v2014, %v2010
        %v2016 = vmul.f32 %v1998, %v2015
        %v2017 = vpack.c.bf16 %v2016, %v2016
        %2018 = vrot.lane.b32.xlu0 %v1969, 64
        %v2019 = vpop.permute.xlu0 %2018
        %v2021 = vsel %vm1440, %v2017, 0
        %v2024 = vsel %vm1491, %v2019, 0
        %2026 = vmatpush.bf16.msra.mxu0 0
        %2027 = vmatpush.bf16.msra.mxu0 0
        %2028 = vmatpush.bf16.msra.mxu0 0
        %2029 = vmatpush.bf16.msra.mxu0 0
        %2030 = vmatpush.bf16.msra.mxu0 0
        %2031 = vmatpush.bf16.msra.mxu0 0
        %2032 = vmatpush.bf16.msra.mxu0 0
        %2033 = vmatpush.bf16.msra.mxu0 %v2024
        %2034 = vmatmul.bf16.gmra.mxu0 %v2021
        %v2035 = vpop.f32.mrf.mxu0
        %v2036 = vadd.f32 0.0, %v2035
        %v2037 = vpop.f32.mrf.mxu0
        %2038 = vdwg.mxu0
        %2039 = vrot.lane.b32.xlu0 %v1969, 120
        %v2040 = vpop.permute.xlu0 %2039
        %2041 = vrot.lane.b32.xlu0 %v1969, 88
        %v2042 = vpop.permute.xlu0 %2041
        %v2044 = vsel %vm1440, %v2040, 0
        %v2047 = vsel %vm1440, %v2042, 0
        %2049 = vmatpush.bf16.xpose.msra.mxu0 0
        %2050 = vmatpush.bf16.xpose.msra.mxu0 0
        %2051 = vmatpush.bf16.xpose.msra.mxu0 0
        %2052 = vmatpush.bf16.xpose.msra.mxu0 0
        %2053 = vmatpush.bf16.xpose.msra.mxu0 0
        %2054 = vmatpush.bf16.xpose.msra.mxu0 0
        %2055 = vmatpush.bf16.xpose.msra.mxu0 0
        %2056 = vmatpush.bf16.xpose.msra.mxu0 %v2047
        %2057 = vmatmul.bf16.gmra.mxu0 %v2044
        %v2058 = vpop.f32.mrf.mxu0
        %v2059 = vadd.f32 0.0, %v2058
        %v2060 = vpop.f32.mrf.mxu0
        %2061 = vdwg.mxu0
        %v2062 = vmul.f32 %v2059, 0.35355338
        %v2063 = vsel %vm1440, %v2062, -inf
        %2064 = vmax.xlane.f32.xlu0 %v2063
        %v2065 = vpop.xlane.xlu0 %2064
        %v2066 = vsub.f32 %v2062, %v2065
        %v2067 = vmul.f32 %v2066, 1.442695
        %v2068 = vpow.pop %v2067
        %v2069 = vsel %vm1440, %v2068, 0.0
        %2070 = vadd.xlane.f32.xlu0 %v2069
        %v2071 = vpop.xlane.xlu0 %2070
        %v2072 = vrcp.pop %v2071
        %v2073 = vmul.f32 %v2071, %v2072
        %v2074 = vsub.f32 1.0, %v2073
        %v2075 = vmul.f32 %v2072, %v2074
        %v2076 = vadd.f32 %v2072, %v2075
        %vm2077 = vweird.f32 %v2071
        %vm2078 = vweird.f32 %v2072
        %vm2079 = vmor %vm2077, %vm2078
        %v2080 = vsel %vm2079, %v2072, %v2076
        %v2081 = vand.u32 2147483647, %v2071
        %vm2082 = vcmp.eq.f32.partialorder %v2081, 8.507059e+37
        %v2083 = vand.u32 %v2071, 2147483648
        %v2084 = vor.u32 1.1754944e-38, %v2083
        %v2085 = vsel %vm2082, %v2084, %v2080
        %v2086 = vmul.f32 %v2068, %v2085
        %v2087 = vpack.c.bf16 %v2086, %v2086
        %2088 = vrot.lane.b32.xlu0 %v1969, 56
        %v2089 = vpop.permute.xlu0 %2088
        %v2091 = vsel %vm1440, %v2087, 0
        %v2094 = vsel %vm1491, %v2089, 0
        %2096 = vmatpush.bf16.msra.mxu0 0
        %2097 = vmatpush.bf16.msra.mxu0 0
        %2098 = vmatpush.bf16.msra.mxu0 0
        %2099 = vmatpush.bf16.msra.mxu0 0
        %2100 = vmatpush.bf16.msra.mxu0 0
        %2101 = vmatpush.bf16.msra.mxu0 0
        %2102 = vmatpush.bf16.msra.mxu0 0
        %2103 = vmatpush.bf16.msra.mxu0 %v2094
        %2104 = vmatmul.bf16.gmra.mxu0 %v2091
        %v2105 = vpop.f32.mrf.mxu0
        %v2106 = vadd.f32 0.0, %v2105
        %v2107 = vpop.f32.mrf.mxu0
        %2108 = vdwg.mxu0
        %2109 = vrot.lane.b32.xlu0 %v1969, 112
        %v2110 = vpop.permute.xlu0 %2109
        %2111 = vrot.lane.b32.xlu0 %v1969, 80
        %v2112 = vpop.permute.xlu0 %2111
        %v2114 = vsel %vm1440, %v2110, 0
        %v2117 = vsel %vm1440, %v2112, 0
        %2119 = vmatpush.bf16.xpose.msra.mxu0 0
        %2120 = vmatpush.bf16.xpose.msra.mxu0 0
        %2121 = vmatpush.bf16.xpose.msra.mxu0 0
        %2122 = vmatpush.bf16.xpose.msra.mxu0 0
        %2123 = vmatpush.bf16.xpose.msra.mxu0 0
        %2124 = vmatpush.bf16.xpose.msra.mxu0 0
        %2125 = vmatpush.bf16.xpose.msra.mxu0 0
        %2126 = vmatpush.bf16.xpose.msra.mxu0 %v2117
        %2127 = vmatmul.bf16.gmra.mxu0 %v2114
        %v2128 = vpop.f32.mrf.mxu0
        %v2129 = vadd.f32 0.0, %v2128
        %v2130 = vpop.f32.mrf.mxu0
        %2131 = vdwg.mxu0
        %v2132 = vmul.f32 %v2129, 0.35355338
        %v2133 = vsel %vm1440, %v2132, -inf
        %2134 = vmax.xlane.f32.xlu0 %v2133
        %v2135 = vpop.xlane.xlu0 %2134
        %v2136 = vsub.f32 %v2132, %v2135
        %v2137 = vmul.f32 %v2136, 1.442695
        %v2138 = vpow.pop %v2137
        %v2139 = vsel %vm1440, %v2138, 0.0
        %2140 = vadd.xlane.f32.xlu0 %v2139
        %v2141 = vpop.xlane.xlu0 %2140
        %v2142 = vrcp.pop %v2141
        %v2143 = vmul.f32 %v2141, %v2142
        %v2144 = vsub.f32 1.0, %v2143
        %v2145 = vmul.f32 %v2142, %v2144
        %v2146 = vadd.f32 %v2142, %v2145
        %vm2147 = vweird.f32 %v2141
        %vm2148 = vweird.f32 %v2142
        %vm2149 = vmor %vm2147, %vm2148
        %v2150 = vsel %vm2149, %v2142, %v2146
        %v2151 = vand.u32 2147483647, %v2141
        %vm2152 = vcmp.eq.f32.partialorder %v2151, 8.507059e+37
        %v2153 = vand.u32 %v2141, 2147483648
        %v2154 = vor.u32 1.1754944e-38, %v2153
        %v2155 = vsel %vm2152, %v2154, %v2150
        %v2156 = vmul.f32 %v2138, %v2155
        %v2157 = vpack.c.bf16 %v2156, %v2156
        %2158 = vrot.lane.b32.xlu0 %v1969, 48
        %v2159 = vpop.permute.xlu0 %2158
        %v2161 = vsel %vm1440, %v2157, 0
        %v2164 = vsel %vm1491, %v2159, 0
        %2166 = vmatpush.bf16.msra.mxu0 0
        %2167 = vmatpush.bf16.msra.mxu0 0
        %2168 = vmatpush.bf16.msra.mxu0 0
        %2169 = vmatpush.bf16.msra.mxu0 0
        %2170 = vmatpush.bf16.msra.mxu0 0
        %2171 = vmatpush.bf16.msra.mxu0 0
        %2172 = vmatpush.bf16.msra.mxu0 0
        %2173 = vmatpush.bf16.msra.mxu0 %v2164
        %2174 = vmatmul.bf16.gmra.mxu0 %v2161
        %v2175 = vpop.f32.mrf.mxu0
        %v2176 = vadd.f32 0.0, %v2175
        %v2177 = vpop.f32.mrf.mxu0
        %2178 = vdwg.mxu0
        %2179 = vrot.lane.b32.xlu0 %v1969, 104
        %v2180 = vpop.permute.xlu0 %2179
        %2181 = vrot.lane.b32.xlu0 %v1969, 72
        %v2182 = vpop.permute.xlu0 %2181
        %v2184 = vsel %vm1440, %v2180, 0
        %v2187 = vsel %vm1440, %v2182, 0
        %2189 = vmatpush.bf16.xpose.msra.mxu0 0
        %2190 = vmatpush.bf16.xpose.msra.mxu0 0
        %2191 = vmatpush.bf16.xpose.msra.mxu0 0
        %2192 = vmatpush.bf16.xpose.msra.mxu0 0
        %2193 = vmatpush.bf16.xpose.msra.mxu0 0
        %2194 = vmatpush.bf16.xpose.msra.mxu0 0
        %2195 = vmatpush.bf16.xpose.msra.mxu0 0
        %2196 = vmatpush.bf16.xpose.msra.mxu0 %v2187
        %2197 = vmatmul.bf16.gmra.mxu0 %v2184
        %v2198 = vpop.f32.mrf.mxu0
        %v2199 = vadd.f32 0.0, %v2198
        %v2200 = vpop.f32.mrf.mxu0
        %2201 = vdwg.mxu0
        %v2202 = vmul.f32 %v2199, 0.35355338
        %v2203 = vsel %vm1440, %v2202, -inf
        %2204 = vmax.xlane.f32.xlu0 %v2203
        %v2205 = vpop.xlane.xlu0 %2204
        %v2206 = vsub.f32 %v2202, %v2205
        %v2207 = vmul.f32 %v2206, 1.442695
        %v2208 = vpow.pop %v2207
        %v2209 = vsel %vm1440, %v2208, 0.0
        %2210 = vadd.xlane.f32.xlu0 %v2209
        %v2211 = vpop.xlane.xlu0 %2210
        %v2212 = vrcp.pop %v2211
        %v2213 = vmul.f32 %v2211, %v2212
        %v2214 = vsub.f32 1.0, %v2213
        %v2215 = vmul.f32 %v2212, %v2214
        %v2216 = vadd.f32 %v2212, %v2215
        %vm2217 = vweird.f32 %v2211
        %vm2218 = vweird.f32 %v2212
        %vm2219 = vmor %vm2217, %vm2218
        %v2220 = vsel %vm2219, %v2212, %v2216
        %v2221 = vand.u32 2147483647, %v2211
        %vm2222 = vcmp.eq.f32.partialorder %v2221, 8.507059e+37
        %v2223 = vand.u32 %v2211, 2147483648
        %v2224 = vor.u32 1.1754944e-38, %v2223
        %v2225 = vsel %vm2222, %v2224, %v2220
        %v2226 = vmul.f32 %v2208, %v2225
        %v2227 = vpack.c.bf16 %v2226, %v2226
        %2228 = vrot.lane.b32.xlu0 %v1969, 40
        %v2229 = vpop.permute.xlu0 %2228
        %v2231 = vsel %vm1440, %v2227, 0
        %v2234 = vsel %vm1491, %v2229, 0
        %2236 = vmatpush.bf16.msra.mxu0 0
        %2237 = vmatpush.bf16.msra.mxu0 0
        %2238 = vmatpush.bf16.msra.mxu0 0
        %2239 = vmatpush.bf16.msra.mxu0 0
        %2240 = vmatpush.bf16.msra.mxu0 0
        %2241 = vmatpush.bf16.msra.mxu0 0
        %2242 = vmatpush.bf16.msra.mxu0 0
        %2243 = vmatpush.bf16.msra.mxu0 %v2234
        %2244 = vmatmul.bf16.gmra.mxu0 %v2231
        %v2245 = vpop.f32.mrf.mxu0
        %v2246 = vadd.f32 0.0, %v2245
        %v2247 = vpop.f32.mrf.mxu0
        %2248 = vdwg.mxu0
        %2250 = vrot.lane.b32.xlu0 %v2106, 8
        %v2251 = vpop.permute.xlu0 %2250
        %2254 = vrot.lane.b32.xlu0 %v2176, 16
        %v2255 = vpop.permute.xlu0 %2254
        %2258 = vrot.lane.b32.xlu0 %v2246, 24
        %v2259 = vpop.permute.xlu0 %2258
        %v2261 = vsel %vm1440, %v2036, %v2251
        %v2262 = vsel %vm1731, %v2261, %v2255
        %v2263 = vsel %vm1733, %v2262, %v2259
        %v2264 = vpack.c.bf16 %v2263, %v2263
        %v2266 = vperm.slane %v1321, 0
        %v2272 = vunpack.c.l.b16 %v1317
        %v2273 = vunpack.c.l.b16 %v1318
        %v2274 = vunpack.c.l.b16 %v1319
        %v2275 = vunpack.c.l.b16 %v1320
        %v2276 = vpack.c.b16 %v2273, %v2272
        %v2277 = vpack.c.b16 %v2275, %v2274
        %v2281 = vsel %vm1366, %v2264, 0
        %2283 = vmatpush.bf16.msra.mxu0 0
        %2284 = vmatpush.bf16.msra.mxu0 0
        %2285 = vmatpush.bf16.msra.mxu0 0
        %2286 = vmatpush.bf16.msra.mxu0 0
        %2287 = vmatpush.bf16.msra.mxu0 0
        %2288 = vmatpush.bf16.msra.mxu0 0
        %2289 = vmatpush.bf16.msra.mxu0 %v2277
        %2290 = vmatpush.bf16.msra.mxu0 %v2276
        %2291 = vmatmul.bf16.gmra.mxu0 %v2281
        %v2292 = vpop.f32.mrf.mxu0
        %v2293 = vadd.f32 %v2266, %v2292
        %v2294 = vpop.f32.mrf.mxu0
        %2295 = vdwg.mxu0
        %v2296 = vadd.f32 %v1365, %v2293
        %v2297 = vsel %vm1366, %v2296, 0.0
        %2298 = vadd.xlane.f32.xlu0 %v2297
        %v2299 = vpop.xlane.xlu0 %2298
        %v2300 = vmul.f32 %v2299, %v1376
        %v2301 = vsub.f32 %v2296, %v2300
        %v2302 = vmul.f32 %v2301, %v2301
        %v2303 = vsel %vm1366, %v2302, 0.0
        %2304 = vadd.xlane.f32.xlu0 %v2303
        %v2305 = vpop.xlane.xlu0 %2304
        %v2306 = vmul.f32 %v2305, %v1376
        %v2307 = vadd.f32 %v2306, 1e-05
        %v2308 = vrsqrt.pop %v2307
        %v2309 = vmul.f32 %v2308, %v2307
        %v2310 = vmul.f32 %v2309, %v2308
        %v2311 = vmul.f32 0.5, %v2310
        %v2312 = vsub.f32 1.5, %v2311
        %v2313 = vmul.f32 %v2308, %v2312
        %vm2314 = vweird.f32 %v2307
        %vm2315 = vweird.f32 %v2308
        %vm2316 = vmor %vm2314, %vm2315
        %v2317 = vsel %vm2316, %v2308, %v2313
        %v2318 = vmul.f32 %v2301, %v2317
        %v2320 = vperm.slane %v1322, 0
        %v2322 = vmul.f32 %v2318, %v2320
        %v2324 = vperm.slane %v1323, 0
        %v2326 = vadd.f32 %v2322, %v2324
        %v2327 = vsel %vm1366, %v1906, 0.0
        %2328 = vadd.xlane.f32.xlu0 %v2327
        %v2329 = vpop.xlane.xlu0 %2328
        %v2330 = vmul.f32 %v2329, %v1376
        %v2331 = vsub.f32 %v1906, %v2330
        %v2332 = vmul.f32 %v2331, %v2331
        %v2333 = vsel %vm1366, %v2332, 0.0
        %2334 = vadd.xlane.f32.xlu0 %v2333
        %v2335 = vpop.xlane.xlu0 %2334
        %v2336 = vmul.f32 %v2335, %v1376
        %v2337 = vadd.f32 %v2336, 1e-05
        %v2338 = vrsqrt.pop %v2337
        %v2339 = vmul.f32 %v2338, %v2337
        %v2340 = vmul.f32 %v2339, %v2338
        %v2341 = vmul.f32 0.5, %v2340
        %v2342 = vsub.f32 1.5, %v2341
        %v2343 = vmul.f32 %v2338, %v2342
        %vm2344 = vweird.f32 %v2337
        %vm2345 = vweird.f32 %v2338
        %vm2346 = vmor %vm2344, %vm2345
        %v2347 = vsel %vm2346, %v2338, %v2343
        %v2348 = vmul.f32 %v2331, %v2347
        %v2350 = vperm.slane %v1324, 0
        %v2352 = vmul.f32 %v2348, %v2350
        %v2354 = vperm.slane %v1325, 0
        %v2356 = vadd.f32 %v2352, %v2354
        %v2357 = vsel %vm1366, %v2326, 0.0
        %2358 = vadd.xlane.f32.xlu0 %v2357
        %v2359 = vpop.xlane.xlu0 %2358
        %v2360 = vmul.f32 %v2359, %v1376
        %v2361 = vsub.f32 %v2326, %v2360
        %v2362 = vmul.f32 %v2361, %v2361
        %v2363 = vsel %vm1366, %v2362, 0.0
        %2364 = vadd.xlane.f32.xlu0 %v2363
        %v2365 = vpop.xlane.xlu0 %2364
        %v2366 = vmul.f32 %v2365, %v1376
        %v2367 = vadd.f32 %v2366, 1e-05
        %v2368 = vrsqrt.pop %v2367
        %v2369 = vmul.f32 %v2368, %v2367
        %v2370 = vmul.f32 %v2369, %v2368
        %v2371 = vmul.f32 0.5, %v2370
        %v2372 = vsub.f32 1.5, %v2371
        %v2373 = vmul.f32 %v2368, %v2372
        %vm2374 = vweird.f32 %v2367
        %vm2375 = vweird.f32 %v2368
        %vm2376 = vmor %vm2374, %vm2375
        %v2377 = vsel %vm2376, %v2368, %v2373
        %v2378 = vmul.f32 %v2361, %v2377
        %v2379 = vmul.f32 %v2378, %v2350
        %v2380 = vadd.f32 %v2379, %v2354
        %v2381 = vpack.c.bf16 %v2356, %v2356
        %v2383 = vperm.slane %v1330, 0
        %v2389 = vunpack.c.l.b16 %v1326
        %v2390 = vunpack.c.l.b16 %v1327
        %v2391 = vunpack.c.l.b16 %v1328
        %v2392 = vunpack.c.l.b16 %v1329
        %v2393 = vpack.c.b16 %v2390, %v2389
        %v2394 = vpack.c.b16 %v2392, %v2391
        %v2398 = vsel %vm1366, %v2381, 0
        %2400 = vmatpush.bf16.msra.mxu0 0
        %2401 = vmatpush.bf16.msra.mxu0 0
        %2402 = vmatpush.bf16.msra.mxu0 0
        %2403 = vmatpush.bf16.msra.mxu0 0
        %2404 = vmatpush.bf16.msra.mxu0 0
        %2405 = vmatpush.bf16.msra.mxu0 0
        %2406 = vmatpush.bf16.msra.mxu0 %v2394
        %2407 = vmatpush.bf16.msra.mxu0 %v2393
        %2408 = vmatmul.bf16.gmra.mxu0 %v2398
        %v2409 = vpop.f32.mrf.mxu0
        %v2410 = vadd.f32 %v2383, %v2409
        %v2411 = vpop.f32.mrf.mxu0
        %2412 = vdwg.mxu0
        %v2413 = vpack.c.bf16 %v2380, %v2380
        %v2415 = vperm.slane %v1335, 0
        %v2421 = vunpack.c.l.b16 %v1331
        %v2422 = vunpack.c.l.b16 %v1332
        %v2423 = vunpack.c.l.b16 %v1333
        %v2424 = vunpack.c.l.b16 %v1334
        %v2425 = vpack.c.b16 %v2422, %v2421
        %v2426 = vpack.c.b16 %v2424, %v2423
        %v2430 = vsel %vm1366, %v2413, 0
        %2432 = vmatpush.bf16.msra.mxu0 0
        %2433 = vmatpush.bf16.msra.mxu0 0
        %2434 = vmatpush.bf16.msra.mxu0 0
        %2435 = vmatpush.bf16.msra.mxu0 0
        %2436 = vmatpush.bf16.msra.mxu0 0
        %2437 = vmatpush.bf16.msra.mxu0 0
        %2438 = vmatpush.bf16.msra.mxu0 %v2426
        %2439 = vmatpush.bf16.msra.mxu0 %v2425
        %2440 = vmatmul.bf16.gmra.mxu0 %v2430
        %v2441 = vpop.f32.mrf.mxu0
        %v2442 = vadd.f32 %v2415, %v2441
        %v2443 = vpop.f32.mrf.mxu0
        %2444 = vdwg.mxu0
        %v2445 = vpack.c.bf16 %v2410, %v2410
        %v2446 = vpack.c.bf16 %v2442, %v2442
        %2448 = vrot.lane.b32.xlu0 %v2445, 96
        %v2449 = vpop.permute.xlu0 %2448
        %v2451 = vsel %vm1440, %v2445, 0
        %v2454 = vsel %vm1440, %v2449, 0
        %2456 = vmatpush.bf16.xpose.msra.mxu0 0
        %2457 = vmatpush.bf16.xpose.msra.mxu0 0
        %2458 = vmatpush.bf16.xpose.msra.mxu0 0
        %2459 = vmatpush.bf16.xpose.msra.mxu0 0
        %2460 = vmatpush.bf16.xpose.msra.mxu0 0
        %2461 = vmatpush.bf16.xpose.msra.mxu0 0
        %2462 = vmatpush.bf16.xpose.msra.mxu0 0
        %2463 = vmatpush.bf16.xpose.msra.mxu0 %v2454
        %2464 = vmatmul.bf16.gmra.mxu0 %v2451
        %v2465 = vpop.f32.mrf.mxu0
        %v2466 = vadd.f32 0.0, %v2465
        %v2467 = vpop.f32.mrf.mxu0
        %2468 = vdwg.mxu0
        %v2469 = vmul.f32 %v2466, 0.35355338
        %v2470 = vsel %vm1440, %v2469, -inf
        %2471 = vmax.xlane.f32.xlu0 %v2470
        %v2472 = vpop.xlane.xlu0 %2471
        %v2473 = vsub.f32 %v2469, %v2472
        %v2474 = vmul.f32 %v2473, 1.442695
        %v2475 = vpow.pop %v2474
        %v2476 = vsel %vm1440, %v2475, 0.0
        %2477 = vadd.xlane.f32.xlu0 %v2476
        %v2478 = vpop.xlane.xlu0 %2477
        %v2479 = vrcp.pop %v2478
        %v2480 = vmul.f32 %v2478, %v2479
        %v2481 = vsub.f32 1.0, %v2480
        %v2482 = vmul.f32 %v2479, %v2481
        %v2483 = vadd.f32 %v2479, %v2482
        %vm2484 = vweird.f32 %v2478
        %vm2485 = vweird.f32 %v2479
        %vm2486 = vmor %vm2484, %vm2485
        %v2487 = vsel %vm2486, %v2479, %v2483
        %v2488 = vand.u32 2147483647, %v2478
        %vm2489 = vcmp.eq.f32.partialorder %v2488, 8.507059e+37
        %v2490 = vand.u32 %v2478, 2147483648
        %v2491 = vor.u32 1.1754944e-38, %v2490
        %v2492 = vsel %vm2489, %v2491, %v2487
        %v2493 = vmul.f32 %v2475, %v2492
        %v2494 = vpack.c.bf16 %v2493, %v2493
        %v2496 = vsel %vm1440, %v2494, 0
        %v2499 = vsel %vm1491, %v2446, 0
        %2501 = vmatpush.bf16.msra.mxu0 0
        %2502 = vmatpush.bf16.msra.mxu0 0
        %2503 = vmatpush.bf16.msra.mxu0 0
        %2504 = vmatpush.bf16.msra.mxu0 0
        %2505 = vmatpush.bf16.msra.mxu0 0
        %2506 = vmatpush.bf16.msra.mxu0 0
        %2507 = vmatpush.bf16.msra.mxu0 0
        %2508 = vmatpush.bf16.msra.mxu0 %v2499
        %2509 = vmatmul.bf16.gmra.mxu0 %v2496
        %v2510 = vpop.f32.mrf.mxu0
        %v2511 = vadd.f32 0.0, %v2510
        %v2512 = vpop.f32.mrf.mxu0
        %2513 = vdwg.mxu0
        %2514 = vrot.lane.b32.xlu0 %v2445, 120
        %v2515 = vpop.permute.xlu0 %2514
        %2516 = vrot.lane.b32.xlu0 %v2445, 88
        %v2517 = vpop.permute.xlu0 %2516
        %v2519 = vsel %vm1440, %v2515, 0
        %v2522 = vsel %vm1440, %v2517, 0
        %2524 = vmatpush.bf16.xpose.msra.mxu0 0
        %2525 = vmatpush.bf16.xpose.msra.mxu0 0
        %2526 = vmatpush.bf16.xpose.msra.mxu0 0
        %2527 = vmatpush.bf16.xpose.msra.mxu0 0
        %2528 = vmatpush.bf16.xpose.msra.mxu0 0
        %2529 = vmatpush.bf16.xpose.msra.mxu0 0
        %2530 = vmatpush.bf16.xpose.msra.mxu0 0
        %2531 = vmatpush.bf16.xpose.msra.mxu0 %v2522
        %2532 = vmatmul.bf16.gmra.mxu0 %v2519
        %v2533 = vpop.f32.mrf.mxu0
        %v2534 = vadd.f32 0.0, %v2533
        %v2535 = vpop.f32.mrf.mxu0
        %2536 = vdwg.mxu0
        %v2537 = vmul.f32 %v2534, 0.35355338
        %v2538 = vsel %vm1440, %v2537, -inf
        %2539 = vmax.xlane.f32.xlu0 %v2538
        %v2540 = vpop.xlane.xlu0 %2539
        %v2541 = vsub.f32 %v2537, %v2540
        %v2542 = vmul.f32 %v2541, 1.442695
        %v2543 = vpow.pop %v2542
        %v2544 = vsel %vm1440, %v2543, 0.0
        %2545 = vadd.xlane.f32.xlu0 %v2544
        %v2546 = vpop.xlane.xlu0 %2545
        %v2547 = vrcp.pop %v2546
        %v2548 = vmul.f32 %v2546, %v2547
        %v2549 = vsub.f32 1.0, %v2548
        %v2550 = vmul.f32 %v2547, %v2549
        %v2551 = vadd.f32 %v2547, %v2550
        %vm2552 = vweird.f32 %v2546
        %vm2553 = vweird.f32 %v2547
        %vm2554 = vmor %vm2552, %vm2553
        %v2555 = vsel %vm2554, %v2547, %v2551
        %v2556 = vand.u32 2147483647, %v2546
        %vm2557 = vcmp.eq.f32.partialorder %v2556, 8.507059e+37
        %v2558 = vand.u32 %v2546, 2147483648
        %v2559 = vor.u32 1.1754944e-38, %v2558
        %v2560 = vsel %vm2557, %v2559, %v2555
        %v2561 = vmul.f32 %v2543, %v2560
        %v2562 = vpack.c.bf16 %v2561, %v2561
        %2564 = vrot.lane.b32.xlu0 %v2446, 120
        %v2565 = vpop.permute.xlu0 %2564
        %v2567 = vsel %vm1440, %v2562, 0
        %v2570 = vsel %vm1491, %v2565, 0
        %2572 = vmatpush.bf16.msra.mxu0 0
        %2573 = vmatpush.bf16.msra.mxu0 0
        %2574 = vmatpush.bf16.msra.mxu0 0
        %2575 = vmatpush.bf16.msra.mxu0 0
        %2576 = vmatpush.bf16.msra.mxu0 0
        %2577 = vmatpush.bf16.msra.mxu0 0
        %2578 = vmatpush.bf16.msra.mxu0 0
        %2579 = vmatpush.bf16.msra.mxu0 %v2570
        %2580 = vmatmul.bf16.gmra.mxu0 %v2567
        %v2581 = vpop.f32.mrf.mxu0
        %v2582 = vadd.f32 0.0, %v2581
        %v2583 = vpop.f32.mrf.mxu0
        %2584 = vdwg.mxu0
        %2585 = vrot.lane.b32.xlu0 %v2445, 112
        %v2586 = vpop.permute.xlu0 %2585
        %2587 = vrot.lane.b32.xlu0 %v2445, 80
        %v2588 = vpop.permute.xlu0 %2587
        %v2590 = vsel %vm1440, %v2586, 0
        %v2593 = vsel %vm1440, %v2588, 0
        %2595 = vmatpush.bf16.xpose.msra.mxu0 0
        %2596 = vmatpush.bf16.xpose.msra.mxu0 0
        %2597 = vmatpush.bf16.xpose.msra.mxu0 0
        %2598 = vmatpush.bf16.xpose.msra.mxu0 0
        %2599 = vmatpush.bf16.xpose.msra.mxu0 0
        %2600 = vmatpush.bf16.xpose.msra.mxu0 0
        %2601 = vmatpush.bf16.xpose.msra.mxu0 0
        %2602 = vmatpush.bf16.xpose.msra.mxu0 %v2593
        %2603 = vmatmul.bf16.gmra.mxu0 %v2590
        %v2604 = vpop.f32.mrf.mxu0
        %v2605 = vadd.f32 0.0, %v2604
        %v2606 = vpop.f32.mrf.mxu0
        %2607 = vdwg.mxu0
        %v2608 = vmul.f32 %v2605, 0.35355338
        %v2609 = vsel %vm1440, %v2608, -inf
        %2610 = vmax.xlane.f32.xlu0 %v2609
        %v2611 = vpop.xlane.xlu0 %2610
        %v2612 = vsub.f32 %v2608, %v2611
        %v2613 = vmul.f32 %v2612, 1.442695
        %v2614 = vpow.pop %v2613
        %v2615 = vsel %vm1440, %v2614, 0.0
        %2616 = vadd.xlane.f32.xlu0 %v2615
        %v2617 = vpop.xlane.xlu0 %2616
        %v2618 = vrcp.pop %v2617
        %v2619 = vmul.f32 %v2617, %v2618
        %v2620 = vsub.f32 1.0, %v2619
        %v2621 = vmul.f32 %v2618, %v2620
        %v2622 = vadd.f32 %v2618, %v2621
        %vm2623 = vweird.f32 %v2617
        %vm2624 = vweird.f32 %v2618
        %vm2625 = vmor %vm2623, %vm2624
        %v2626 = vsel %vm2625, %v2618, %v2622
        %v2627 = vand.u32 2147483647, %v2617
        %vm2628 = vcmp.eq.f32.partialorder %v2627, 8.507059e+37
        %v2629 = vand.u32 %v2617, 2147483648
        %v2630 = vor.u32 1.1754944e-38, %v2629
        %v2631 = vsel %vm2628, %v2630, %v2626
        %v2632 = vmul.f32 %v2614, %v2631
        %v2633 = vpack.c.bf16 %v2632, %v2632
        %2634 = vrot.lane.b32.xlu0 %v2446, 112
        %v2635 = vpop.permute.xlu0 %2634
        %v2637 = vsel %vm1440, %v2633, 0
        %v2640 = vsel %vm1491, %v2635, 0
        %2642 = vmatpush.bf16.msra.mxu0 0
        %2643 = vmatpush.bf16.msra.mxu0 0
        %2644 = vmatpush.bf16.msra.mxu0 0
        %2645 = vmatpush.bf16.msra.mxu0 0
        %2646 = vmatpush.bf16.msra.mxu0 0
        %2647 = vmatpush.bf16.msra.mxu0 0
        %2648 = vmatpush.bf16.msra.mxu0 0
        %2649 = vmatpush.bf16.msra.mxu0 %v2640
        %2650 = vmatmul.bf16.gmra.mxu0 %v2637
        %v2651 = vpop.f32.mrf.mxu0
        %v2652 = vadd.f32 0.0, %v2651
        %v2653 = vpop.f32.mrf.mxu0
        %2654 = vdwg.mxu0
        %2655 = vrot.lane.b32.xlu0 %v2445, 104
        %v2656 = vpop.permute.xlu0 %2655
        %2657 = vrot.lane.b32.xlu0 %v2445, 72
        %v2658 = vpop.permute.xlu0 %2657
        %v2660 = vsel %vm1440, %v2656, 0
        %v2663 = vsel %vm1440, %v2658, 0
        %2665 = vmatpush.bf16.xpose.msra.mxu0 0
        %2666 = vmatpush.bf16.xpose.msra.mxu0 0
        %2667 = vmatpush.bf16.xpose.msra.mxu0 0
        %2668 = vmatpush.bf16.xpose.msra.mxu0 0
        %2669 = vmatpush.bf16.xpose.msra.mxu0 0
        %2670 = vmatpush.bf16.xpose.msra.mxu0 0
        %2671 = vmatpush.bf16.xpose.msra.mxu0 0
        %2672 = vmatpush.bf16.xpose.msra.mxu0 %v2663
        %2673 = vmatmul.bf16.gmra.mxu0 %v2660
        %v2674 = vpop.f32.mrf.mxu0
        %v2675 = vadd.f32 0.0, %v2674
        %v2676 = vpop.f32.mrf.mxu0
        %2677 = vdwg.mxu0
        %v2678 = vmul.f32 %v2675, 0.35355338
        %v2679 = vsel %vm1440, %v2678, -inf
        %2680 = vmax.xlane.f32.xlu0 %v2679
        %v2681 = vpop.xlane.xlu0 %2680
        %v2682 = vsub.f32 %v2678, %v2681
        %v2683 = vmul.f32 %v2682, 1.442695
        %v2684 = vpow.pop %v2683
        %v2685 = vsel %vm1440, %v2684, 0.0
        %2686 = vadd.xlane.f32.xlu0 %v2685
        %v2687 = vpop.xlane.xlu0 %2686
        %v2688 = vrcp.pop %v2687
        %v2689 = vmul.f32 %v2687, %v2688
        %v2690 = vsub.f32 1.0, %v2689
        %v2691 = vmul.f32 %v2688, %v2690
        %v2692 = vadd.f32 %v2688, %v2691
        %vm2693 = vweird.f32 %v2687
        %vm2694 = vweird.f32 %v2688
        %vm2695 = vmor %vm2693, %vm2694
        %v2696 = vsel %vm2695, %v2688, %v2692
        %v2697 = vand.u32 2147483647, %v2687
        %vm2698 = vcmp.eq.f32.partialorder %v2697, 8.507059e+37
        %v2699 = vand.u32 %v2687, 2147483648
        %v2700 = vor.u32 1.1754944e-38, %v2699
        %v2701 = vsel %vm2698, %v2700, %v2696
        %v2702 = vmul.f32 %v2684, %v2701
        %v2703 = vpack.c.bf16 %v2702, %v2702
        %2704 = vrot.lane.b32.xlu0 %v2446, 104
        %v2705 = vpop.permute.xlu0 %2704
        %v2707 = vsel %vm1440, %v2703, 0
        %v2710 = vsel %vm1491, %v2705, 0
        %2712 = vmatpush.bf16.msra.mxu0 0
        %2713 = vmatpush.bf16.msra.mxu0 0
        %2714 = vmatpush.bf16.msra.mxu0 0
        %2715 = vmatpush.bf16.msra.mxu0 0
        %2716 = vmatpush.bf16.msra.mxu0 0
        %2717 = vmatpush.bf16.msra.mxu0 0
        %2718 = vmatpush.bf16.msra.mxu0 0
        %2719 = vmatpush.bf16.msra.mxu0 %v2710
        %2720 = vmatmul.bf16.gmra.mxu0 %v2707
        %v2721 = vpop.f32.mrf.mxu0
        %v2722 = vadd.f32 0.0, %v2721
        %v2723 = vpop.f32.mrf.mxu0
        %2724 = vdwg.mxu0
        %2726 = vrot.lane.b32.xlu0 %v2582, 8
        %v2727 = vpop.permute.xlu0 %2726
        %2730 = vrot.lane.b32.xlu0 %v2652, 16
        %v2731 = vpop.permute.xlu0 %2730
        %2734 = vrot.lane.b32.xlu0 %v2722, 24
        %v2735 = vpop.permute.xlu0 %2734
        %v2737 = vsel %vm1440, %v2511, %v2727
        %v2738 = vsel %vm1731, %v2737, %v2731
        %v2739 = vsel %vm1733, %v2738, %v2735
        %v2740 = vpack.c.bf16 %v2739, %v2739
        %v2742 = vperm.slane %v1340, 0
        %v2748 = vunpack.c.l.b16 %v1336
        %v2749 = vunpack.c.l.b16 %v1337
        %v2750 = vunpack.c.l.b16 %v1338
        %v2751 = vunpack.c.l.b16 %v1339
        %v2752 = vpack.c.b16 %v2749, %v2748
        %v2753 = vpack.c.b16 %v2751, %v2750
        %v2757 = vsel %vm1366, %v2740, 0
        %2759 = vmatpush.bf16.msra.mxu0 0
        %2760 = vmatpush.bf16.msra.mxu0 0
        %2761 = vmatpush.bf16.msra.mxu0 0
        %2762 = vmatpush.bf16.msra.mxu0 0
        %2763 = vmatpush.bf16.msra.mxu0 0
        %2764 = vmatpush.bf16.msra.mxu0 0
        %2765 = vmatpush.bf16.msra.mxu0 %v2753
        %2766 = vmatpush.bf16.msra.mxu0 %v2752
        %2767 = vmatmul.bf16.gmra.mxu0 %v2757
        %v2768 = vpop.f32.mrf.mxu0
        %v2769 = vadd.f32 %v2742, %v2768
        %v2770 = vpop.f32.mrf.mxu0
        %2771 = vdwg.mxu0
        %v2772 = vadd.f32 %v2326, %v2769
        %v2773 = vsel %vm1366, %v2772, 0.0
        %2774 = vadd.xlane.f32.xlu0 %v2773
        %v2775 = vpop.xlane.xlu0 %2774
        %v2776 = vmul.f32 %v2775, %v1376
        %v2777 = vsub.f32 %v2772, %v2776
        %v2778 = vmul.f32 %v2777, %v2777
        %v2779 = vsel %vm1366, %v2778, 0.0
        %2780 = vadd.xlane.f32.xlu0 %v2779
        %v2781 = vpop.xlane.xlu0 %2780
        %v2782 = vmul.f32 %v2781, %v1376
        %v2783 = vadd.f32 %v2782, 1e-05
        %v2784 = vrsqrt.pop %v2783
        %v2785 = vmul.f32 %v2784, %v2783
        %v2786 = vmul.f32 %v2785, %v2784
        %v2787 = vmul.f32 0.5, %v2786
        %v2788 = vsub.f32 1.5, %v2787
        %v2789 = vmul.f32 %v2784, %v2788
        %vm2790 = vweird.f32 %v2783
        %vm2791 = vweird.f32 %v2784
        %vm2792 = vmor %vm2790, %vm2791
        %v2793 = vsel %vm2792, %v2784, %v2789
        %v2794 = vmul.f32 %v2777, %v2793
        %v2796 = vperm.slane %v1341, 0
        %v2798 = vmul.f32 %v2794, %v2796
        %v2800 = vperm.slane %v1342, 0
        %v2802 = vadd.f32 %v2798, %v2800
        %v2803 = vpack.c.bf16 %v2802, %v2802
        %v2805 = vperm.slane %v1347, 0
        %v2811 = vunpack.c.l.b16 %v1343
        %v2812 = vunpack.c.l.b16 %v1344
        %v2813 = vunpack.c.l.b16 %v1345
        %v2814 = vunpack.c.l.b16 %v1346
        %v2815 = vpack.c.b16 %v2812, %v2811
        %v2816 = vpack.c.b16 %v2814, %v2813
        %v2820 = vsel %vm1366, %v2803, 0
        %2822 = vmatpush.bf16.msra.mxu0 0
        %2823 = vmatpush.bf16.msra.mxu0 0
        %2824 = vmatpush.bf16.msra.mxu0 0
        %2825 = vmatpush.bf16.msra.mxu0 0
        %2826 = vmatpush.bf16.msra.mxu0 0
        %2827 = vmatpush.bf16.msra.mxu0 0
        %2828 = vmatpush.bf16.msra.mxu0 %v2816
        %2829 = vmatpush.bf16.msra.mxu0 %v2815
        %2830 = vmatmul.bf16.gmra.mxu0 %v2820
        %v2831 = vpop.f32.mrf.mxu0
        %v2832 = vadd.f32 %v2805, %v2831
        %v2833 = vpop.f32.mrf.mxu0
        %2834 = vdwg.mxu0
        %v2835 = vmax.f32 %v2832, 0.0
        %v2836 = vpack.c.bf16 %v2835, %v2835
        %v2838 = vperm.slane %v1356, 0
        %v2848 = vunpack.c.l.b16 %v1348
        %v2849 = vunpack.c.l.b16 %v1349
        %v2850 = vunpack.c.l.b16 %v1350
        %v2851 = vunpack.c.l.b16 %v1351
        %v2852 = vunpack.c.l.b16 %v1352
        %v2853 = vunpack.c.l.b16 %v1353
        %v2854 = vunpack.c.l.b16 %v1354
        %v2855 = vunpack.c.l.b16 %v1355
        %v2856 = vpack.c.b16 %v2849, %v2848
        %v2857 = vpack.c.b16 %v2851, %v2850
        %v2858 = vpack.c.b16 %v2853, %v2852
        %v2859 = vpack.c.b16 %v2855, %v2854
        %v2865 = vsel %vm1859, %v2836, 0
        %2867 = vmatpush.bf16.msra.mxu0 0
        %2868 = vmatpush.bf16.msra.mxu0 0
        %2869 = vmatpush.bf16.msra.mxu0 0
        %2870 = vmatpush.bf16.msra.mxu0 0
        %2871 = vmatpush.bf16.msra.mxu0 %v2859
        %2872 = vmatpush.bf16.msra.mxu0 %v2858
        %2873 = vmatpush.bf16.msra.mxu0 %v2857
        %2874 = vmatpush.bf16.msra.mxu0 %v2856
        %2875 = vmatmul.bf16.gmra.mxu0 %v2865
        %v2876 = vpop.f32.mrf.mxu0
        %v2877 = vadd.f32 %v2838, %v2876
        %v2878 = vpop.f32.mrf.mxu0
        %2879 = vdwg.mxu0
        %v2880 = vadd.f32 %v2802, %v2877
        %v2881 = vsel %vm1366, %v2880, 0.0
        %2882 = vadd.xlane.f32.xlu0 %v2881
        %v2883 = vpop.xlane.xlu0 %2882
        %v2884 = vmul.f32 %v2883, %v1376
        %v2885 = vsub.f32 %v2880, %v2884
        %v2886 = vmul.f32 %v2885, %v2885
        %v2887 = vsel %vm1366, %v2886, 0.0
        %2888 = vadd.xlane.f32.xlu0 %v2887
        %v2889 = vpop.xlane.xlu0 %2888
        %v2890 = vmul.f32 %v2889, %v1376
        %v2891 = vadd.f32 %v2890, 1e-05
        %v2892 = vrsqrt.pop %v2891
        %v2893 = vmul.f32 %v2892, %v2891
        %v2894 = vmul.f32 %v2893, %v2892
        %v2895 = vmul.f32 0.5, %v2894
        %v2896 = vsub.f32 1.5, %v2895
        %v2897 = vmul.f32 %v2892, %v2896
        %vm2898 = vweird.f32 %v2891
        %vm2899 = vweird.f32 %v2892
        %vm2900 = vmor %vm2898, %vm2899
        %v2901 = vsel %vm2900, %v2892, %v2897
        %v2902 = vmul.f32 %v2885, %v2901
        %v2904 = vperm.slane %v1357, 0
        %v2906 = vmul.f32 %v2902, %v2904
        %v2908 = vperm.slane %v1358, 0
        %v2910 = vadd.f32 %v2906, %v2908
        %v2911 = vpack.c.bf16 %v2910, %v2910
        %v2913 = vperm.slane %v1363, 0
        %v2919 = vunpack.c.l.b16 %v1359
        %v2920 = vunpack.c.l.b16 %v1360
        %v2921 = vunpack.c.l.b16 %v1361
        %v2922 = vunpack.c.l.b16 %v1362
        %v2923 = vpack.c.b16 %v2920, %v2919
        %v2924 = vpack.c.b16 %v2922, %v2921
        %v2928 = vsel %vm1366, %v2911, 0
        %2930 = vmatpush.bf16.msra.mxu0 0
        %2931 = vmatpush.bf16.msra.mxu0 0
        %2932 = vmatpush.bf16.msra.mxu0 0
        %2933 = vmatpush.bf16.msra.mxu0 0
        %2934 = vmatpush.bf16.msra.mxu0 0
        %2935 = vmatpush.bf16.msra.mxu0 0
        %2936 = vmatpush.bf16.msra.mxu0 %v2924
        %2937 = vmatpush.bf16.msra.mxu0 %v2923
        %2938 = vmatmul.bf16.gmra.mxu0 %v2928
        %v2939 = vpop.f32.mrf.mxu0
        %v2940 = vadd.f32 %v2913, %v2939
        %v2941 = vpop.f32.mrf.mxu0
        %2942 = vdwg.mxu0
        %2943 = vst [vmem:[%s1270] sm:$0xff] %v2940
        %s2944 = sand.u32 %s999, 1
        %s2945 = scalar_lea.sflag [#allocation3], %s2944
        %s2946 = sand.u32 %s999, 1
        %s2947 = smul.addr %s2946, 8
        %s2948 = scalar_lea.vmem [#allocation2], %s2947
        // Predicated region
        $region189: #{transformer_forward.1} parent=187 // pred_check
          %p2949 = pneg %p1009
        $region190: #{transformer_forward.1} parent=187 // pred_check_branch
          %2951 = sbr.rel (%p2949) target = $region192
        $region191: #{transformer_forward.1} parent=187 // pred_region
          %2953 = vsyncadd %s2945, 0
          %s2954 = smul.addr %s99, 8
          %s2955 = scalar_lea.hbm %s85, %s2954
          %s2957 = sshll.u32 %s2948, 4
          %s2958 = int_to_ptr.vmem [resolvable:$true] %s2957
          %s2959 = sshll.u32 %s2955, 4
          %s2960 = int_to_ptr.hbm [resolvable:$true] %s2959
          %2962 = dma.vmem_to_hbm [thread:$0]  %s2958, 128, %s2960, %s2945
        $region192: #{transformer_forward.1} parent=187 // pred_fallthru
          _
      $region188: #{transformer_forward.1} parent=5 // pred_fallthru
        _
      %p2963 = scmp.le.s32.totalorder 2, %s94
      // Predicated region
      $region193: #{transformer_forward.1} parent=5 // pred_check
        %p2964 = pneg %p2963
      $region194: #{transformer_forward.1} parent=5 // pred_check_branch
        %2966 = sbr.rel (%p2964) target = $region196
      $region195: #{transformer_forward.1} parent=5 // pred_region
        %s2967 = ssub.s32 %s94, 2
        // Predicated region
        $region197: #{transformer_forward.1} parent=195 // pred_check
          %p2968 = pneg %p1015
        $region198: #{transformer_forward.1} parent=195 // pred_check_branch
          %2970 = sbr.rel (%p2968) target = $region200
        $region199: #{transformer_forward.1} parent=195 // pred_region
          %s2971 = sand.u32 %s1000, 1
          %s2972 = scalar_lea.sflag [#allocation3], %s2971
          %s2973 = sand.u32 %s1000, 1
          %s2974 = smul.addr %s2973, 8
          %s2975 = scalar_lea.vmem [#allocation2], %s2974
          %2977 = dma.done %s2972, 128
        $region200: #{transformer_forward.1} parent=195 // pred_fallthru
          _
      $region196: #{transformer_forward.1} parent=5 // pred_fallthru
        _
    $region6: #{transformer_forward.1} parent=1 // loop_footer
      %s98 = sadd.s32 1, %s94
    $region7: #{transformer_forward.1} parent=1 // loop_footer_branch
      %93 = sbr.rel target = $region3
    $region8: #{transformer_forward.1} parent=1 // loop_exit
      _
    %2978 = vsyncpa [#allocation3], 1
    %s2979 = scalar_lea.sflag [#allocation3], 1
    %2980 = vsyncpa %s2979, 1

</llo_original>
